<compile_context>
chip_gen: v5e
topology: v5e:2x2
jax: 0.10.0
libtpu: 0.0.40
codegen_flags: <defaults>
</compile_context>

<pallas_src>
import functools

import jax
import jax.numpy as jnp
from jax.experimental import pallas as pl
from jax.experimental.pallas import tpu as pltpu

NEG_SLOPE = 0.01   # PyTorch F.leaky_relu default negative_slope
LANE = 128         # TPU lane width; every channel/feature axis is padded to it
BS = 8             # batch tile (one sublane tile)


def _round_up(n, m):
    return ((n + m - 1) // m) * m


def _lrelu(v):
    return jnp.where(v >= 0.0, v, NEG_SLOPE * v)


def _dot(a, b):
    # bf16 x bf16 MXU matmul with f32 accumulation.
    return jnp.dot(a.astype(jnp.bfloat16), b, preferred_element_type=jnp.float32)


# ---------------------------------------------------------------------------
# The single fused kernel.
#
# Row layouts (per 8-example batch tile):
#   input x        : rows = (h_padded, w', b)   w' = (kw, wo)   lanes = 1
#   conv1 out (y1) : rows = (h, w', b)                          lanes = 128 (50 real)
#   redu1 out (r1) : rows = (kw, h, wo, b)                      lanes = 128 (5 real)
#   conv2 out (y2) : rows = (h2, wo, b)                         lanes = 128 (40 real)
#   redu2 out (r2) : rows = (h2o, wo, b)                        lanes = 128 (10 real)
# With w' ordered (kw, wo) every conv2 tap is one contiguous, 8-aligned row
# slice of the r1 scratch, so conv2 is 15 dense per-tap matmuls.
# ---------------------------------------------------------------------------
def _grunet_kernel(*refs, H, W, Wo, Ho1, Ho2, n_r1, n_r2, n_d):
    out_ref = refs[-5]
    y1_ref, r1_ref, y2_ref, r2_ref = refs[-4:]
    it = iter(refs[:-5])
    nxt = lambda: next(it)

    x_ref = nxt()                           # ((H+4)*W*BS, 1) f32 (height zero-padded)
    w1_ref, b1_ref = nxt(), nxt()           # (8, 128) f32 [row kh], (1, 128) f32
    wr1_ref, br1_ref = nxt(), nxt()         # (128, 128) bf16, (1, 128) f32
    w2_ref, b2_ref = nxt(), nxt()           # (15*8, 128) bf16 [tap kh*3+kw], (1, 128) f32
    wr2_ref, br2_ref = nxt(), nxt()         # (128, 128) bf16, (1, 128) f32
    wd1_r1_ref, bd1_r1_ref = nxt(), nxt()   # (P1*8, HID) bf16, (1, HID) f32
    r1_rest = [(nxt(), nxt()) for _ in range(n_r1)]
    wd1_r2_ref, bd1_r2_ref = nxt(), nxt()   # (P2*16, HID) bf16, (1, HID) f32
    r2_rest = [(nxt(), nxt()) for _ in range(n_r2)]
    wdd0_ref, bdd0_ref = nxt(), nxt()       # (2*HID, HID) bf16, (1, HID) f32
    d_rest = [(nxt(), nxt()) for _ in range(n_d)]
    wo_ref, bo_ref = nxt(), nxt()           # (DOUT_P, OUT_P) bf16, (1, OUT_P) f32

    NW = W * BS            # rows per height group, stage 1 (multiple of 8)
    NWO = Wo * BS          # rows per height group, stage 2 (multiple of 8)
    HID = wd1_r1_ref.shape[1]

    # ---- conv1 (5x1, pad 2): in-kernel tap-sum of VPU broadcast-MACs --------
    acc = x_ref[0:H * NW, :] * w1_ref[0:1, :]
    for kh in range(1, 5):
        acc = acc + x_ref[kh * NW:kh * NW + H * NW, :] * w1_ref[kh:kh + 1, :]
    y1_ref[...] = acc                       # bias folded in after pool1 (max(x+b)=max(x)+b)

    # ---- pool1 (7x1 /2, pad 3) -> lrelu -> redu1 (1x1) -> lrelu --------------
    b1 = b1_ref[...]
    wr1 = wr1_ref[...]
    br1 = br1_ref[...]
    for h0 in range(Ho1):
        lo, hi = max(0, 2 * h0 - 3), min(H - 1, 2 * h0 + 3)
        m = y1_ref[lo * NW:(lo + 1) * NW, :]
        for h in range(lo + 1, hi + 1):
            m = jnp.maximum(m, y1_ref[h * NW:(h + 1) * NW, :])
        r = _lrelu(_dot(_lrelu(m + b1), wr1) + br1)          # (W*BS, 128)
        for kw in range(3):                                  # re-order rows to (kw, h, wo, b)
            dst = kw * Ho1 * NWO + h0 * NWO
            r1_ref[dst:dst + NWO, :] = r[kw * NWO:(kw + 1) * NWO, :]

    # ---- conv2 (5x3, stride (1,3), pad (2,0)): 15 dense per-tap matmuls -----
    y2_ref[...] = jnp.zeros(y2_ref.shape, jnp.float32)
    for kh in range(5):
        h2_lo = max(0, 2 - kh)
        h2_hi = min(Ho1 - 1, Ho1 + 1 - kh)
        n_h = h2_hi - h2_lo + 1
        if n_h <= 0:
            continue                                          # tap entirely in zero padding
        h_lo = h2_lo + kh - 2
        for kw in range(3):
            t = kh * 3 + kw
            src = kw * Ho1 * NWO + h_lo * NWO
            lhs = r1_ref[src:src + n_h * NWO, 0:8]
            dst = h2_lo * NWO
            y2_ref[dst:dst + n_h * NWO, :] += _dot(lhs, w2_ref[t * 8:(t + 1) * 8, :])

    # ---- pool2 -> lrelu -> redu2 (1x1) -> lrelu ------------------------------
    b2 = b2_ref[...]
    wr2 = wr2_ref[...]
    br2 = br2_ref[...]
    for h0 in range(Ho2):
        lo, hi = max(0, 2 * h0 - 3), min(Ho1 - 1, 2 * h0 + 3)
        m = y2_ref[lo * NWO:(lo + 1) * NWO, :]
        for h in range(lo + 1, hi + 1):
            m = jnp.maximum(m, y2_ref[h * NWO:(h + 1) * NWO, :])
        r2_ref[h0 * NWO:(h0 + 1) * NWO, :] = _lrelu(_dot(_lrelu(m + b2), wr2) + br2)

    # ---- Deepnet chains + output linear (dropout = identity, eval mode) -----
    def mlp_rest(v, layers):
        for i, (w_r, b_r) in enumerate(layers):
            v = _dot(v, w_r[...]) + b_r[...]
            if i < len(layers) - 1:
                v = _lrelu(v)
        return v

    # First r1_dnet layer: tap-sum over the Ho1*W spatial positions of the
    # NCHW flatten -> one small matmul per position, no lane concatenation.
    acc1 = jnp.zeros((BS, HID), jnp.float32)
    for p in range(3 * Ho1 * Wo):
        acc1 = acc1 + _dot(r1_ref[p * BS:(p + 1) * BS, 0:8],
                           wd1_r1_ref[p * 8:(p + 1) * 8, :])
    v1 = mlp_rest(_lrelu(acc1 + bd1_r1_ref[...]), r1_rest)

    acc2 = jnp.zeros((BS, HID), jnp.float32)
    for p in range(Ho2 * Wo):
        acc2 = acc2 + _dot(r2_ref[p * BS:(p + 1) * BS, 0:16],
                           wd1_r2_ref[p * 16:(p + 1) * 16, :])
    v2 = mlp_rest(_lrelu(acc2 + bd1_r2_ref[...]), r2_rest)

    # Combined Deepnet: first layer as dot(r1, Wa) + dot(r2, Wb) (no concat).
    d = _lrelu(_dot(v1, wdd0_ref[0:HID, :]) +
               _dot(v2, wdd0_ref[HID:2 * HID, :]) + bdd0_ref[...])
    d = mlp_rest(d, d_rest)

    out = _dot(d, wo_ref[...]) + bo_ref[...]
    out_ref[...] = out.astype(out_ref.dtype)


# ---------------------------------------------------------------------------
# Wrapper: packs PyTorch-convention parameters into the kernel's dense,
# 128-lane-padded layout and issues the single pallas_call.
# ---------------------------------------------------------------------------
def grunet_forward(params, x, backwards, input_dim):
    """GRUNet inference forward.  x: (bs, backwards * input_dim) float32."""
    assert backwards % 4 == 0 and input_dim % 3 == 0
    bs = x.shape[0]
    H, W = backwards, input_dim
    Wo = W // 3
    Ho1 = (H - 1) // 2 + 1            # pool1 output height (= H // 2)
    Ho2 = (Ho1 - 1) // 2 + 1          # pool2 output height (= H // 4)
    Hp = H + 4                        # conv1 height zero-padding baked into rows
    Bblk = -(-bs // BS)
    Bpad = Bblk * BS

    hidden = params["out_lin"][0].shape[0] // 2
    output_dim = params["out_lin"][1].shape[0]
    hid_p = _round_up(hidden, LANE)
    out_p = _round_up(output_dim, LANE)
    f32, bf16 = jnp.float32, jnp.bfloat16

    # -- input: reorder width to (kw, wo), pad batch->8k and height by 2 ------
    xr = x.reshape(bs, H, Wo, 3).transpose(0, 1, 3, 2).reshape(bs, H, W)
    xr = jnp.pad(xr, ((0, Bpad - bs), (2, 2), (0, 0)))
    xr = xr.reshape(Bblk, BS, Hp, W).transpose(0, 2, 3, 1)     # (Bblk, Hp, W, BS)
    x_in = xr.reshape(Bblk * Hp * W * BS, 1).astype(f32)

    # -- small dense conv weights (no block-diagonal expansion) ---------------
    def pad_w(w, rp, cp):             # zero-pad a (r, c) weight, cast to bf16
        return (jnp.zeros((rp, cp), f32)
                .at[:w.shape[0], :w.shape[1]].set(w).astype(bf16))

    def pad_b(b, cp):
        return jnp.zeros((1, cp), f32).at[0, :b.shape[0]].set(b)

    w1, b1 = params["conv1"]                       # (50, 1, 5, 1), (50,)
    w1p = jnp.zeros((8, LANE), f32).at[:5, :50].set(w1[:, 0, :, 0].T)  # f32 (VPU)
    b1p = pad_b(b1, LANE)

    wr1, br1 = params["redu1"]                     # (5, 50, 1, 1), (5,)
    wr1p = pad_w(wr1[:, :, 0, 0].T, LANE, LANE)
    br1p = pad_b(br1, LANE)

    w2, b2 = params["conv2"]                       # (40, 5, 5, 3), (40,)
    w2t = jnp.transpose(w2, (2, 3, 1, 0))          # (kh, kw, cin, cout)
    w2p = (jnp.zeros((5, 3, 8, LANE), f32).at[:, :, :5, :40].set(w2t)
           .reshape(5 * 3 * 8, LANE).astype(bf16))
    b2p = pad_b(b2, LANE)

    wr2, br2 = params["redu2"]                     # (10, 40, 1, 1), (10,)
    wr2p = pad_w(wr2[:, :, 0, 0].T, LANE, LANE)
    br2p = pad_b(br2, LANE)

    # -- Deepnet first layers: permuted to the kernel's (kw, h, wo, c) / ------
    #    (h, wo, c) row order and packed as per-position (8 or 16, hid) slices.
    r1_layers = params["r1_dnet"]
    wd, bd = r1_layers[0]                          # (5*Ho1*W, hidden)
    wd = wd.reshape(5, Ho1, Wo, 3, hidden).transpose(3, 1, 2, 0, 4)
    wd = jnp.pad(wd, ((0, 0), (0, 0), (0, 0), (0, 3), (0, hid_p - hidden)))
    wd1_r1 = wd.reshape(3 * Ho1 * Wo * 8, hid_p).astype(bf16)
    bd1_r1 = pad_b(bd, hid_p)

    r2_layers = params["r2_dnet"]
    wd, bd = r2_layers[0]                          # (10*Ho2*Wo, hidden)
    wd = wd.reshape(10, Ho2, Wo, hidden).transpose(1, 2, 0, 3)
    wd = jnp.pad(wd, ((0, 0), (0, 0), (0, 6), (0, hid_p - hidden)))
    wd1_r2 = wd.reshape(Ho2 * Wo * 16, hid_p).astype(bf16)
    bd1_r2 = pad_b(bd, hid_p)

    def padded_layer(w, b):
        rp, cp = _round_up(w.shape[0], LANE), _round_up(w.shape[1], LANE)
        return pad_w(w, rp, cp), pad_b(b, cp)

    rest_r1 = [padded_layer(w, b) for (w, b) in r1_layers[1:]]
    rest_r2 = [padded_layer(w, b) for (w, b) in r2_layers[1:]]

    d_layers = params["deepnet"]
    wdd, bdd = d_layers[0]                         # (2*hidden, hidden)
    wdd0 = jnp.concatenate(
        [pad_w(wdd[:hidden], hid_p, hid_p), pad_w(wdd[hidden:], hid_p, hid_p)],
        axis=0)                                    # (2*hid_p, hid_p)
    bdd0 = pad_b(bdd, hid_p)
    rest_d = [padded_layer(w, b) for (w, b) in d_layers[1:]]

    wo_p, bo_p = padded_layer(*params["out_lin"])  # ((2*hidden)_pad, out_p)

    flat = [x_in, w1p, b1p, wr1p, br1p, w2p, b2p, wr2p, br2p, wd1_r1, bd1_r1]
    for w, b in rest_r1:
        flat += [w, b]
    flat += [wd1_r2, bd1_r2]
    for w, b in rest_r2:
        flat += [w, b]
    flat += [wdd0, bdd0]
    for w, b in rest_d:
        flat += [w, b]
    flat += [wo_p, bo_p]

    kernel = functools.partial(
        _grunet_kernel, H=H, W=W, Wo=Wo, Ho1=Ho1, Ho2=Ho2,
        n_r1=len(rest_r1), n_r2=len(rest_r2), n_d=len(rest_d))

    flops = int(2 * Bpad * sum(int(a.size) for a in flat[1:]))
    bytes_accessed = int(sum(int(a.size) * a.dtype.itemsize for a in flat)
                         + Bpad * out_p * 4)

    in_specs = [pl.BlockSpec((Hp * W * BS, 1), lambda i: (i, 0))]
    in_specs += [pl.BlockSpec(a.shape, lambda i: (0, 0)) for a in flat[1:]]

    out = pl.pallas_call(
        kernel,
        out_shape=jax.ShapeDtypeStruct((Bpad, out_p), f32),
        grid=(Bblk,),
        in_specs=in_specs,
        out_specs=pl.BlockSpec((BS, out_p), lambda i: (i, 0)),
        scratch_shapes=[
            pltpu.VMEM((H * W * BS, LANE), f32),      # conv1 output
            pltpu.VMEM((Ho1 * W * BS, LANE), f32),    # redu1 output, (kw, h, wo, b)
            pltpu.VMEM((Ho1 * Wo * BS, LANE), f32),   # conv2 output
            pltpu.VMEM((Ho2 * Wo * BS, LANE), f32),   # redu2 output
        ],
        compiler_params=pltpu.CompilerParams(
            dimension_semantics=("parallel",),
            vmem_limit_bytes=32 * 1024 * 1024),
        cost_estimate=pl.CostEstimate(
            flops=flops, transcendentals=0, bytes_accessed=bytes_accessed),
    )(*flat)

    return out[:bs, :output_dim]


# ---------------------------------------------------------------------------
# Parameter init (deterministic, PyTorch-style uniform bounds).
# Conv weights are stored OIHW; linear weights are stored (in, out).
# ---------------------------------------------------------------------------
def _init_linear(key, fan_in, fan_out):
    kw, kb = jax.random.split(key)
    bound = 1.0 / jnp.sqrt(jnp.float32(fan_in))
    w = jax.random.uniform(kw, (fan_in, fan_out), jnp.float32, -bound, bound)
    b = jax.random.uniform(kb, (fan_out,), jnp.float32, -bound, bound)
    return w, b


def _init_conv(key, cout, cin, kh, kw):
    kkw, kkb = jax.random.split(key)
    fan_in = cin * kh * kw
    bound = 1.0 / jnp.sqrt(jnp.float32(fan_in))
    w = jax.random.uniform(kkw, (cout, cin, kh, kw), jnp.float32, -bound, bound)
    b = jax.random.uniform(kkb, (cout,), jnp.float32, -bound, bound)
    return w, b


def _init_deepnet(key, in_dim, layers, out_dim):
    dims = [in_dim] + [d for blk in layers for d in blk] + [out_dim]
    keys = jax.random.split(key, len(dims) - 1)
    return [_init_linear(k, di, do) for k, di, do in zip(keys, dims[:-1], dims[1:])]


def init_grunet(key, input_dim, hidden_dim, output_dim, backwards):
    assert backwards % 4 == 0
    conv_r1 = int(5 * backwards / 2 * input_dim)
    conv_r2 = int(10 * backwards / 4 * input_dim / 3)
    ks = jax.random.split(key, 8)
    h = hidden_dim
    return {
        "conv1": _init_conv(ks[0], 50, 1, 5, 1),
        "redu1": _init_conv(ks[1], 5, 50, 1, 1),
        "conv2": _init_conv(ks[2], 40, 5, 5, 3),
        "redu2": _init_conv(ks[3], 10, 40, 1, 1),
        "r1_dnet": _init_deepnet(ks[4], conv_r1, [[h, h, h], [h, h, h]], h),
        "r2_dnet": _init_deepnet(ks[5], conv_r2, [[h, h, h], [h, h, h]], h),
        "deepnet": _init_deepnet(ks[6], h * 2, [[h, h, h], [h, h, h]], h * 2),
        "out_lin": _init_linear(ks[7], h * 2, output_dim),
    }


# ---------------------------------------------------------------------------
if __name__ == "__main__":
    # Small shapes consistent with the module's constraints:
    #   backwards % 4 == 0, input_dim % 3 == 0 (conv2 kw=3, stride 3).
    backwards = 8
    input_dim = 3
    hidden_dim = 32
    output_dim = 16
    bs = 2

    key = jax.random.PRNGKey(0)
    kparams, kx = jax.random.split(key)

    params = init_grunet(kparams, input_dim, hidden_dim, output_dim, backwards)
    x = jax.random.normal(kx, (bs, backwards * input_dim), jnp.float32)

    fwd = jax.jit(grunet_forward, static_argnums=(2, 3))
    out = jax.block_until_ready(fwd(params, x, backwards, input_dim))

    assert out.shape == (bs, output_dim), out.shape
    assert out.dtype == jnp.float32
    print("KERNEL_OK")
</pallas_src>

<mosaic_0001>
module attributes {stable_mosaic.version = 11 : i64} {
  func.func @_grunet_kernel(%arg0: i32, %arg1: memref<288x1xf32, #tpu.memory_space<vmem>>, %arg2: memref<8x128xf32, #tpu.memory_space<vmem>>, %arg3: memref<1x128xf32, #tpu.memory_space<vmem>>, %arg4: memref<128x128xbf16, #tpu.memory_space<vmem>>, %arg5: memref<1x128xf32, #tpu.memory_space<vmem>>, %arg6: memref<120x128xbf16, #tpu.memory_space<vmem>>, %arg7: memref<1x128xf32, #tpu.memory_space<vmem>>, %arg8: memref<128x128xbf16, #tpu.memory_space<vmem>>, %arg9: memref<1x128xf32, #tpu.memory_space<vmem>>, %arg10: memref<96x128xbf16, #tpu.memory_space<vmem>>, %arg11: memref<1x128xf32, #tpu.memory_space<vmem>>, %arg12: memref<128x128xbf16, #tpu.memory_space<vmem>>, %arg13: memref<1x128xf32, #tpu.memory_space<vmem>>, %arg14: memref<128x128xbf16, #tpu.memory_space<vmem>>, %arg15: memref<1x128xf32, #tpu.memory_space<vmem>>, %arg16: memref<128x128xbf16, #tpu.memory_space<vmem>>, %arg17: memref<1x128xf32, #tpu.memory_space<vmem>>, %arg18: memref<128x128xbf16, #tpu.memory_space<vmem>>, %arg19: memref<1x128xf32, #tpu.memory_space<vmem>>, %arg20: memref<128x128xbf16, #tpu.memory_space<vmem>>, %arg21: memref<1x128xf32, #tpu.memory_space<vmem>>, %arg22: memref<128x128xbf16, #tpu.memory_space<vmem>>, %arg23: memref<1x128xf32, #tpu.memory_space<vmem>>, %arg24: memref<32x128xbf16, #tpu.memory_space<vmem>>, %arg25: memref<1x128xf32, #tpu.memory_space<vmem>>, %arg26: memref<128x128xbf16, #tpu.memory_space<vmem>>, %arg27: memref<1x128xf32, #tpu.memory_space<vmem>>, %arg28: memref<128x128xbf16, #tpu.memory_space<vmem>>, %arg29: memref<1x128xf32, #tpu.memory_space<vmem>>, %arg30: memref<128x128xbf16, #tpu.memory_space<vmem>>, %arg31: memref<1x128xf32, #tpu.memory_space<vmem>>, %arg32: memref<128x128xbf16, #tpu.memory_space<vmem>>, %arg33: memref<1x128xf32, #tpu.memory_space<vmem>>, %arg34: memref<128x128xbf16, #tpu.memory_space<vmem>>, %arg35: memref<1x128xf32, #tpu.memory_space<vmem>>, %arg36: memref<128x128xbf16, #tpu.memory_space<vmem>>, %arg37: memref<1x128xf32, #tpu.memory_space<vmem>>, %arg38: memref<256x128xbf16, #tpu.memory_space<vmem>>, %arg39: memref<1x128xf32, #tpu.memory_space<vmem>>, %arg40: memref<128x128xbf16, #tpu.memory_space<vmem>>, %arg41: memref<1x128xf32, #tpu.memory_space<vmem>>, %arg42: memref<128x128xbf16, #tpu.memory_space<vmem>>, %arg43: memref<1x128xf32, #tpu.memory_space<vmem>>, %arg44: memref<128x128xbf16, #tpu.memory_space<vmem>>, %arg45: memref<1x128xf32, #tpu.memory_space<vmem>>, %arg46: memref<128x128xbf16, #tpu.memory_space<vmem>>, %arg47: memref<1x128xf32, #tpu.memory_space<vmem>>, %arg48: memref<128x128xbf16, #tpu.memory_space<vmem>>, %arg49: memref<1x128xf32, #tpu.memory_space<vmem>>, %arg50: memref<128x128xbf16, #tpu.memory_space<vmem>>, %arg51: memref<1x128xf32, #tpu.memory_space<vmem>>, %arg52: memref<128x128xbf16, #tpu.memory_space<vmem>>, %arg53: memref<1x128xf32, #tpu.memory_space<vmem>>, %arg54: memref<8x128xf32, #tpu.memory_space<vmem>>, %arg55: memref<192x128xf32, #tpu.memory_space<vmem>>, %arg56: memref<96x128xf32, #tpu.memory_space<vmem>>, %arg57: memref<32x128xf32, #tpu.memory_space<vmem>>, %arg58: memref<16x128xf32, #tpu.memory_space<vmem>>) attributes {dimension_semantics = [#tpu.dimension_semantics<parallel>], iteration_bounds = array<i64: 1>, scalar_prefetch = 0 : i64, scratch_operands = 4 : i64, tpu.core_type = #tpu.core_type<tc>, window_params = [{transform_indices = @transform_0, window_bounds = array<i64: 288, 1>}, {pipeline_mode = #tpu.pipeline_mode<synchronous>, transform_indices = @transform_1, window_bounds = array<i64: 8, 128>}, {pipeline_mode = #tpu.pipeline_mode<synchronous>, transform_indices = @transform_2, window_bounds = array<i64: 1, 128>}, {pipeline_mode = #tpu.pipeline_mode<synchronous>, transform_indices = @transform_3, window_bounds = array<i64: 128, 128>}, {pipeline_mode = #tpu.pipeline_mode<synchronous>, transform_indices = @transform_4, window_bounds = array<i64: 1, 128>}, {pipeline_mode = #tpu.pipeline_mode<synchronous>, transform_indices = @transform_5, window_bounds = array<i64: 120, 128>}, {pipeline_mode = #tpu.pipeline_mode<synchronous>, transform_indices = @transform_6, window_bounds = array<i64: 1, 128>}, {pipeline_mode = #tpu.pipeline_mode<synchronous>, transform_indices = @transform_7, window_bounds = array<i64: 128, 128>}, {pipeline_mode = #tpu.pipeline_mode<synchronous>, transform_indices = @transform_8, window_bounds = array<i64: 1, 128>}, {pipeline_mode = #tpu.pipeline_mode<synchronous>, transform_indices = @transform_9, window_bounds = array<i64: 96, 128>}, {pipeline_mode = #tpu.pipeline_mode<synchronous>, transform_indices = @transform_10, window_bounds = array<i64: 1, 128>}, {pipeline_mode = #tpu.pipeline_mode<synchronous>, transform_indices = @transform_11, window_bounds = array<i64: 128, 128>}, {pipeline_mode = #tpu.pipeline_mode<synchronous>, transform_indices = @transform_12, window_bounds = array<i64: 1, 128>}, {pipeline_mode = #tpu.pipeline_mode<synchronous>, transform_indices = @transform_13, window_bounds = array<i64: 128, 128>}, {pipeline_mode = #tpu.pipeline_mode<synchronous>, transform_indices = @transform_14, window_bounds = array<i64: 1, 128>}, {pipeline_mode = #tpu.pipeline_mode<synchronous>, transform_indices = @transform_15, window_bounds = array<i64: 128, 128>}, {pipeline_mode = #tpu.pipeline_mode<synchronous>, transform_indices = @transform_16, window_bounds = array<i64: 1, 128>}, {pipeline_mode = #tpu.pipeline_mode<synchronous>, transform_indices = @transform_17, window_bounds = array<i64: 128, 128>}, {pipeline_mode = #tpu.pipeline_mode<synchronous>, transform_indices = @transform_18, window_bounds = array<i64: 1, 128>}, {pipeline_mode = #tpu.pipeline_mode<synchronous>, transform_indices = @transform_19, window_bounds = array<i64: 128, 128>}, {pipeline_mode = #tpu.pipeline_mode<synchronous>, transform_indices = @transform_20, window_bounds = array<i64: 1, 128>}, {pipeline_mode = #tpu.pipeline_mode<synchronous>, transform_indices = @transform_21, window_bounds = array<i64: 128, 128>}, {pipeline_mode = #tpu.pipeline_mode<synchronous>, transform_indices = @transform_22, window_bounds = array<i64: 1, 128>}, {pipeline_mode = #tpu.pipeline_mode<synchronous>, transform_indices = @transform_23, window_bounds = array<i64: 32, 128>}, {pipeline_mode = #tpu.pipeline_mode<synchronous>, transform_indices = @transform_24, window_bounds = array<i64: 1, 128>}, {pipeline_mode = #tpu.pipeline_mode<synchronous>, transform_indices = @transform_25, window_bounds = array<i64: 128, 128>}, {pipeline_mode = #tpu.pipeline_mode<synchronous>, transform_indices = @transform_26, window_bounds = array<i64: 1, 128>}, {pipeline_mode = #tpu.pipeline_mode<synchronous>, transform_indices = @transform_27, window_bounds = array<i64: 128, 128>}, {pipeline_mode = #tpu.pipeline_mode<synchronous>, transform_indices = @transform_28, window_bounds = array<i64: 1, 128>}, {pipeline_mode = #tpu.pipeline_mode<synchronous>, transform_indices = @transform_29, window_bounds = array<i64: 128, 128>}, {pipeline_mode = #tpu.pipeline_mode<synchronous>, transform_indices = @transform_30, window_bounds = array<i64: 1, 128>}, {pipeline_mode = #tpu.pipeline_mode<synchronous>, transform_indices = @transform_31, window_bounds = array<i64: 128, 128>}, {pipeline_mode = #tpu.pipeline_mode<synchronous>, transform_indices = @transform_32, window_bounds = array<i64: 1, 128>}, {pipeline_mode = #tpu.pipeline_mode<synchronous>, transform_indices = @transform_33, window_bounds = array<i64: 128, 128>}, {pipeline_mode = #tpu.pipeline_mode<synchronous>, transform_indices = @transform_34, window_bounds = array<i64: 1, 128>}, {pipeline_mode = #tpu.pipeline_mode<synchronous>, transform_indices = @transform_35, window_bounds = array<i64: 128, 128>}, {pipeline_mode = #tpu.pipeline_mode<synchronous>, transform_indices = @transform_36, window_bounds = array<i64: 1, 128>}, {pipeline_mode = #tpu.pipeline_mode<synchronous>, transform_indices = @transform_37, window_bounds = array<i64: 256, 128>}, {pipeline_mode = #tpu.pipeline_mode<synchronous>, transform_indices = @transform_38, window_bounds = array<i64: 1, 128>}, {pipeline_mode = #tpu.pipeline_mode<synchronous>, transform_indices = @transform_39, window_bounds = array<i64: 128, 128>}, {pipeline_mode = #tpu.pipeline_mode<synchronous>, transform_indices = @transform_40, window_bounds = array<i64: 1, 128>}, {pipeline_mode = #tpu.pipeline_mode<synchronous>, transform_indices = @transform_41, window_bounds = array<i64: 128, 128>}, {pipeline_mode = #tpu.pipeline_mode<synchronous>, transform_indices = @transform_42, window_bounds = array<i64: 1, 128>}, {pipeline_mode = #tpu.pipeline_mode<synchronous>, transform_indices = @transform_43, window_bounds = array<i64: 128, 128>}, {pipeline_mode = #tpu.pipeline_mode<synchronous>, transform_indices = @transform_44, window_bounds = array<i64: 1, 128>}, {pipeline_mode = #tpu.pipeline_mode<synchronous>, transform_indices = @transform_45, window_bounds = array<i64: 128, 128>}, {pipeline_mode = #tpu.pipeline_mode<synchronous>, transform_indices = @transform_46, window_bounds = array<i64: 1, 128>}, {pipeline_mode = #tpu.pipeline_mode<synchronous>, transform_indices = @transform_47, window_bounds = array<i64: 128, 128>}, {pipeline_mode = #tpu.pipeline_mode<synchronous>, transform_indices = @transform_48, window_bounds = array<i64: 1, 128>}, {pipeline_mode = #tpu.pipeline_mode<synchronous>, transform_indices = @transform_49, window_bounds = array<i64: 128, 128>}, {pipeline_mode = #tpu.pipeline_mode<synchronous>, transform_indices = @transform_50, window_bounds = array<i64: 1, 128>}, {pipeline_mode = #tpu.pipeline_mode<synchronous>, transform_indices = @transform_51, window_bounds = array<i64: 128, 128>}, {pipeline_mode = #tpu.pipeline_mode<synchronous>, transform_indices = @transform_52, window_bounds = array<i64: 1, 128>}, {transform_indices = @transform_53, window_bounds = array<i64: 8, 128>}]} {
    %c0 = arith.constant 0 : index
    %c0_0 = arith.constant 0 : index
    %0 = vector.load %arg1[%c0, %c0_0] : memref<288x1xf32, #tpu.memory_space<vmem>>, vector<192x1xf32>
    %c0_1 = arith.constant 0 : index
    %c0_2 = arith.constant 0 : index
    %1 = vector.load %arg2[%c0_1, %c0_2] : memref<8x128xf32, #tpu.memory_space<vmem>>, vector<1x128xf32>
    %2 = vector.broadcast %0 : vector<192x1xf32> to vector<192x128xf32>
    %3 = vector.broadcast %1 : vector<1x128xf32> to vector<192x128xf32>
    %4 = arith.mulf %2, %3 : vector<192x128xf32>
    %c24 = arith.constant 24 : index
    %c0_3 = arith.constant 0 : index
    %5 = vector.load %arg1[%c24, %c0_3] : memref<288x1xf32, #tpu.memory_space<vmem>>, vector<192x1xf32>
    %c1 = arith.constant 1 : index
    %c0_4 = arith.constant 0 : index
    %6 = vector.load %arg2[%c1, %c0_4] : memref<8x128xf32, #tpu.memory_space<vmem>>, vector<1x128xf32>
    %7 = vector.broadcast %5 : vector<192x1xf32> to vector<192x128xf32>
    %8 = vector.broadcast %6 : vector<1x128xf32> to vector<192x128xf32>
    %9 = arith.mulf %7, %8 : vector<192x128xf32>
    %10 = arith.addf %4, %9 : vector<192x128xf32>
    %c48 = arith.constant 48 : index
    %c0_5 = arith.constant 0 : index
    %11 = vector.load %arg1[%c48, %c0_5] : memref<288x1xf32, #tpu.memory_space<vmem>>, vector<192x1xf32>
    %c2 = arith.constant 2 : index
    %c0_6 = arith.constant 0 : index
    %12 = vector.load %arg2[%c2, %c0_6] : memref<8x128xf32, #tpu.memory_space<vmem>>, vector<1x128xf32>
    %13 = vector.broadcast %11 : vector<192x1xf32> to vector<192x128xf32>
    %14 = vector.broadcast %12 : vector<1x128xf32> to vector<192x128xf32>
    %15 = arith.mulf %13, %14 : vector<192x128xf32>
    %16 = arith.addf %10, %15 : vector<192x128xf32>
    %c72 = arith.constant 72 : index
    %c0_7 = arith.constant 0 : index
    %17 = vector.load %arg1[%c72, %c0_7] : memref<288x1xf32, #tpu.memory_space<vmem>>, vector<192x1xf32>
    %c3 = arith.constant 3 : index
    %c0_8 = arith.constant 0 : index
    %18 = vector.load %arg2[%c3, %c0_8] : memref<8x128xf32, #tpu.memory_space<vmem>>, vector<1x128xf32>
    %19 = vector.broadcast %17 : vector<192x1xf32> to vector<192x128xf32>
    %20 = vector.broadcast %18 : vector<1x128xf32> to vector<192x128xf32>
    %21 = arith.mulf %19, %20 : vector<192x128xf32>
    %22 = arith.addf %16, %21 : vector<192x128xf32>
    %c96 = arith.constant 96 : index
    %c0_9 = arith.constant 0 : index
    %23 = vector.load %arg1[%c96, %c0_9] : memref<288x1xf32, #tpu.memory_space<vmem>>, vector<192x1xf32>
    %c4 = arith.constant 4 : index
    %c0_10 = arith.constant 0 : index
    %24 = vector.load %arg2[%c4, %c0_10] : memref<8x128xf32, #tpu.memory_space<vmem>>, vector<1x128xf32>
    %25 = vector.broadcast %23 : vector<192x1xf32> to vector<192x128xf32>
    %26 = vector.broadcast %24 : vector<1x128xf32> to vector<192x128xf32>
    %27 = arith.mulf %25, %26 : vector<192x128xf32>
    %28 = arith.addf %22, %27 : vector<192x128xf32>
    %c0_11 = arith.constant 0 : index
    %c0_12 = arith.constant 0 : index
    %29 = vector.load %arg55[%c0_11, %c0_12] : memref<192x128xf32, #tpu.memory_space<vmem>>, vector<192x128xf32>
    tpu.vector_store %arg55[%c0_11, %c0_12], %28 {strides = array<i32>} : memref<192x128xf32, #tpu.memory_space<vmem>>, vector<192x128xf32>,
    %c0_13 = arith.constant 0 : index
    %c0_14 = arith.constant 0 : index
    %30 = vector.load %arg3[%c0_13, %c0_14] : memref<1x128xf32, #tpu.memory_space<vmem>>, vector<1x128xf32>
    %c0_15 = arith.constant 0 : index
    %c0_16 = arith.constant 0 : index
    %31 = vector.load %arg4[%c0_15, %c0_16] : memref<128x128xbf16, #tpu.memory_space<vmem>>, vector<128x128xbf16>
    %c0_17 = arith.constant 0 : index
    %c0_18 = arith.constant 0 : index
    %32 = vector.load %arg5[%c0_17, %c0_18] : memref<1x128xf32, #tpu.memory_space<vmem>>, vector<1x128xf32>
    %c0_19 = arith.constant 0 : index
    %c0_20 = arith.constant 0 : index
    %33 = vector.load %arg55[%c0_19, %c0_20] : memref<192x128xf32, #tpu.memory_space<vmem>>, vector<24x128xf32>
    %c24_21 = arith.constant 24 : index
    %c0_22 = arith.constant 0 : index
    %34 = vector.load %arg55[%c24_21, %c0_22] : memref<192x128xf32, #tpu.memory_space<vmem>>, vector<24x128xf32>
    %35 = arith.maximumf %33, %34 : vector<24x128xf32>
    %c48_23 = arith.constant 48 : index
    %c0_24 = arith.constant 0 : index
    %36 = vector.load %arg55[%c48_23, %c0_24] : memref<192x128xf32, #tpu.memory_space<vmem>>, vector<24x128xf32>
    %37 = arith.maximumf %35, %36 : vector<24x128xf32>
    %c72_25 = arith.constant 72 : index
    %c0_26 = arith.constant 0 : index
    %38 = vector.load %arg55[%c72_25, %c0_26] : memref<192x128xf32, #tpu.memory_space<vmem>>, vector<24x128xf32>
    %39 = arith.maximumf %37, %38 : vector<24x128xf32>
    %40 = vector.broadcast %30 : vector<1x128xf32> to vector<24x128xf32>
    %41 = arith.addf %39, %40 : vector<24x128xf32>
    %cst = arith.constant 0.000000e+00 : f32
    %42 = vector.broadcast %cst : f32 to vector<24x128xf32>
    %43 = arith.cmpf oge, %41, %42 : vector<24x128xf32>
    %cst_27 = arith.constant 0.00999999977 : f32
    %44 = vector.broadcast %cst_27 : f32 to vector<24x128xf32>
    %45 = arith.mulf %44, %41 : vector<24x128xf32>
    %46 = arith.select %43, %41, %45 : vector<24x128xi1>, vector<24x128xf32>
    %47 = arith.truncf %46 : vector<24x128xf32> to vector<24x128xbf16>
    %cst_28 = arith.constant dense<0.000000e+00> : vector<24x128xf32>
    %48 = tpu.matmul %47, %31, %cst_28 {dimension_numbers = #tpu.dot_dimension_numbers<[1], [0], [0], [1], [0, 0, 1, 1], [], []>} : vector<24x128xbf16>, vector<128x128xbf16>, vector<24x128xf32> -> vector<24x128xf32>
    %49 = vector.broadcast %32 : vector<1x128xf32> to vector<24x128xf32>
    %50 = arith.addf %48, %49 : vector<24x128xf32>
    %cst_29 = arith.constant 0.000000e+00 : f32
    %51 = vector.broadcast %cst_29 : f32 to vector<24x128xf32>
    %52 = arith.cmpf oge, %50, %51 : vector<24x128xf32>
    %cst_30 = arith.constant 0.00999999977 : f32
    %53 = vector.broadcast %cst_30 : f32 to vector<24x128xf32>
    %54 = arith.mulf %53, %50 : vector<24x128xf32>
    %55 = arith.select %52, %50, %54 : vector<24x128xi1>, vector<24x128xf32>
    %56 = vector.extract_strided_slice %55 {offsets = [0, 0], sizes = [8, 128], strides = [1, 1]} : vector<24x128xf32> to vector<8x128xf32>
    %c0_31 = arith.constant 0 : index
    %c0_32 = arith.constant 0 : index
    %57 = vector.load %arg56[%c0_31, %c0_32] : memref<96x128xf32, #tpu.memory_space<vmem>>, vector<8x128xf32>
    tpu.vector_store %arg56[%c0_31, %c0_32], %56 {strides = array<i32>} : memref<96x128xf32, #tpu.memory_space<vmem>>, vector<8x128xf32>,
    %58 = vector.extract_strided_slice %55 {offsets = [8, 0], sizes = [8, 128], strides = [1, 1]} : vector<24x128xf32> to vector<8x128xf32>
    %c32 = arith.constant 32 : index
    %c0_33 = arith.constant 0 : index
    %59 = vector.load %arg56[%c32, %c0_33] : memref<96x128xf32, #tpu.memory_space<vmem>>, vector<8x128xf32>
    tpu.vector_store %arg56[%c32, %c0_33], %58 {strides = array<i32>} : memref<96x128xf32, #tpu.memory_space<vmem>>, vector<8x128xf32>,
    %60 = vector.extract_strided_slice %55 {offsets = [16, 0], sizes = [8, 128], strides = [1, 1]} : vector<24x128xf32> to vector<8x128xf32>
    %c64 = arith.constant 64 : index
    %c0_34 = arith.constant 0 : index
    %61 = vector.load %arg56[%c64, %c0_34] : memref<96x128xf32, #tpu.memory_space<vmem>>, vector<8x128xf32>
    tpu.vector_store %arg56[%c64, %c0_34], %60 {strides = array<i32>} : memref<96x128xf32, #tpu.memory_space<vmem>>, vector<8x128xf32>,
    %c0_35 = arith.constant 0 : index
    %c0_36 = arith.constant 0 : index
    %62 = vector.load %arg55[%c0_35, %c0_36] : memref<192x128xf32, #tpu.memory_space<vmem>>, vector<24x128xf32>
    %c24_37 = arith.constant 24 : index
    %c0_38 = arith.constant 0 : index
    %63 = vector.load %arg55[%c24_37, %c0_38] : memref<192x128xf32, #tpu.memory_space<vmem>>, vector<24x128xf32>
    %64 = arith.maximumf %62, %63 : vector<24x128xf32>
    %c48_39 = arith.constant 48 : index
    %c0_40 = arith.constant 0 : index
    %65 = vector.load %arg55[%c48_39, %c0_40] : memref<192x128xf32, #tpu.memory_space<vmem>>, vector<24x128xf32>
    %66 = arith.maximumf %64, %65 : vector<24x128xf32>
    %c72_41 = arith.constant 72 : index
    %c0_42 = arith.constant 0 : index
    %67 = vector.load %arg55[%c72_41, %c0_42] : memref<192x128xf32, #tpu.memory_space<vmem>>, vector<24x128xf32>
    %68 = arith.maximumf %66, %67 : vector<24x128xf32>
    %c96_43 = arith.constant 96 : index
    %c0_44 = arith.constant 0 : index
    %69 = vector.load %arg55[%c96_43, %c0_44] : memref<192x128xf32, #tpu.memory_space<vmem>>, vector<24x128xf32>
    %70 = arith.maximumf %68, %69 : vector<24x128xf32>
    %c120 = arith.constant 120 : index
    %c0_45 = arith.constant 0 : index
    %71 = vector.load %arg55[%c120, %c0_45] : memref<192x128xf32, #tpu.memory_space<vmem>>, vector<24x128xf32>
    %72 = arith.maximumf %70, %71 : vector<24x128xf32>
    %73 = vector.broadcast %30 : vector<1x128xf32> to vector<24x128xf32>
    %74 = arith.addf %72, %73 : vector<24x128xf32>
    %cst_46 = arith.constant 0.000000e+00 : f32
    %75 = vector.broadcast %cst_46 : f32 to vector<24x128xf32>
    %76 = arith.cmpf oge, %74, %75 : vector<24x128xf32>
    %cst_47 = arith.constant 0.00999999977 : f32
    %77 = vector.broadcast %cst_47 : f32 to vector<24x128xf32>
    %78 = arith.mulf %77, %74 : vector<24x128xf32>
    %79 = arith.select %76, %74, %78 : vector<24x128xi1>, vector<24x128xf32>
    %80 = arith.truncf %79 : vector<24x128xf32> to vector<24x128xbf16>
    %cst_48 = arith.constant dense<0.000000e+00> : vector<24x128xf32>
    %81 = tpu.matmul %80, %31, %cst_48 {dimension_numbers = #tpu.dot_dimension_numbers<[1], [0], [0], [1], [0, 0, 1, 1], [], []>} : vector<24x128xbf16>, vector<128x128xbf16>, vector<24x128xf32> -> vector<24x128xf32>
    %82 = vector.broadcast %32 : vector<1x128xf32> to vector<24x128xf32>
    %83 = arith.addf %81, %82 : vector<24x128xf32>
    %cst_49 = arith.constant 0.000000e+00 : f32
    %84 = vector.broadcast %cst_49 : f32 to vector<24x128xf32>
    %85 = arith.cmpf oge, %83, %84 : vector<24x128xf32>
    %cst_50 = arith.constant 0.00999999977 : f32
    %86 = vector.broadcast %cst_50 : f32 to vector<24x128xf32>
    %87 = arith.mulf %86, %83 : vector<24x128xf32>
    %88 = arith.select %85, %83, %87 : vector<24x128xi1>, vector<24x128xf32>
    %89 = vector.extract_strided_slice %88 {offsets = [0, 0], sizes = [8, 128], strides = [1, 1]} : vector<24x128xf32> to vector<8x128xf32>
    %c8 = arith.constant 8 : index
    %c0_51 = arith.constant 0 : index
    %90 = vector.load %arg56[%c8, %c0_51] : memref<96x128xf32, #tpu.memory_space<vmem>>, vector<8x128xf32>
    tpu.vector_store %arg56[%c8, %c0_51], %89 {strides = array<i32>} : memref<96x128xf32, #tpu.memory_space<vmem>>, vector<8x128xf32>,
    %91 = vector.extract_strided_slice %88 {offsets = [8, 0], sizes = [8, 128], strides = [1, 1]} : vector<24x128xf32> to vector<8x128xf32>
    %c40 = arith.constant 40 : index
    %c0_52 = arith.constant 0 : index
    %92 = vector.load %arg56[%c40, %c0_52] : memref<96x128xf32, #tpu.memory_space<vmem>>, vector<8x128xf32>
    tpu.vector_store %arg56[%c40, %c0_52], %91 {strides = array<i32>} : memref<96x128xf32, #tpu.memory_space<vmem>>, vector<8x128xf32>,
    %93 = vector.extract_strided_slice %88 {offsets = [16, 0], sizes = [8, 128], strides = [1, 1]} : vector<24x128xf32> to vector<8x128xf32>
    %c72_53 = arith.constant 72 : index
    %c0_54 = arith.constant 0 : index
    %94 = vector.load %arg56[%c72_53, %c0_54] : memref<96x128xf32, #tpu.memory_space<vmem>>, vector<8x128xf32>
    tpu.vector_store %arg56[%c72_53, %c0_54], %93 {strides = array<i32>} : memref<96x128xf32, #tpu.memory_space<vmem>>, vector<8x128xf32>,
    %c24_55 = arith.constant 24 : index
    %c0_56 = arith.constant 0 : index
    %95 = vector.load %arg55[%c24_55, %c0_56] : memref<192x128xf32, #tpu.memory_space<vmem>>, vector<24x128xf32>
    %c48_57 = arith.constant 48 : index
    %c0_58 = arith.constant 0 : index
    %96 = vector.load %arg55[%c48_57, %c0_58] : memref<192x128xf32, #tpu.memory_space<vmem>>, vector<24x128xf32>
    %97 = arith.maximumf %95, %96 : vector<24x128xf32>
    %c72_59 = arith.constant 72 : index
    %c0_60 = arith.constant 0 : index
    %98 = vector.load %arg55[%c72_59, %c0_60] : memref<192x128xf32, #tpu.memory_space<vmem>>, vector<24x128xf32>
    %99 = arith.maximumf %97, %98 : vector<24x128xf32>
    %c96_61 = arith.constant 96 : index
    %c0_62 = arith.constant 0 : index
    %100 = vector.load %arg55[%c96_61, %c0_62] : memref<192x128xf32, #tpu.memory_space<vmem>>, vector<24x128xf32>
    %101 = arith.maximumf %99, %100 : vector<24x128xf32>
    %c120_63 = arith.constant 120 : index
    %c0_64 = arith.constant 0 : index
    %102 = vector.load %arg55[%c120_63, %c0_64] : memref<192x128xf32, #tpu.memory_space<vmem>>, vector<24x128xf32>
    %103 = arith.maximumf %101, %102 : vector<24x128xf32>
    %c144 = arith.constant 144 : index
    %c0_65 = arith.constant 0 : index
    %104 = vector.load %arg55[%c144, %c0_65] : memref<192x128xf32, #tpu.memory_space<vmem>>, vector<24x128xf32>
    %105 = arith.maximumf %103, %104 : vector<24x128xf32>
    %c168 = arith.constant 168 : index
    %c0_66 = arith.constant 0 : index
    %106 = vector.load %arg55[%c168, %c0_66] : memref<192x128xf32, #tpu.memory_space<vmem>>, vector<24x128xf32>
    %107 = arith.maximumf %105, %106 : vector<24x128xf32>
    %108 = vector.broadcast %30 : vector<1x128xf32> to vector<24x128xf32>
    %109 = arith.addf %107, %108 : vector<24x128xf32>
    %cst_67 = arith.constant 0.000000e+00 : f32
    %110 = vector.broadcast %cst_67 : f32 to vector<24x128xf32>
    %111 = arith.cmpf oge, %109, %110 : vector<24x128xf32>
    %cst_68 = arith.constant 0.00999999977 : f32
    %112 = vector.broadcast %cst_68 : f32 to vector<24x128xf32>
    %113 = arith.mulf %112, %109 : vector<24x128xf32>
    %114 = arith.select %111, %109, %113 : vector<24x128xi1>, vector<24x128xf32>
    %115 = arith.truncf %114 : vector<24x128xf32> to vector<24x128xbf16>
    %cst_69 = arith.constant dense<0.000000e+00> : vector<24x128xf32>
    %116 = tpu.matmul %115, %31, %cst_69 {dimension_numbers = #tpu.dot_dimension_numbers<[1], [0], [0], [1], [0, 0, 1, 1], [], []>} : vector<24x128xbf16>, vector<128x128xbf16>, vector<24x128xf32> -> vector<24x128xf32>
    %117 = vector.broadcast %32 : vector<1x128xf32> to vector<24x128xf32>
    %118 = arith.addf %116, %117 : vector<24x128xf32>
    %cst_70 = arith.constant 0.000000e+00 : f32
    %119 = vector.broadcast %cst_70 : f32 to vector<24x128xf32>
    %120 = arith.cmpf oge, %118, %119 : vector<24x128xf32>
    %cst_71 = arith.constant 0.00999999977 : f32
    %121 = vector.broadcast %cst_71 : f32 to vector<24x128xf32>
    %122 = arith.mulf %121, %118 : vector<24x128xf32>
    %123 = arith.select %120, %118, %122 : vector<24x128xi1>, vector<24x128xf32>
    %124 = vector.extract_strided_slice %123 {offsets = [0, 0], sizes = [8, 128], strides = [1, 1]} : vector<24x128xf32> to vector<8x128xf32>
    %c16 = arith.constant 16 : index
    %c0_72 = arith.constant 0 : index
    %125 = vector.load %arg56[%c16, %c0_72] : memref<96x128xf32, #tpu.memory_space<vmem>>, vector<8x128xf32>
    tpu.vector_store %arg56[%c16, %c0_72], %124 {strides = array<i32>} : memref<96x128xf32, #tpu.memory_space<vmem>>, vector<8x128xf32>,
    %126 = vector.extract_strided_slice %123 {offsets = [8, 0], sizes = [8, 128], strides = [1, 1]} : vector<24x128xf32> to vector<8x128xf32>
    %c48_73 = arith.constant 48 : index
    %c0_74 = arith.constant 0 : index
    %127 = vector.load %arg56[%c48_73, %c0_74] : memref<96x128xf32, #tpu.memory_space<vmem>>, vector<8x128xf32>
    tpu.vector_store %arg56[%c48_73, %c0_74], %126 {strides = array<i32>} : memref<96x128xf32, #tpu.memory_space<vmem>>, vector<8x128xf32>,
    %128 = vector.extract_strided_slice %123 {offsets = [16, 0], sizes = [8, 128], strides = [1, 1]} : vector<24x128xf32> to vector<8x128xf32>
    %c80 = arith.constant 80 : index
    %c0_75 = arith.constant 0 : index
    %129 = vector.load %arg56[%c80, %c0_75] : memref<96x128xf32, #tpu.memory_space<vmem>>, vector<8x128xf32>
    tpu.vector_store %arg56[%c80, %c0_75], %128 {strides = array<i32>} : memref<96x128xf32, #tpu.memory_space<vmem>>, vector<8x128xf32>,
    %c72_76 = arith.constant 72 : index
    %c0_77 = arith.constant 0 : index
    %130 = vector.load %arg55[%c72_76, %c0_77] : memref<192x128xf32, #tpu.memory_space<vmem>>, vector<24x128xf32>
    %c96_78 = arith.constant 96 : index
    %c0_79 = arith.constant 0 : index
    %131 = vector.load %arg55[%c96_78, %c0_79] : memref<192x128xf32, #tpu.memory_space<vmem>>, vector<24x128xf32>
    %132 = arith.maximumf %130, %131 : vector<24x128xf32>
    %c120_80 = arith.constant 120 : index
    %c0_81 = arith.constant 0 : index
    %133 = vector.load %arg55[%c120_80, %c0_81] : memref<192x128xf32, #tpu.memory_space<vmem>>, vector<24x128xf32>
    %134 = arith.maximumf %132, %133 : vector<24x128xf32>
    %c144_82 = arith.constant 144 : index
    %c0_83 = arith.constant 0 : index
    %135 = vector.load %arg55[%c144_82, %c0_83] : memref<192x128xf32, #tpu.memory_space<vmem>>, vector<24x128xf32>
    %136 = arith.maximumf %134, %135 : vector<24x128xf32>
    %c168_84 = arith.constant 168 : index
    %c0_85 = arith.constant 0 : index
    %137 = vector.load %arg55[%c168_84, %c0_85] : memref<192x128xf32, #tpu.memory_space<vmem>>, vector<24x128xf32>
    %138 = arith.maximumf %136, %137 : vector<24x128xf32>
    %139 = vector.broadcast %30 : vector<1x128xf32> to vector<24x128xf32>
    %140 = arith.addf %138, %139 : vector<24x128xf32>
    %cst_86 = arith.constant 0.000000e+00 : f32
    %141 = vector.broadcast %cst_86 : f32 to vector<24x128xf32>
    %142 = arith.cmpf oge, %140, %141 : vector<24x128xf32>
    %cst_87 = arith.constant 0.00999999977 : f32
    %143 = vector.broadcast %cst_87 : f32 to vector<24x128xf32>
    %144 = arith.mulf %143, %140 : vector<24x128xf32>
    %145 = arith.select %142, %140, %144 : vector<24x128xi1>, vector<24x128xf32>
    %146 = arith.truncf %145 : vector<24x128xf32> to vector<24x128xbf16>
    %cst_88 = arith.constant dense<0.000000e+00> : vector<24x128xf32>
    %147 = tpu.matmul %146, %31, %cst_88 {dimension_numbers = #tpu.dot_dimension_numbers<[1], [0], [0], [1], [0, 0, 1, 1], [], []>} : vector<24x128xbf16>, vector<128x128xbf16>, vector<24x128xf32> -> vector<24x128xf32>
    %148 = vector.broadcast %32 : vector<1x128xf32> to vector<24x128xf32>
    %149 = arith.addf %147, %148 : vector<24x128xf32>
    %cst_89 = arith.constant 0.000000e+00 : f32
    %150 = vector.broadcast %cst_89 : f32 to vector<24x128xf32>
    %151 = arith.cmpf oge, %149, %150 : vector<24x128xf32>
    %cst_90 = arith.constant 0.00999999977 : f32
    %152 = vector.broadcast %cst_90 : f32 to vector<24x128xf32>
    %153 = arith.mulf %152, %149 : vector<24x128xf32>
    %154 = arith.select %151, %149, %153 : vector<24x128xi1>, vector<24x128xf32>
    %155 = vector.extract_strided_slice %154 {offsets = [0, 0], sizes = [8, 128], strides = [1, 1]} : vector<24x128xf32> to vector<8x128xf32>
    %c24_91 = arith.constant 24 : index
    %c0_92 = arith.constant 0 : index
    %156 = vector.load %arg56[%c24_91, %c0_92] : memref<96x128xf32, #tpu.memory_space<vmem>>, vector<8x128xf32>
    tpu.vector_store %arg56[%c24_91, %c0_92], %155 {strides = array<i32>} : memref<96x128xf32, #tpu.memory_space<vmem>>, vector<8x128xf32>,
    %157 = vector.extract_strided_slice %154 {offsets = [8, 0], sizes = [8, 128], strides = [1, 1]} : vector<24x128xf32> to vector<8x128xf32>
    %c56 = arith.constant 56 : index
    %c0_93 = arith.constant 0 : index
    %158 = vector.load %arg56[%c56, %c0_93] : memref<96x128xf32, #tpu.memory_space<vmem>>, vector<8x128xf32>
    tpu.vector_store %arg56[%c56, %c0_93], %157 {strides = array<i32>} : memref<96x128xf32, #tpu.memory_space<vmem>>, vector<8x128xf32>,
    %159 = vector.extract_strided_slice %154 {offsets = [16, 0], sizes = [8, 128], strides = [1, 1]} : vector<24x128xf32> to vector<8x128xf32>
    %c88 = arith.constant 88 : index
    %c0_94 = arith.constant 0 : index
    %160 = vector.load %arg56[%c88, %c0_94] : memref<96x128xf32, #tpu.memory_space<vmem>>, vector<8x128xf32>
    tpu.vector_store %arg56[%c88, %c0_94], %159 {strides = array<i32>} : memref<96x128xf32, #tpu.memory_space<vmem>>, vector<8x128xf32>,
    %cst_95 = arith.constant 0.000000e+00 : f32
    %161 = vector.broadcast %cst_95 : f32 to vector<32x128xf32>
    %c0_96 = arith.constant 0 : index
    %c0_97 = arith.constant 0 : index
    %162 = vector.load %arg57[%c0_96, %c0_97] : memref<32x128xf32, #tpu.memory_space<vmem>>, vector<32x128xf32>
    tpu.vector_store %arg57[%c0_96, %c0_97], %161 {strides = array<i32>} : memref<32x128xf32, #tpu.memory_space<vmem>>, vector<32x128xf32>,
    %c0_98 = arith.constant 0 : index
    %c0_99 = arith.constant 0 : index
    %163 = vector.load %arg56[%c0_98, %c0_99] : memref<96x128xf32, #tpu.memory_space<vmem>>, vector<16x8xf32>
    %c16_100 = arith.constant 16 : index
    %c0_101 = arith.constant 0 : index
    %164 = vector.load %arg57[%c16_100, %c0_101] : memref<32x128xf32, #tpu.memory_space<vmem>>, vector<16x128xf32>
    %c0_102 = arith.constant 0 : index
    %c0_103 = arith.constant 0 : index
    %165 = vector.load %arg6[%c0_102, %c0_103] : memref<120x128xbf16, #tpu.memory_space<vmem>>, vector<8x128xbf16>
    %166 = arith.truncf %163 : vector<16x8xf32> to vector<16x8xbf16>
    %cst_104 = arith.constant dense<0.000000e+00> : vector<16x128xf32>
    %167 = tpu.matmul %166, %165, %cst_104 {dimension_numbers = #tpu.dot_dimension_numbers<[1], [0], [0], [1], [0, 0, 1, 1], [], []>} : vector<16x8xbf16>, vector<8x128xbf16>, vector<16x128xf32> -> vector<16x128xf32>
    %168 = arith.addf %164, %167 : vector<16x128xf32>
    %c16_105 = arith.constant 16 : index
    %c0_106 = arith.constant 0 : index
    %169 = vector.load %arg57[%c16_105, %c0_106] : memref<32x128xf32, #tpu.memory_space<vmem>>, vector<16x128xf32>
    tpu.vector_store %arg57[%c16_105, %c0_106], %168 {strides = array<i32>} : memref<32x128xf32, #tpu.memory_space<vmem>>, vector<16x128xf32>,
    %c32_107 = arith.constant 32 : index
    %c0_108 = arith.constant 0 : index
    %170 = vector.load %arg56[%c32_107, %c0_108] : memref<96x128xf32, #tpu.memory_space<vmem>>, vector<16x8xf32>
    %c16_109 = arith.constant 16 : index
    %c0_110 = arith.constant 0 : index
    %171 = vector.load %arg57[%c16_109, %c0_110] : memref<32x128xf32, #tpu.memory_space<vmem>>, vector<16x128xf32>
    %c8_111 = arith.constant 8 : index
    %c0_112 = arith.constant 0 : index
    %172 = vector.load %arg6[%c8_111, %c0_112] : memref<120x128xbf16, #tpu.memory_space<vmem>>, vector<8x128xbf16>
    %173 = arith.truncf %170 : vector<16x8xf32> to vector<16x8xbf16>
    %cst_113 = arith.constant dense<0.000000e+00> : vector<16x128xf32>
    %174 = tpu.matmul %173, %172, %cst_113 {dimension_numbers = #tpu.dot_dimension_numbers<[1], [0], [0], [1], [0, 0, 1, 1], [], []>} : vector<16x8xbf16>, vector<8x128xbf16>, vector<16x128xf32> -> vector<16x128xf32>
    %175 = arith.addf %171, %174 : vector<16x128xf32>
    %c16_114 = arith.constant 16 : index
    %c0_115 = arith.constant 0 : index
    %176 = vector.load %arg57[%c16_114, %c0_115] : memref<32x128xf32, #tpu.memory_space<vmem>>, vector<16x128xf32>
    tpu.vector_store %arg57[%c16_114, %c0_115], %175 {strides = array<i32>} : memref<32x128xf32, #tpu.memory_space<vmem>>, vector<16x128xf32>,
    %c64_116 = arith.constant 64 : index
    %c0_117 = arith.constant 0 : index
    %177 = vector.load %arg56[%c64_116, %c0_117] : memref<96x128xf32, #tpu.memory_space<vmem>>, vector<16x8xf32>
    %c16_118 = arith.constant 16 : index
    %c0_119 = arith.constant 0 : index
    %178 = vector.load %arg57[%c16_118, %c0_119] : memref<32x128xf32, #tpu.memory_space<vmem>>, vector<16x128xf32>
    %c16_120 = arith.constant 16 : index
    %c0_121 = arith.constant 0 : index
    %179 = vector.load %arg6[%c16_120, %c0_121] : memref<120x128xbf16, #tpu.memory_space<vmem>>, vector<8x128xbf16>
    %180 = arith.truncf %177 : vector<16x8xf32> to vector<16x8xbf16>
    %cst_122 = arith.constant dense<0.000000e+00> : vector<16x128xf32>
    %181 = tpu.matmul %180, %179, %cst_122 {dimension_numbers = #tpu.dot_dimension_numbers<[1], [0], [0], [1], [0, 0, 1, 1], [], []>} : vector<16x8xbf16>, vector<8x128xbf16>, vector<16x128xf32> -> vector<16x128xf32>
    %182 = arith.addf %178, %181 : vector<16x128xf32>
    %c16_123 = arith.constant 16 : index
    %c0_124 = arith.constant 0 : index
    %183 = vector.load %arg57[%c16_123, %c0_124] : memref<32x128xf32, #tpu.memory_space<vmem>>, vector<16x128xf32>
    tpu.vector_store %arg57[%c16_123, %c0_124], %182 {strides = array<i32>} : memref<32x128xf32, #tpu.memory_space<vmem>>, vector<16x128xf32>,
    %c0_125 = arith.constant 0 : index
    %c0_126 = arith.constant 0 : index
    %184 = vector.load %arg56[%c0_125, %c0_126] : memref<96x128xf32, #tpu.memory_space<vmem>>, vector<24x8xf32>
    %c8_127 = arith.constant 8 : index
    %c0_128 = arith.constant 0 : index
    %185 = vector.load %arg57[%c8_127, %c0_128] : memref<32x128xf32, #tpu.memory_space<vmem>>, vector<24x128xf32>
    %c24_129 = arith.constant 24 : index
    %c0_130 = arith.constant 0 : index
    %186 = vector.load %arg6[%c24_129, %c0_130] : memref<120x128xbf16, #tpu.memory_space<vmem>>, vector<8x128xbf16>
    %187 = arith.truncf %184 : vector<24x8xf32> to vector<24x8xbf16>
    %cst_131 = arith.constant dense<0.000000e+00> : vector<24x128xf32>
    %188 = tpu.matmul %187, %186, %cst_131 {dimension_numbers = #tpu.dot_dimension_numbers<[1], [0], [0], [1], [0, 0, 1, 1], [], []>} : vector<24x8xbf16>, vector<8x128xbf16>, vector<24x128xf32> -> vector<24x128xf32>
    %189 = arith.addf %185, %188 : vector<24x128xf32>
    %c8_132 = arith.constant 8 : index
    %c0_133 = arith.constant 0 : index
    %190 = vector.load %arg57[%c8_132, %c0_133] : memref<32x128xf32, #tpu.memory_space<vmem>>, vector<24x128xf32>
    tpu.vector_store %arg57[%c8_132, %c0_133], %189 {strides = array<i32>} : memref<32x128xf32, #tpu.memory_space<vmem>>, vector<24x128xf32>,
    %c32_134 = arith.constant 32 : index
    %c0_135 = arith.constant 0 : index
    %191 = vector.load %arg56[%c32_134, %c0_135] : memref<96x128xf32, #tpu.memory_space<vmem>>, vector<24x8xf32>
    %c8_136 = arith.constant 8 : index
    %c0_137 = arith.constant 0 : index
    %192 = vector.load %arg57[%c8_136, %c0_137] : memref<32x128xf32, #tpu.memory_space<vmem>>, vector<24x128xf32>
    %c32_138 = arith.constant 32 : index
    %c0_139 = arith.constant 0 : index
    %193 = vector.load %arg6[%c32_138, %c0_139] : memref<120x128xbf16, #tpu.memory_space<vmem>>, vector<8x128xbf16>
    %194 = arith.truncf %191 : vector<24x8xf32> to vector<24x8xbf16>
    %cst_140 = arith.constant dense<0.000000e+00> : vector<24x128xf32>
    %195 = tpu.matmul %194, %193, %cst_140 {dimension_numbers = #tpu.dot_dimension_numbers<[1], [0], [0], [1], [0, 0, 1, 1], [], []>} : vector<24x8xbf16>, vector<8x128xbf16>, vector<24x128xf32> -> vector<24x128xf32>
    %196 = arith.addf %192, %195 : vector<24x128xf32>
    %c8_141 = arith.constant 8 : index
    %c0_142 = arith.constant 0 : index
    %197 = vector.load %arg57[%c8_141, %c0_142] : memref<32x128xf32, #tpu.memory_space<vmem>>, vector<24x128xf32>
    tpu.vector_store %arg57[%c8_141, %c0_142], %196 {strides = array<i32>} : memref<32x128xf32, #tpu.memory_space<vmem>>, vector<24x128xf32>,
    %c64_143 = arith.constant 64 : index
    %c0_144 = arith.constant 0 : index
    %198 = vector.load %arg56[%c64_143, %c0_144] : memref<96x128xf32, #tpu.memory_space<vmem>>, vector<24x8xf32>
    %c8_145 = arith.constant 8 : index
    %c0_146 = arith.constant 0 : index
    %199 = vector.load %arg57[%c8_145, %c0_146] : memref<32x128xf32, #tpu.memory_space<vmem>>, vector<24x128xf32>
    %c40_147 = arith.constant 40 : index
    %c0_148 = arith.constant 0 : index
    %200 = vector.load %arg6[%c40_147, %c0_148] : memref<120x128xbf16, #tpu.memory_space<vmem>>, vector<8x128xbf16>
    %201 = arith.truncf %198 : vector<24x8xf32> to vector<24x8xbf16>
    %cst_149 = arith.constant dense<0.000000e+00> : vector<24x128xf32>
    %202 = tpu.matmul %201, %200, %cst_149 {dimension_numbers = #tpu.dot_dimension_numbers<[1], [0], [0], [1], [0, 0, 1, 1], [], []>} : vector<24x8xbf16>, vector<8x128xbf16>, vector<24x128xf32> -> vector<24x128xf32>
    %203 = arith.addf %199, %202 : vector<24x128xf32>
    %c8_150 = arith.constant 8 : index
    %c0_151 = arith.constant 0 : index
    %204 = vector.load %arg57[%c8_150, %c0_151] : memref<32x128xf32, #tpu.memory_space<vmem>>, vector<24x128xf32>
    tpu.vector_store %arg57[%c8_150, %c0_151], %203 {strides = array<i32>} : memref<32x128xf32, #tpu.memory_space<vmem>>, vector<24x128xf32>,
    %c0_152 = arith.constant 0 : index
    %c0_153 = arith.constant 0 : index
    %205 = vector.load %arg56[%c0_152, %c0_153] : memref<96x128xf32, #tpu.memory_space<vmem>>, vector<32x8xf32>
    %c0_154 = arith.constant 0 : index
    %c0_155 = arith.constant 0 : index
    %206 = vector.load %arg57[%c0_154, %c0_155] : memref<32x128xf32, #tpu.memory_space<vmem>>, vector<32x128xf32>
    %c48_156 = arith.constant 48 : index
    %c0_157 = arith.constant 0 : index
    %207 = vector.load %arg6[%c48_156, %c0_157] : memref<120x128xbf16, #tpu.memory_space<vmem>>, vector<8x128xbf16>
    %208 = arith.truncf %205 : vector<32x8xf32> to vector<32x8xbf16>
    %cst_158 = arith.constant dense<0.000000e+00> : vector<32x128xf32>
    %209 = tpu.matmul %208, %207, %cst_158 {dimension_numbers = #tpu.dot_dimension_numbers<[1], [0], [0], [1], [0, 0, 1, 1], [], []>} : vector<32x8xbf16>, vector<8x128xbf16>, vector<32x128xf32> -> vector<32x128xf32>
    %210 = arith.addf %206, %209 : vector<32x128xf32>
    %c0_159 = arith.constant 0 : index
    %c0_160 = arith.constant 0 : index
    %211 = vector.load %arg57[%c0_159, %c0_160] : memref<32x128xf32, #tpu.memory_space<vmem>>, vector<32x128xf32>
    tpu.vector_store %arg57[%c0_159, %c0_160], %210 {strides = array<i32>} : memref<32x128xf32, #tpu.memory_space<vmem>>, vector<32x128xf32>,
    %c32_161 = arith.constant 32 : index
    %c0_162 = arith.constant 0 : index
    %212 = vector.load %arg56[%c32_161, %c0_162] : memref<96x128xf32, #tpu.memory_space<vmem>>, vector<32x8xf32>
    %c0_163 = arith.constant 0 : index
    %c0_164 = arith.constant 0 : index
    %213 = vector.load %arg57[%c0_163, %c0_164] : memref<32x128xf32, #tpu.memory_space<vmem>>, vector<32x128xf32>
    %c56_165 = arith.constant 56 : index
    %c0_166 = arith.constant 0 : index
    %214 = vector.load %arg6[%c56_165, %c0_166] : memref<120x128xbf16, #tpu.memory_space<vmem>>, vector<8x128xbf16>
    %215 = arith.truncf %212 : vector<32x8xf32> to vector<32x8xbf16>
    %cst_167 = arith.constant dense<0.000000e+00> : vector<32x128xf32>
    %216 = tpu.matmul %215, %214, %cst_167 {dimension_numbers = #tpu.dot_dimension_numbers<[1], [0], [0], [1], [0, 0, 1, 1], [], []>} : vector<32x8xbf16>, vector<8x128xbf16>, vector<32x128xf32> -> vector<32x128xf32>
    %217 = arith.addf %213, %216 : vector<32x128xf32>
    %c0_168 = arith.constant 0 : index
    %c0_169 = arith.constant 0 : index
    %218 = vector.load %arg57[%c0_168, %c0_169] : memref<32x128xf32, #tpu.memory_space<vmem>>, vector<32x128xf32>
    tpu.vector_store %arg57[%c0_168, %c0_169], %217 {strides = array<i32>} : memref<32x128xf32, #tpu.memory_space<vmem>>, vector<32x128xf32>,
    %c64_170 = arith.constant 64 : index
    %c0_171 = arith.constant 0 : index
    %219 = vector.load %arg56[%c64_170, %c0_171] : memref<96x128xf32, #tpu.memory_space<vmem>>, vector<32x8xf32>
    %c0_172 = arith.constant 0 : index
    %c0_173 = arith.constant 0 : index
    %220 = vector.load %arg57[%c0_172, %c0_173] : memref<32x128xf32, #tpu.memory_space<vmem>>, vector<32x128xf32>
    %c64_174 = arith.constant 64 : index
    %c0_175 = arith.constant 0 : index
    %221 = vector.load %arg6[%c64_174, %c0_175] : memref<120x128xbf16, #tpu.memory_space<vmem>>, vector<8x128xbf16>
    %222 = arith.truncf %219 : vector<32x8xf32> to vector<32x8xbf16>
    %cst_176 = arith.constant dense<0.000000e+00> : vector<32x128xf32>
    %223 = tpu.matmul %222, %221, %cst_176 {dimension_numbers = #tpu.dot_dimension_numbers<[1], [0], [0], [1], [0, 0, 1, 1], [], []>} : vector<32x8xbf16>, vector<8x128xbf16>, vector<32x128xf32> -> vector<32x128xf32>
    %224 = arith.addf %220, %223 : vector<32x128xf32>
    %c0_177 = arith.constant 0 : index
    %c0_178 = arith.constant 0 : index
    %225 = vector.load %arg57[%c0_177, %c0_178] : memref<32x128xf32, #tpu.memory_space<vmem>>, vector<32x128xf32>
    tpu.vector_store %arg57[%c0_177, %c0_178], %224 {strides = array<i32>} : memref<32x128xf32, #tpu.memory_space<vmem>>, vector<32x128xf32>,
    %c8_179 = arith.constant 8 : index
    %c0_180 = arith.constant 0 : index
    %226 = vector.load %arg56[%c8_179, %c0_180] : memref<96x128xf32, #tpu.memory_space<vmem>>, vector<24x8xf32>
    %c0_181 = arith.constant 0 : index
    %c0_182 = arith.constant 0 : index
    %227 = vector.load %arg57[%c0_181, %c0_182] : memref<32x128xf32, #tpu.memory_space<vmem>>, vector<24x128xf32>
    %c72_183 = arith.constant 72 : index
    %c0_184 = arith.constant 0 : index
    %228 = vector.load %arg6[%c72_183, %c0_184] : memref<120x128xbf16, #tpu.memory_space<vmem>>, vector<8x128xbf16>
    %229 = arith.truncf %226 : vector<24x8xf32> to vector<24x8xbf16>
    %cst_185 = arith.constant dense<0.000000e+00> : vector<24x128xf32>
    %230 = tpu.matmul %229, %228, %cst_185 {dimension_numbers = #tpu.dot_dimension_numbers<[1], [0], [0], [1], [0, 0, 1, 1], [], []>} : vector<24x8xbf16>, vector<8x128xbf16>, vector<24x128xf32> -> vector<24x128xf32>
    %231 = arith.addf %227, %230 : vector<24x128xf32>
    %c0_186 = arith.constant 0 : index
    %c0_187 = arith.constant 0 : index
    %232 = vector.load %arg57[%c0_186, %c0_187] : memref<32x128xf32, #tpu.memory_space<vmem>>, vector<24x128xf32>
    tpu.vector_store %arg57[%c0_186, %c0_187], %231 {strides = array<i32>} : memref<32x128xf32, #tpu.memory_space<vmem>>, vector<24x128xf32>,
    %c40_188 = arith.constant 40 : index
    %c0_189 = arith.constant 0 : index
    %233 = vector.load %arg56[%c40_188, %c0_189] : memref<96x128xf32, #tpu.memory_space<vmem>>, vector<24x8xf32>
    %c0_190 = arith.constant 0 : index
    %c0_191 = arith.constant 0 : index
    %234 = vector.load %arg57[%c0_190, %c0_191] : memref<32x128xf32, #tpu.memory_space<vmem>>, vector<24x128xf32>
    %c80_192 = arith.constant 80 : index
    %c0_193 = arith.constant 0 : index
    %235 = vector.load %arg6[%c80_192, %c0_193] : memref<120x128xbf16, #tpu.memory_space<vmem>>, vector<8x128xbf16>
    %236 = arith.truncf %233 : vector<24x8xf32> to vector<24x8xbf16>
    %cst_194 = arith.constant dense<0.000000e+00> : vector<24x128xf32>
    %237 = tpu.matmul %236, %235, %cst_194 {dimension_numbers = #tpu.dot_dimension_numbers<[1], [0], [0], [1], [0, 0, 1, 1], [], []>} : vector<24x8xbf16>, vector<8x128xbf16>, vector<24x128xf32> -> vector<24x128xf32>
    %238 = arith.addf %234, %237 : vector<24x128xf32>
    %c0_195 = arith.constant 0 : index
    %c0_196 = arith.constant 0 : index
    %239 = vector.load %arg57[%c0_195, %c0_196] : memref<32x128xf32, #tpu.memory_space<vmem>>, vector<24x128xf32>
    tpu.vector_store %arg57[%c0_195, %c0_196], %238 {strides = array<i32>} : memref<32x128xf32, #tpu.memory_space<vmem>>, vector<24x128xf32>,
    %c72_197 = arith.constant 72 : index
    %c0_198 = arith.constant 0 : index
    %240 = vector.load %arg56[%c72_197, %c0_198] : memref<96x128xf32, #tpu.memory_space<vmem>>, vector<24x8xf32>
    %c0_199 = arith.constant 0 : index
    %c0_200 = arith.constant 0 : index
    %241 = vector.load %arg57[%c0_199, %c0_200] : memref<32x128xf32, #tpu.memory_space<vmem>>, vector<24x128xf32>
    %c88_201 = arith.constant 88 : index
    %c0_202 = arith.constant 0 : index
    %242 = vector.load %arg6[%c88_201, %c0_202] : memref<120x128xbf16, #tpu.memory_space<vmem>>, vector<8x128xbf16>
    %243 = arith.truncf %240 : vector<24x8xf32> to vector<24x8xbf16>
    %cst_203 = arith.constant dense<0.000000e+00> : vector<24x128xf32>
    %244 = tpu.matmul %243, %242, %cst_203 {dimension_numbers = #tpu.dot_dimension_numbers<[1], [0], [0], [1], [0, 0, 1, 1], [], []>} : vector<24x8xbf16>, vector<8x128xbf16>, vector<24x128xf32> -> vector<24x128xf32>
    %245 = arith.addf %241, %244 : vector<24x128xf32>
    %c0_204 = arith.constant 0 : index
    %c0_205 = arith.constant 0 : index
    %246 = vector.load %arg57[%c0_204, %c0_205] : memref<32x128xf32, #tpu.memory_space<vmem>>, vector<24x128xf32>
    tpu.vector_store %arg57[%c0_204, %c0_205], %245 {strides = array<i32>} : memref<32x128xf32, #tpu.memory_space<vmem>>, vector<24x128xf32>,
    %c16_206 = arith.constant 16 : index
    %c0_207 = arith.constant 0 : index
    %247 = vector.load %arg56[%c16_206, %c0_207] : memref<96x128xf32, #tpu.memory_space<vmem>>, vector<16x8xf32>
    %c0_208 = arith.constant 0 : index
    %c0_209 = arith.constant 0 : index
    %248 = vector.load %arg57[%c0_208, %c0_209] : memref<32x128xf32, #tpu.memory_space<vmem>>, vector<16x128xf32>
    %c96_210 = arith.constant 96 : index
    %c0_211 = arith.constant 0 : index
    %249 = vector.load %arg6[%c96_210, %c0_211] : memref<120x128xbf16, #tpu.memory_space<vmem>>, vector<8x128xbf16>
    %250 = arith.truncf %247 : vector<16x8xf32> to vector<16x8xbf16>
    %cst_212 = arith.constant dense<0.000000e+00> : vector<16x128xf32>
    %251 = tpu.matmul %250, %249, %cst_212 {dimension_numbers = #tpu.dot_dimension_numbers<[1], [0], [0], [1], [0, 0, 1, 1], [], []>} : vector<16x8xbf16>, vector<8x128xbf16>, vector<16x128xf32> -> vector<16x128xf32>
    %252 = arith.addf %248, %251 : vector<16x128xf32>
    %c0_213 = arith.constant 0 : index
    %c0_214 = arith.constant 0 : index
    %253 = vector.load %arg57[%c0_213, %c0_214] : memref<32x128xf32, #tpu.memory_space<vmem>>, vector<16x128xf32>
    tpu.vector_store %arg57[%c0_213, %c0_214], %252 {strides = array<i32>} : memref<32x128xf32, #tpu.memory_space<vmem>>, vector<16x128xf32>,
    %c48_215 = arith.constant 48 : index
    %c0_216 = arith.constant 0 : index
    %254 = vector.load %arg56[%c48_215, %c0_216] : memref<96x128xf32, #tpu.memory_space<vmem>>, vector<16x8xf32>
    %c0_217 = arith.constant 0 : index
    %c0_218 = arith.constant 0 : index
    %255 = vector.load %arg57[%c0_217, %c0_218] : memref<32x128xf32, #tpu.memory_space<vmem>>, vector<16x128xf32>
    %c104 = arith.constant 104 : index
    %c0_219 = arith.constant 0 : index
    %256 = vector.load %arg6[%c104, %c0_219] : memref<120x128xbf16, #tpu.memory_space<vmem>>, vector<8x128xbf16>
    %257 = arith.truncf %254 : vector<16x8xf32> to vector<16x8xbf16>
    %cst_220 = arith.constant dense<0.000000e+00> : vector<16x128xf32>
    %258 = tpu.matmul %257, %256, %cst_220 {dimension_numbers = #tpu.dot_dimension_numbers<[1], [0], [0], [1], [0, 0, 1, 1], [], []>} : vector<16x8xbf16>, vector<8x128xbf16>, vector<16x128xf32> -> vector<16x128xf32>
    %259 = arith.addf %255, %258 : vector<16x128xf32>
    %c0_221 = arith.constant 0 : index
    %c0_222 = arith.constant 0 : index
    %260 = vector.load %arg57[%c0_221, %c0_222] : memref<32x128xf32, #tpu.memory_space<vmem>>, vector<16x128xf32>
    tpu.vector_store %arg57[%c0_221, %c0_222], %259 {strides = array<i32>} : memref<32x128xf32, #tpu.memory_space<vmem>>, vector<16x128xf32>,
    %c80_223 = arith.constant 80 : index
    %c0_224 = arith.constant 0 : index
    %261 = vector.load %arg56[%c80_223, %c0_224] : memref<96x128xf32, #tpu.memory_space<vmem>>, vector<16x8xf32>
    %c0_225 = arith.constant 0 : index
    %c0_226 = arith.constant 0 : index
    %262 = vector.load %arg57[%c0_225, %c0_226] : memref<32x128xf32, #tpu.memory_space<vmem>>, vector<16x128xf32>
    %c112 = arith.constant 112 : index
    %c0_227 = arith.constant 0 : index
    %263 = vector.load %arg6[%c112, %c0_227] : memref<120x128xbf16, #tpu.memory_space<vmem>>, vector<8x128xbf16>
    %264 = arith.truncf %261 : vector<16x8xf32> to vector<16x8xbf16>
    %cst_228 = arith.constant dense<0.000000e+00> : vector<16x128xf32>
    %265 = tpu.matmul %264, %263, %cst_228 {dimension_numbers = #tpu.dot_dimension_numbers<[1], [0], [0], [1], [0, 0, 1, 1], [], []>} : vector<16x8xbf16>, vector<8x128xbf16>, vector<16x128xf32> -> vector<16x128xf32>
    %266 = arith.addf %262, %265 : vector<16x128xf32>
    %c0_229 = arith.constant 0 : index
    %c0_230 = arith.constant 0 : index
    %267 = vector.load %arg57[%c0_229, %c0_230] : memref<32x128xf32, #tpu.memory_space<vmem>>, vector<16x128xf32>
    tpu.vector_store %arg57[%c0_229, %c0_230], %266 {strides = array<i32>} : memref<32x128xf32, #tpu.memory_space<vmem>>, vector<16x128xf32>,
    %c0_231 = arith.constant 0 : index
    %c0_232 = arith.constant 0 : index
    %268 = vector.load %arg7[%c0_231, %c0_232] : memref<1x128xf32, #tpu.memory_space<vmem>>, vector<1x128xf32>
    %c0_233 = arith.constant 0 : index
    %c0_234 = arith.constant 0 : index
    %269 = vector.load %arg8[%c0_233, %c0_234] : memref<128x128xbf16, #tpu.memory_space<vmem>>, vector<128x128xbf16>
    %c0_235 = arith.constant 0 : index
    %c0_236 = arith.constant 0 : index
    %270 = vector.load %arg9[%c0_235, %c0_236] : memref<1x128xf32, #tpu.memory_space<vmem>>, vector<1x128xf32>
    %c0_237 = arith.constant 0 : index
    %c0_238 = arith.constant 0 : index
    %271 = vector.load %arg57[%c0_237, %c0_238] : memref<32x128xf32, #tpu.memory_space<vmem>>, vector<8x128xf32>
    %c8_239 = arith.constant 8 : index
    %c0_240 = arith.constant 0 : index
    %272 = vector.load %arg57[%c8_239, %c0_240] : memref<32x128xf32, #tpu.memory_space<vmem>>, vector<8x128xf32>
    %273 = arith.maximumf %271, %272 : vector<8x128xf32>
    %c16_241 = arith.constant 16 : index
    %c0_242 = arith.constant 0 : index
    %274 = vector.load %arg57[%c16_241, %c0_242] : memref<32x128xf32, #tpu.memory_space<vmem>>, vector<8x128xf32>
    %275 = arith.maximumf %273, %274 : vector<8x128xf32>
    %c24_243 = arith.constant 24 : index
    %c0_244 = arith.constant 0 : index
    %276 = vector.load %arg57[%c24_243, %c0_244] : memref<32x128xf32, #tpu.memory_space<vmem>>, vector<8x128xf32>
    %277 = arith.maximumf %275, %276 : vector<8x128xf32>
    %278 = vector.broadcast %268 : vector<1x128xf32> to vector<8x128xf32>
    %279 = arith.addf %277, %278 : vector<8x128xf32>
    %cst_245 = arith.constant 0.000000e+00 : f32
    %280 = vector.broadcast %cst_245 : f32 to vector<8x128xf32>
    %281 = arith.cmpf oge, %279, %280 : vector<8x128xf32>
    %cst_246 = arith.constant 0.00999999977 : f32
    %282 = vector.broadcast %cst_246 : f32 to vector<8x128xf32>
    %283 = arith.mulf %282, %279 : vector<8x128xf32>
    %284 = arith.select %281, %279, %283 : vector<8x128xi1>, vector<8x128xf32>
    %285 = arith.truncf %284 : vector<8x128xf32> to vector<8x128xbf16>
    %cst_247 = arith.constant dense<0.000000e+00> : vector<8x128xf32>
    %286 = tpu.matmul %285, %269, %cst_247 {dimension_numbers = #tpu.dot_dimension_numbers<[1], [0], [0], [1], [0, 0, 1, 1], [], []>} : vector<8x128xbf16>, vector<128x128xbf16>, vector<8x128xf32> -> vector<8x128xf32>
    %287 = vector.broadcast %270 : vector<1x128xf32> to vector<8x128xf32>
    %288 = arith.addf %286, %287 : vector<8x128xf32>
    %cst_248 = arith.constant 0.000000e+00 : f32
    %289 = vector.broadcast %cst_248 : f32 to vector<8x128xf32>
    %290 = arith.cmpf oge, %288, %289 : vector<8x128xf32>
    %cst_249 = arith.constant 0.00999999977 : f32
    %291 = vector.broadcast %cst_249 : f32 to vector<8x128xf32>
    %292 = arith.mulf %291, %288 : vector<8x128xf32>
    %293 = arith.select %290, %288, %292 : vector<8x128xi1>, vector<8x128xf32>
    %c0_250 = arith.constant 0 : index
    %c0_251 = arith.constant 0 : index
    %294 = vector.load %arg58[%c0_250, %c0_251] : memref<16x128xf32, #tpu.memory_space<vmem>>, vector<8x128xf32>
    tpu.vector_store %arg58[%c0_250, %c0_251], %293 {strides = array<i32>} : memref<16x128xf32, #tpu.memory_space<vmem>>, vector<8x128xf32>,
    %c0_252 = arith.constant 0 : index
    %c0_253 = arith.constant 0 : index
    %295 = vector.load %arg57[%c0_252, %c0_253] : memref<32x128xf32, #tpu.memory_space<vmem>>, vector<8x128xf32>
    %c8_254 = arith.constant 8 : index
    %c0_255 = arith.constant 0 : index
    %296 = vector.load %arg57[%c8_254, %c0_255] : memref<32x128xf32, #tpu.memory_space<vmem>>, vector<8x128xf32>
    %297 = arith.maximumf %295, %296 : vector<8x128xf32>
    %c16_256 = arith.constant 16 : index
    %c0_257 = arith.constant 0 : index
    %298 = vector.load %arg57[%c16_256, %c0_257] : memref<32x128xf32, #tpu.memory_space<vmem>>, vector<8x128xf32>
    %299 = arith.maximumf %297, %298 : vector<8x128xf32>
    %c24_258 = arith.constant 24 : index
    %c0_259 = arith.constant 0 : index
    %300 = vector.load %arg57[%c24_258, %c0_259] : memref<32x128xf32, #tpu.memory_space<vmem>>, vector<8x128xf32>
    %301 = arith.maximumf %299, %300 : vector<8x128xf32>
    %302 = vector.broadcast %268 : vector<1x128xf32> to vector<8x128xf32>
    %303 = arith.addf %301, %302 : vector<8x128xf32>
    %cst_260 = arith.constant 0.000000e+00 : f32
    %304 = vector.broadcast %cst_260 : f32 to vector<8x128xf32>
    %305 = arith.cmpf oge, %303, %304 : vector<8x128xf32>
    %cst_261 = arith.constant 0.00999999977 : f32
    %306 = vector.broadcast %cst_261 : f32 to vector<8x128xf32>
    %307 = arith.mulf %306, %303 : vector<8x128xf32>
    %308 = arith.select %305, %303, %307 : vector<8x128xi1>, vector<8x128xf32>
    %309 = arith.truncf %308 : vector<8x128xf32> to vector<8x128xbf16>
    %cst_262 = arith.constant dense<0.000000e+00> : vector<8x128xf32>
    %310 = tpu.matmul %309, %269, %cst_262 {dimension_numbers = #tpu.dot_dimension_numbers<[1], [0], [0], [1], [0, 0, 1, 1], [], []>} : vector<8x128xbf16>, vector<128x128xbf16>, vector<8x128xf32> -> vector<8x128xf32>
    %311 = vector.broadcast %270 : vector<1x128xf32> to vector<8x128xf32>
    %312 = arith.addf %310, %311 : vector<8x128xf32>
    %cst_263 = arith.constant 0.000000e+00 : f32
    %313 = vector.broadcast %cst_263 : f32 to vector<8x128xf32>
    %314 = arith.cmpf oge, %312, %313 : vector<8x128xf32>
    %cst_264 = arith.constant 0.00999999977 : f32
    %315 = vector.broadcast %cst_264 : f32 to vector<8x128xf32>
    %316 = arith.mulf %315, %312 : vector<8x128xf32>
    %317 = arith.select %314, %312, %316 : vector<8x128xi1>, vector<8x128xf32>
    %c8_265 = arith.constant 8 : index
    %c0_266 = arith.constant 0 : index
    %318 = vector.load %arg58[%c8_265, %c0_266] : memref<16x128xf32, #tpu.memory_space<vmem>>, vector<8x128xf32>
    tpu.vector_store %arg58[%c8_265, %c0_266], %317 {strides = array<i32>} : memref<16x128xf32, #tpu.memory_space<vmem>>, vector<8x128xf32>,
    %cst_267 = arith.constant 0.000000e+00 : f32
    %319 = vector.broadcast %cst_267 : f32 to vector<8x128xf32>
    %c0_268 = arith.constant 0 : index
    %c0_269 = arith.constant 0 : index
    %320 = vector.load %arg56[%c0_268, %c0_269] : memref<96x128xf32, #tpu.memory_space<vmem>>, vector<8x8xf32>
    %c0_270 = arith.constant 0 : index
    %c0_271 = arith.constant 0 : index
    %321 = vector.load %arg10[%c0_270, %c0_271] : memref<96x128xbf16, #tpu.memory_space<vmem>>, vector<8x128xbf16>
    %322 = arith.truncf %320 : vector<8x8xf32> to vector<8x8xbf16>
    %cst_272 = arith.constant dense<0.000000e+00> : vector<8x128xf32>
    %323 = tpu.matmul %322, %321, %cst_272 {dimension_numbers = #tpu.dot_dimension_numbers<[1], [0], [0], [1], [0, 0, 1, 1], [], []>} : vector<8x8xbf16>, vector<8x128xbf16>, vector<8x128xf32> -> vector<8x128xf32>
    %324 = arith.addf %319, %323 : vector<8x128xf32>
    %c8_273 = arith.constant 8 : index
    %c0_274 = arith.constant 0 : index
    %325 = vector.load %arg56[%c8_273, %c0_274] : memref<96x128xf32, #tpu.memory_space<vmem>>, vector<8x8xf32>
    %c8_275 = arith.constant 8 : index
    %c0_276 = arith.constant 0 : index
    %326 = vector.load %arg10[%c8_275, %c0_276] : memref<96x128xbf16, #tpu.memory_space<vmem>>, vector<8x128xbf16>
    %327 = arith.truncf %325 : vector<8x8xf32> to vector<8x8xbf16>
    %cst_277 = arith.constant dense<0.000000e+00> : vector<8x128xf32>
    %328 = tpu.matmul %327, %326, %cst_277 {dimension_numbers = #tpu.dot_dimension_numbers<[1], [0], [0], [1], [0, 0, 1, 1], [], []>} : vector<8x8xbf16>, vector<8x128xbf16>, vector<8x128xf32> -> vector<8x128xf32>
    %329 = arith.addf %324, %328 : vector<8x128xf32>
    %c16_278 = arith.constant 16 : index
    %c0_279 = arith.constant 0 : index
    %330 = vector.load %arg56[%c16_278, %c0_279] : memref<96x128xf32, #tpu.memory_space<vmem>>, vector<8x8xf32>
    %c16_280 = arith.constant 16 : index
    %c0_281 = arith.constant 0 : index
    %331 = vector.load %arg10[%c16_280, %c0_281] : memref<96x128xbf16, #tpu.memory_space<vmem>>, vector<8x128xbf16>
    %332 = arith.truncf %330 : vector<8x8xf32> to vector<8x8xbf16>
    %cst_282 = arith.constant dense<0.000000e+00> : vector<8x128xf32>
    %333 = tpu.matmul %332, %331, %cst_282 {dimension_numbers = #tpu.dot_dimension_numbers<[1], [0], [0], [1], [0, 0, 1, 1], [], []>} : vector<8x8xbf16>, vector<8x128xbf16>, vector<8x128xf32> -> vector<8x128xf32>
    %334 = arith.addf %329, %333 : vector<8x128xf32>
    %c24_283 = arith.constant 24 : index
    %c0_284 = arith.constant 0 : index
    %335 = vector.load %arg56[%c24_283, %c0_284] : memref<96x128xf32, #tpu.memory_space<vmem>>, vector<8x8xf32>
    %c24_285 = arith.constant 24 : index
    %c0_286 = arith.constant 0 : index
    %336 = vector.load %arg10[%c24_285, %c0_286] : memref<96x128xbf16, #tpu.memory_space<vmem>>, vector<8x128xbf16>
    %337 = arith.truncf %335 : vector<8x8xf32> to vector<8x8xbf16>
    %cst_287 = arith.constant dense<0.000000e+00> : vector<8x128xf32>
    %338 = tpu.matmul %337, %336, %cst_287 {dimension_numbers = #tpu.dot_dimension_numbers<[1], [0], [0], [1], [0, 0, 1, 1], [], []>} : vector<8x8xbf16>, vector<8x128xbf16>, vector<8x128xf32> -> vector<8x128xf32>
    %339 = arith.addf %334, %338 : vector<8x128xf32>
    %c32_288 = arith.constant 32 : index
    %c0_289 = arith.constant 0 : index
    %340 = vector.load %arg56[%c32_288, %c0_289] : memref<96x128xf32, #tpu.memory_space<vmem>>, vector<8x8xf32>
    %c32_290 = arith.constant 32 : index
    %c0_291 = arith.constant 0 : index
    %341 = vector.load %arg10[%c32_290, %c0_291] : memref<96x128xbf16, #tpu.memory_space<vmem>>, vector<8x128xbf16>
    %342 = arith.truncf %340 : vector<8x8xf32> to vector<8x8xbf16>
    %cst_292 = arith.constant dense<0.000000e+00> : vector<8x128xf32>
    %343 = tpu.matmul %342, %341, %cst_292 {dimension_numbers = #tpu.dot_dimension_numbers<[1], [0], [0], [1], [0, 0, 1, 1], [], []>} : vector<8x8xbf16>, vector<8x128xbf16>, vector<8x128xf32> -> vector<8x128xf32>
    %344 = arith.addf %339, %343 : vector<8x128xf32>
    %c40_293 = arith.constant 40 : index
    %c0_294 = arith.constant 0 : index
    %345 = vector.load %arg56[%c40_293, %c0_294] : memref<96x128xf32, #tpu.memory_space<vmem>>, vector<8x8xf32>
    %c40_295 = arith.constant 40 : index
    %c0_296 = arith.constant 0 : index
    %346 = vector.load %arg10[%c40_295, %c0_296] : memref<96x128xbf16, #tpu.memory_space<vmem>>, vector<8x128xbf16>
    %347 = arith.truncf %345 : vector<8x8xf32> to vector<8x8xbf16>
    %cst_297 = arith.constant dense<0.000000e+00> : vector<8x128xf32>
    %348 = tpu.matmul %347, %346, %cst_297 {dimension_numbers = #tpu.dot_dimension_numbers<[1], [0], [0], [1], [0, 0, 1, 1], [], []>} : vector<8x8xbf16>, vector<8x128xbf16>, vector<8x128xf32> -> vector<8x128xf32>
    %349 = arith.addf %344, %348 : vector<8x128xf32>
    %c48_298 = arith.constant 48 : index
    %c0_299 = arith.constant 0 : index
    %350 = vector.load %arg56[%c48_298, %c0_299] : memref<96x128xf32, #tpu.memory_space<vmem>>, vector<8x8xf32>
    %c48_300 = arith.constant 48 : index
    %c0_301 = arith.constant 0 : index
    %351 = vector.load %arg10[%c48_300, %c0_301] : memref<96x128xbf16, #tpu.memory_space<vmem>>, vector<8x128xbf16>
    %352 = arith.truncf %350 : vector<8x8xf32> to vector<8x8xbf16>
    %cst_302 = arith.constant dense<0.000000e+00> : vector<8x128xf32>
    %353 = tpu.matmul %352, %351, %cst_302 {dimension_numbers = #tpu.dot_dimension_numbers<[1], [0], [0], [1], [0, 0, 1, 1], [], []>} : vector<8x8xbf16>, vector<8x128xbf16>, vector<8x128xf32> -> vector<8x128xf32>
    %354 = arith.addf %349, %353 : vector<8x128xf32>
    %c56_303 = arith.constant 56 : index
    %c0_304 = arith.constant 0 : index
    %355 = vector.load %arg56[%c56_303, %c0_304] : memref<96x128xf32, #tpu.memory_space<vmem>>, vector<8x8xf32>
    %c56_305 = arith.constant 56 : index
    %c0_306 = arith.constant 0 : index
    %356 = vector.load %arg10[%c56_305, %c0_306] : memref<96x128xbf16, #tpu.memory_space<vmem>>, vector<8x128xbf16>
    %357 = arith.truncf %355 : vector<8x8xf32> to vector<8x8xbf16>
    %cst_307 = arith.constant dense<0.000000e+00> : vector<8x128xf32>
    %358 = tpu.matmul %357, %356, %cst_307 {dimension_numbers = #tpu.dot_dimension_numbers<[1], [0], [0], [1], [0, 0, 1, 1], [], []>} : vector<8x8xbf16>, vector<8x128xbf16>, vector<8x128xf32> -> vector<8x128xf32>
    %359 = arith.addf %354, %358 : vector<8x128xf32>
    %c64_308 = arith.constant 64 : index
    %c0_309 = arith.constant 0 : index
    %360 = vector.load %arg56[%c64_308, %c0_309] : memref<96x128xf32, #tpu.memory_space<vmem>>, vector<8x8xf32>
    %c64_310 = arith.constant 64 : index
    %c0_311 = arith.constant 0 : index
    %361 = vector.load %arg10[%c64_310, %c0_311] : memref<96x128xbf16, #tpu.memory_space<vmem>>, vector<8x128xbf16>
    %362 = arith.truncf %360 : vector<8x8xf32> to vector<8x8xbf16>
    %cst_312 = arith.constant dense<0.000000e+00> : vector<8x128xf32>
    %363 = tpu.matmul %362, %361, %cst_312 {dimension_numbers = #tpu.dot_dimension_numbers<[1], [0], [0], [1], [0, 0, 1, 1], [], []>} : vector<8x8xbf16>, vector<8x128xbf16>, vector<8x128xf32> -> vector<8x128xf32>
    %364 = arith.addf %359, %363 : vector<8x128xf32>
    %c72_313 = arith.constant 72 : index
    %c0_314 = arith.constant 0 : index
    %365 = vector.load %arg56[%c72_313, %c0_314] : memref<96x128xf32, #tpu.memory_space<vmem>>, vector<8x8xf32>
    %c72_315 = arith.constant 72 : index
    %c0_316 = arith.constant 0 : index
    %366 = vector.load %arg10[%c72_315, %c0_316] : memref<96x128xbf16, #tpu.memory_space<vmem>>, vector<8x128xbf16>
    %367 = arith.truncf %365 : vector<8x8xf32> to vector<8x8xbf16>
    %cst_317 = arith.constant dense<0.000000e+00> : vector<8x128xf32>
    %368 = tpu.matmul %367, %366, %cst_317 {dimension_numbers = #tpu.dot_dimension_numbers<[1], [0], [0], [1], [0, 0, 1, 1], [], []>} : vector<8x8xbf16>, vector<8x128xbf16>, vector<8x128xf32> -> vector<8x128xf32>
    %369 = arith.addf %364, %368 : vector<8x128xf32>
    %c80_318 = arith.constant 80 : index
    %c0_319 = arith.constant 0 : index
    %370 = vector.load %arg56[%c80_318, %c0_319] : memref<96x128xf32, #tpu.memory_space<vmem>>, vector<8x8xf32>
    %c80_320 = arith.constant 80 : index
    %c0_321 = arith.constant 0 : index
    %371 = vector.load %arg10[%c80_320, %c0_321] : memref<96x128xbf16, #tpu.memory_space<vmem>>, vector<8x128xbf16>
    %372 = arith.truncf %370 : vector<8x8xf32> to vector<8x8xbf16>
    %cst_322 = arith.constant dense<0.000000e+00> : vector<8x128xf32>
    %373 = tpu.matmul %372, %371, %cst_322 {dimension_numbers = #tpu.dot_dimension_numbers<[1], [0], [0], [1], [0, 0, 1, 1], [], []>} : vector<8x8xbf16>, vector<8x128xbf16>, vector<8x128xf32> -> vector<8x128xf32>
    %374 = arith.addf %369, %373 : vector<8x128xf32>
    %c88_323 = arith.constant 88 : index
    %c0_324 = arith.constant 0 : index
    %375 = vector.load %arg56[%c88_323, %c0_324] : memref<96x128xf32, #tpu.memory_space<vmem>>, vector<8x8xf32>
    %c88_325 = arith.constant 88 : index
    %c0_326 = arith.constant 0 : index
    %376 = vector.load %arg10[%c88_325, %c0_326] : memref<96x128xbf16, #tpu.memory_space<vmem>>, vector<8x128xbf16>
    %377 = arith.truncf %375 : vector<8x8xf32> to vector<8x8xbf16>
    %cst_327 = arith.constant dense<0.000000e+00> : vector<8x128xf32>
    %378 = tpu.matmul %377, %376, %cst_327 {dimension_numbers = #tpu.dot_dimension_numbers<[1], [0], [0], [1], [0, 0, 1, 1], [], []>} : vector<8x8xbf16>, vector<8x128xbf16>, vector<8x128xf32> -> vector<8x128xf32>
    %379 = arith.addf %374, %378 : vector<8x128xf32>
    %c0_328 = arith.constant 0 : index
    %c0_329 = arith.constant 0 : index
    %380 = vector.load %arg11[%c0_328, %c0_329] : memref<1x128xf32, #tpu.memory_space<vmem>>, vector<1x128xf32>
    %381 = vector.broadcast %380 : vector<1x128xf32> to vector<8x128xf32>
    %382 = arith.addf %379, %381 : vector<8x128xf32>
    %cst_330 = arith.constant 0.000000e+00 : f32
    %383 = vector.broadcast %cst_330 : f32 to vector<8x128xf32>
    %384 = arith.cmpf oge, %382, %383 : vector<8x128xf32>
    %cst_331 = arith.constant 0.00999999977 : f32
    %385 = vector.broadcast %cst_331 : f32 to vector<8x128xf32>
    %386 = arith.mulf %385, %382 : vector<8x128xf32>
    %387 = arith.select %384, %382, %386 : vector<8x128xi1>, vector<8x128xf32>
    %c0_332 = arith.constant 0 : index
    %c0_333 = arith.constant 0 : index
    %388 = vector.load %arg12[%c0_332, %c0_333] : memref<128x128xbf16, #tpu.memory_space<vmem>>, vector<128x128xbf16>
    %389 = arith.truncf %387 : vector<8x128xf32> to vector<8x128xbf16>
    %cst_334 = arith.constant dense<0.000000e+00> : vector<8x128xf32>
    %390 = tpu.matmul %389, %388, %cst_334 {dimension_numbers = #tpu.dot_dimension_numbers<[1], [0], [0], [1], [0, 0, 1, 1], [], []>} : vector<8x128xbf16>, vector<128x128xbf16>, vector<8x128xf32> -> vector<8x128xf32>
    %c0_335 = arith.constant 0 : index
    %c0_336 = arith.constant 0 : index
    %391 = vector.load %arg13[%c0_335, %c0_336] : memref<1x128xf32, #tpu.memory_space<vmem>>, vector<1x128xf32>
    %392 = vector.broadcast %391 : vector<1x128xf32> to vector<8x128xf32>
    %393 = arith.addf %390, %392 : vector<8x128xf32>
    %cst_337 = arith.constant 0.000000e+00 : f32
    %394 = vector.broadcast %cst_337 : f32 to vector<8x128xf32>
    %395 = arith.cmpf oge, %393, %394 : vector<8x128xf32>
    %cst_338 = arith.constant 0.00999999977 : f32
    %396 = vector.broadcast %cst_338 : f32 to vector<8x128xf32>
    %397 = arith.mulf %396, %393 : vector<8x128xf32>
    %398 = arith.select %395, %393, %397 : vector<8x128xi1>, vector<8x128xf32>
    %c0_339 = arith.constant 0 : index
    %c0_340 = arith.constant 0 : index
    %399 = vector.load %arg14[%c0_339, %c0_340] : memref<128x128xbf16, #tpu.memory_space<vmem>>, vector<128x128xbf16>
    %400 = arith.truncf %398 : vector<8x128xf32> to vector<8x128xbf16>
    %cst_341 = arith.constant dense<0.000000e+00> : vector<8x128xf32>
    %401 = tpu.matmul %400, %399, %cst_341 {dimension_numbers = #tpu.dot_dimension_numbers<[1], [0], [0], [1], [0, 0, 1, 1], [], []>} : vector<8x128xbf16>, vector<128x128xbf16>, vector<8x128xf32> -> vector<8x128xf32>
    %c0_342 = arith.constant 0 : index
    %c0_343 = arith.constant 0 : index
    %402 = vector.load %arg15[%c0_342, %c0_343] : memref<1x128xf32, #tpu.memory_space<vmem>>, vector<1x128xf32>
    %403 = vector.broadcast %402 : vector<1x128xf32> to vector<8x128xf32>
    %404 = arith.addf %401, %403 : vector<8x128xf32>
    %cst_344 = arith.constant 0.000000e+00 : f32
    %405 = vector.broadcast %cst_344 : f32 to vector<8x128xf32>
    %406 = arith.cmpf oge, %404, %405 : vector<8x128xf32>
    %cst_345 = arith.constant 0.00999999977 : f32
    %407 = vector.broadcast %cst_345 : f32 to vector<8x128xf32>
    %408 = arith.mulf %407, %404 : vector<8x128xf32>
    %409 = arith.select %406, %404, %408 : vector<8x128xi1>, vector<8x128xf32>
    %c0_346 = arith.constant 0 : index
    %c0_347 = arith.constant 0 : index
    %410 = vector.load %arg16[%c0_346, %c0_347] : memref<128x128xbf16, #tpu.memory_space<vmem>>, vector<128x128xbf16>
    %411 = arith.truncf %409 : vector<8x128xf32> to vector<8x128xbf16>
    %cst_348 = arith.constant dense<0.000000e+00> : vector<8x128xf32>
    %412 = tpu.matmul %411, %410, %cst_348 {dimension_numbers = #tpu.dot_dimension_numbers<[1], [0], [0], [1], [0, 0, 1, 1], [], []>} : vector<8x128xbf16>, vector<128x128xbf16>, vector<8x128xf32> -> vector<8x128xf32>
    %c0_349 = arith.constant 0 : index
    %c0_350 = arith.constant 0 : index
    %413 = vector.load %arg17[%c0_349, %c0_350] : memref<1x128xf32, #tpu.memory_space<vmem>>, vector<1x128xf32>
    %414 = vector.broadcast %413 : vector<1x128xf32> to vector<8x128xf32>
    %415 = arith.addf %412, %414 : vector<8x128xf32>
    %cst_351 = arith.constant 0.000000e+00 : f32
    %416 = vector.broadcast %cst_351 : f32 to vector<8x128xf32>
    %417 = arith.cmpf oge, %415, %416 : vector<8x128xf32>
    %cst_352 = arith.constant 0.00999999977 : f32
    %418 = vector.broadcast %cst_352 : f32 to vector<8x128xf32>
    %419 = arith.mulf %418, %415 : vector<8x128xf32>
    %420 = arith.select %417, %415, %419 : vector<8x128xi1>, vector<8x128xf32>
    %c0_353 = arith.constant 0 : index
    %c0_354 = arith.constant 0 : index
    %421 = vector.load %arg18[%c0_353, %c0_354] : memref<128x128xbf16, #tpu.memory_space<vmem>>, vector<128x128xbf16>
    %422 = arith.truncf %420 : vector<8x128xf32> to vector<8x128xbf16>
    %cst_355 = arith.constant dense<0.000000e+00> : vector<8x128xf32>
    %423 = tpu.matmul %422, %421, %cst_355 {dimension_numbers = #tpu.dot_dimension_numbers<[1], [0], [0], [1], [0, 0, 1, 1], [], []>} : vector<8x128xbf16>, vector<128x128xbf16>, vector<8x128xf32> -> vector<8x128xf32>
    %c0_356 = arith.constant 0 : index
    %c0_357 = arith.constant 0 : index
    %424 = vector.load %arg19[%c0_356, %c0_357] : memref<1x128xf32, #tpu.memory_space<vmem>>, vector<1x128xf32>
    %425 = vector.broadcast %424 : vector<1x128xf32> to vector<8x128xf32>
    %426 = arith.addf %423, %425 : vector<8x128xf32>
    %cst_358 = arith.constant 0.000000e+00 : f32
    %427 = vector.broadcast %cst_358 : f32 to vector<8x128xf32>
    %428 = arith.cmpf oge, %426, %427 : vector<8x128xf32>
    %cst_359 = arith.constant 0.00999999977 : f32
    %429 = vector.broadcast %cst_359 : f32 to vector<8x128xf32>
    %430 = arith.mulf %429, %426 : vector<8x128xf32>
    %431 = arith.select %428, %426, %430 : vector<8x128xi1>, vector<8x128xf32>
    %c0_360 = arith.constant 0 : index
    %c0_361 = arith.constant 0 : index
    %432 = vector.load %arg20[%c0_360, %c0_361] : memref<128x128xbf16, #tpu.memory_space<vmem>>, vector<128x128xbf16>
    %433 = arith.truncf %431 : vector<8x128xf32> to vector<8x128xbf16>
    %cst_362 = arith.constant dense<0.000000e+00> : vector<8x128xf32>
    %434 = tpu.matmul %433, %432, %cst_362 {dimension_numbers = #tpu.dot_dimension_numbers<[1], [0], [0], [1], [0, 0, 1, 1], [], []>} : vector<8x128xbf16>, vector<128x128xbf16>, vector<8x128xf32> -> vector<8x128xf32>
    %c0_363 = arith.constant 0 : index
    %c0_364 = arith.constant 0 : index
    %435 = vector.load %arg21[%c0_363, %c0_364] : memref<1x128xf32, #tpu.memory_space<vmem>>, vector<1x128xf32>
    %436 = vector.broadcast %435 : vector<1x128xf32> to vector<8x128xf32>
    %437 = arith.addf %434, %436 : vector<8x128xf32>
    %cst_365 = arith.constant 0.000000e+00 : f32
    %438 = vector.broadcast %cst_365 : f32 to vector<8x128xf32>
    %439 = arith.cmpf oge, %437, %438 : vector<8x128xf32>
    %cst_366 = arith.constant 0.00999999977 : f32
    %440 = vector.broadcast %cst_366 : f32 to vector<8x128xf32>
    %441 = arith.mulf %440, %437 : vector<8x128xf32>
    %442 = arith.select %439, %437, %441 : vector<8x128xi1>, vector<8x128xf32>
    %c0_367 = arith.constant 0 : index
    %c0_368 = arith.constant 0 : index
    %443 = vector.load %arg22[%c0_367, %c0_368] : memref<128x128xbf16, #tpu.memory_space<vmem>>, vector<128x128xbf16>
    %444 = arith.truncf %442 : vector<8x128xf32> to vector<8x128xbf16>
    %cst_369 = arith.constant dense<0.000000e+00> : vector<8x128xf32>
    %445 = tpu.matmul %444, %443, %cst_369 {dimension_numbers = #tpu.dot_dimension_numbers<[1], [0], [0], [1], [0, 0, 1, 1], [], []>} : vector<8x128xbf16>, vector<128x128xbf16>, vector<8x128xf32> -> vector<8x128xf32>
    %c0_370 = arith.constant 0 : index
    %c0_371 = arith.constant 0 : index
    %446 = vector.load %arg23[%c0_370, %c0_371] : memref<1x128xf32, #tpu.memory_space<vmem>>, vector<1x128xf32>
    %447 = vector.broadcast %446 : vector<1x128xf32> to vector<8x128xf32>
    %448 = arith.addf %445, %447 : vector<8x128xf32>
    %cst_372 = arith.constant 0.000000e+00 : f32
    %449 = vector.broadcast %cst_372 : f32 to vector<8x128xf32>
    %c0_373 = arith.constant 0 : index
    %c0_374 = arith.constant 0 : index
    %450 = vector.load %arg58[%c0_373, %c0_374] : memref<16x128xf32, #tpu.memory_space<vmem>>, vector<8x16xf32>
    %c0_375 = arith.constant 0 : index
    %c0_376 = arith.constant 0 : index
    %451 = vector.load %arg24[%c0_375, %c0_376] : memref<32x128xbf16, #tpu.memory_space<vmem>>, vector<16x128xbf16>
    %452 = arith.truncf %450 : vector<8x16xf32> to vector<8x16xbf16>
    %cst_377 = arith.constant dense<0.000000e+00> : vector<8x128xf32>
    %453 = tpu.matmul %452, %451, %cst_377 {dimension_numbers = #tpu.dot_dimension_numbers<[1], [0], [0], [1], [0, 0, 1, 1], [], []>} : vector<8x16xbf16>, vector<16x128xbf16>, vector<8x128xf32> -> vector<8x128xf32>
    %454 = arith.addf %449, %453 : vector<8x128xf32>
    %c8_378 = arith.constant 8 : index
    %c0_379 = arith.constant 0 : index
    %455 = vector.load %arg58[%c8_378, %c0_379] : memref<16x128xf32, #tpu.memory_space<vmem>>, vector<8x16xf32>
    %c16_380 = arith.constant 16 : index
    %c0_381 = arith.constant 0 : index
    %456 = vector.load %arg24[%c16_380, %c0_381] : memref<32x128xbf16, #tpu.memory_space<vmem>>, vector<16x128xbf16>
    %457 = arith.truncf %455 : vector<8x16xf32> to vector<8x16xbf16>
    %cst_382 = arith.constant dense<0.000000e+00> : vector<8x128xf32>
    %458 = tpu.matmul %457, %456, %cst_382 {dimension_numbers = #tpu.dot_dimension_numbers<[1], [0], [0], [1], [0, 0, 1, 1], [], []>} : vector<8x16xbf16>, vector<16x128xbf16>, vector<8x128xf32> -> vector<8x128xf32>
    %459 = arith.addf %454, %458 : vector<8x128xf32>
    %c0_383 = arith.constant 0 : index
    %c0_384 = arith.constant 0 : index
    %460 = vector.load %arg25[%c0_383, %c0_384] : memref<1x128xf32, #tpu.memory_space<vmem>>, vector<1x128xf32>
    %461 = vector.broadcast %460 : vector<1x128xf32> to vector<8x128xf32>
    %462 = arith.addf %459, %461 : vector<8x128xf32>
    %cst_385 = arith.constant 0.000000e+00 : f32
    %463 = vector.broadcast %cst_385 : f32 to vector<8x128xf32>
    %464 = arith.cmpf oge, %462, %463 : vector<8x128xf32>
    %cst_386 = arith.constant 0.00999999977 : f32
    %465 = vector.broadcast %cst_386 : f32 to vector<8x128xf32>
    %466 = arith.mulf %465, %462 : vector<8x128xf32>
    %467 = arith.select %464, %462, %466 : vector<8x128xi1>, vector<8x128xf32>
    %c0_387 = arith.constant 0 : index
    %c0_388 = arith.constant 0 : index
    %468 = vector.load %arg26[%c0_387, %c0_388] : memref<128x128xbf16, #tpu.memory_space<vmem>>, vector<128x128xbf16>
    %469 = arith.truncf %467 : vector<8x128xf32> to vector<8x128xbf16>
    %cst_389 = arith.constant dense<0.000000e+00> : vector<8x128xf32>
    %470 = tpu.matmul %469, %468, %cst_389 {dimension_numbers = #tpu.dot_dimension_numbers<[1], [0], [0], [1], [0, 0, 1, 1], [], []>} : vector<8x128xbf16>, vector<128x128xbf16>, vector<8x128xf32> -> vector<8x128xf32>
    %c0_390 = arith.constant 0 : index
    %c0_391 = arith.constant 0 : index
    %471 = vector.load %arg27[%c0_390, %c0_391] : memref<1x128xf32, #tpu.memory_space<vmem>>, vector<1x128xf32>
    %472 = vector.broadcast %471 : vector<1x128xf32> to vector<8x128xf32>
    %473 = arith.addf %470, %472 : vector<8x128xf32>
    %cst_392 = arith.constant 0.000000e+00 : f32
    %474 = vector.broadcast %cst_392 : f32 to vector<8x128xf32>
    %475 = arith.cmpf oge, %473, %474 : vector<8x128xf32>
    %cst_393 = arith.constant 0.00999999977 : f32
    %476 = vector.broadcast %cst_393 : f32 to vector<8x128xf32>
    %477 = arith.mulf %476, %473 : vector<8x128xf32>
    %478 = arith.select %475, %473, %477 : vector<8x128xi1>, vector<8x128xf32>
    %c0_394 = arith.constant 0 : index
    %c0_395 = arith.constant 0 : index
    %479 = vector.load %arg28[%c0_394, %c0_395] : memref<128x128xbf16, #tpu.memory_space<vmem>>, vector<128x128xbf16>
    %480 = arith.truncf %478 : vector<8x128xf32> to vector<8x128xbf16>
    %cst_396 = arith.constant dense<0.000000e+00> : vector<8x128xf32>
    %481 = tpu.matmul %480, %479, %cst_396 {dimension_numbers = #tpu.dot_dimension_numbers<[1], [0], [0], [1], [0, 0, 1, 1], [], []>} : vector<8x128xbf16>, vector<128x128xbf16>, vector<8x128xf32> -> vector<8x128xf32>
    %c0_397 = arith.constant 0 : index
    %c0_398 = arith.constant 0 : index
    %482 = vector.load %arg29[%c0_397, %c0_398] : memref<1x128xf32, #tpu.memory_space<vmem>>, vector<1x128xf32>
    %483 = vector.broadcast %482 : vector<1x128xf32> to vector<8x128xf32>
    %484 = arith.addf %481, %483 : vector<8x128xf32>
    %cst_399 = arith.constant 0.000000e+00 : f32
    %485 = vector.broadcast %cst_399 : f32 to vector<8x128xf32>
    %486 = arith.cmpf oge, %484, %485 : vector<8x128xf32>
    %cst_400 = arith.constant 0.00999999977 : f32
    %487 = vector.broadcast %cst_400 : f32 to vector<8x128xf32>
    %488 = arith.mulf %487, %484 : vector<8x128xf32>
    %489 = arith.select %486, %484, %488 : vector<8x128xi1>, vector<8x128xf32>
    %c0_401 = arith.constant 0 : index
    %c0_402 = arith.constant 0 : index
    %490 = vector.load %arg30[%c0_401, %c0_402] : memref<128x128xbf16, #tpu.memory_space<vmem>>, vector<128x128xbf16>
    %491 = arith.truncf %489 : vector<8x128xf32> to vector<8x128xbf16>
    %cst_403 = arith.constant dense<0.000000e+00> : vector<8x128xf32>
    %492 = tpu.matmul %491, %490, %cst_403 {dimension_numbers = #tpu.dot_dimension_numbers<[1], [0], [0], [1], [0, 0, 1, 1], [], []>} : vector<8x128xbf16>, vector<128x128xbf16>, vector<8x128xf32> -> vector<8x128xf32>
    %c0_404 = arith.constant 0 : index
    %c0_405 = arith.constant 0 : index
    %493 = vector.load %arg31[%c0_404, %c0_405] : memref<1x128xf32, #tpu.memory_space<vmem>>, vector<1x128xf32>
    %494 = vector.broadcast %493 : vector<1x128xf32> to vector<8x128xf32>
    %495 = arith.addf %492, %494 : vector<8x128xf32>
    %cst_406 = arith.constant 0.000000e+00 : f32
    %496 = vector.broadcast %cst_406 : f32 to vector<8x128xf32>
    %497 = arith.cmpf oge, %495, %496 : vector<8x128xf32>
    %cst_407 = arith.constant 0.00999999977 : f32
    %498 = vector.broadcast %cst_407 : f32 to vector<8x128xf32>
    %499 = arith.mulf %498, %495 : vector<8x128xf32>
    %500 = arith.select %497, %495, %499 : vector<8x128xi1>, vector<8x128xf32>
    %c0_408 = arith.constant 0 : index
    %c0_409 = arith.constant 0 : index
    %501 = vector.load %arg32[%c0_408, %c0_409] : memref<128x128xbf16, #tpu.memory_space<vmem>>, vector<128x128xbf16>
    %502 = arith.truncf %500 : vector<8x128xf32> to vector<8x128xbf16>
    %cst_410 = arith.constant dense<0.000000e+00> : vector<8x128xf32>
    %503 = tpu.matmul %502, %501, %cst_410 {dimension_numbers = #tpu.dot_dimension_numbers<[1], [0], [0], [1], [0, 0, 1, 1], [], []>} : vector<8x128xbf16>, vector<128x128xbf16>, vector<8x128xf32> -> vector<8x128xf32>
    %c0_411 = arith.constant 0 : index
    %c0_412 = arith.constant 0 : index
    %504 = vector.load %arg33[%c0_411, %c0_412] : memref<1x128xf32, #tpu.memory_space<vmem>>, vector<1x128xf32>
    %505 = vector.broadcast %504 : vector<1x128xf32> to vector<8x128xf32>
    %506 = arith.addf %503, %505 : vector<8x128xf32>
    %cst_413 = arith.constant 0.000000e+00 : f32
    %507 = vector.broadcast %cst_413 : f32 to vector<8x128xf32>
    %508 = arith.cmpf oge, %506, %507 : vector<8x128xf32>
    %cst_414 = arith.constant 0.00999999977 : f32
    %509 = vector.broadcast %cst_414 : f32 to vector<8x128xf32>
    %510 = arith.mulf %509, %506 : vector<8x128xf32>
    %511 = arith.select %508, %506, %510 : vector<8x128xi1>, vector<8x128xf32>
    %c0_415 = arith.constant 0 : index
    %c0_416 = arith.constant 0 : index
    %512 = vector.load %arg34[%c0_415, %c0_416] : memref<128x128xbf16, #tpu.memory_space<vmem>>, vector<128x128xbf16>
    %513 = arith.truncf %511 : vector<8x128xf32> to vector<8x128xbf16>
    %cst_417 = arith.constant dense<0.000000e+00> : vector<8x128xf32>
    %514 = tpu.matmul %513, %512, %cst_417 {dimension_numbers = #tpu.dot_dimension_numbers<[1], [0], [0], [1], [0, 0, 1, 1], [], []>} : vector<8x128xbf16>, vector<128x128xbf16>, vector<8x128xf32> -> vector<8x128xf32>
    %c0_418 = arith.constant 0 : index
    %c0_419 = arith.constant 0 : index
    %515 = vector.load %arg35[%c0_418, %c0_419] : memref<1x128xf32, #tpu.memory_space<vmem>>, vector<1x128xf32>
    %516 = vector.broadcast %515 : vector<1x128xf32> to vector<8x128xf32>
    %517 = arith.addf %514, %516 : vector<8x128xf32>
    %cst_420 = arith.constant 0.000000e+00 : f32
    %518 = vector.broadcast %cst_420 : f32 to vector<8x128xf32>
    %519 = arith.cmpf oge, %517, %518 : vector<8x128xf32>
    %cst_421 = arith.constant 0.00999999977 : f32
    %520 = vector.broadcast %cst_421 : f32 to vector<8x128xf32>
    %521 = arith.mulf %520, %517 : vector<8x128xf32>
    %522 = arith.select %519, %517, %521 : vector<8x128xi1>, vector<8x128xf32>
    %c0_422 = arith.constant 0 : index
    %c0_423 = arith.constant 0 : index
    %523 = vector.load %arg36[%c0_422, %c0_423] : memref<128x128xbf16, #tpu.memory_space<vmem>>, vector<128x128xbf16>
    %524 = arith.truncf %522 : vector<8x128xf32> to vector<8x128xbf16>
    %cst_424 = arith.constant dense<0.000000e+00> : vector<8x128xf32>
    %525 = tpu.matmul %524, %523, %cst_424 {dimension_numbers = #tpu.dot_dimension_numbers<[1], [0], [0], [1], [0, 0, 1, 1], [], []>} : vector<8x128xbf16>, vector<128x128xbf16>, vector<8x128xf32> -> vector<8x128xf32>
    %c0_425 = arith.constant 0 : index
    %c0_426 = arith.constant 0 : index
    %526 = vector.load %arg37[%c0_425, %c0_426] : memref<1x128xf32, #tpu.memory_space<vmem>>, vector<1x128xf32>
    %527 = vector.broadcast %526 : vector<1x128xf32> to vector<8x128xf32>
    %528 = arith.addf %525, %527 : vector<8x128xf32>
    %c0_427 = arith.constant 0 : index
    %c0_428 = arith.constant 0 : index
    %529 = vector.load %arg38[%c0_427, %c0_428] : memref<256x128xbf16, #tpu.memory_space<vmem>>, vector<128x128xbf16>
    %530 = arith.truncf %448 : vector<8x128xf32> to vector<8x128xbf16>
    %cst_429 = arith.constant dense<0.000000e+00> : vector<8x128xf32>
    %531 = tpu.matmul %530, %529, %cst_429 {dimension_numbers = #tpu.dot_dimension_numbers<[1], [0], [0], [1], [0, 0, 1, 1], [], []>} : vector<8x128xbf16>, vector<128x128xbf16>, vector<8x128xf32> -> vector<8x128xf32>
    %c128 = arith.constant 128 : index
    %c0_430 = arith.constant 0 : index
    %532 = vector.load %arg38[%c128, %c0_430] : memref<256x128xbf16, #tpu.memory_space<vmem>>, vector<128x128xbf16>
    %533 = arith.truncf %528 : vector<8x128xf32> to vector<8x128xbf16>
    %cst_431 = arith.constant dense<0.000000e+00> : vector<8x128xf32>
    %534 = tpu.matmul %533, %532, %cst_431 {dimension_numbers = #tpu.dot_dimension_numbers<[1], [0], [0], [1], [0, 0, 1, 1], [], []>} : vector<8x128xbf16>, vector<128x128xbf16>, vector<8x128xf32> -> vector<8x128xf32>
    %535 = arith.addf %531, %534 : vector<8x128xf32>
    %c0_432 = arith.constant 0 : index
    %c0_433 = arith.constant 0 : index
    %536 = vector.load %arg39[%c0_432, %c0_433] : memref<1x128xf32, #tpu.memory_space<vmem>>, vector<1x128xf32>
    %537 = vector.broadcast %536 : vector<1x128xf32> to vector<8x128xf32>
    %538 = arith.addf %535, %537 : vector<8x128xf32>
    %cst_434 = arith.constant 0.000000e+00 : f32
    %539 = vector.broadcast %cst_434 : f32 to vector<8x128xf32>
    %540 = arith.cmpf oge, %538, %539 : vector<8x128xf32>
    %cst_435 = arith.constant 0.00999999977 : f32
    %541 = vector.broadcast %cst_435 : f32 to vector<8x128xf32>
    %542 = arith.mulf %541, %538 : vector<8x128xf32>
    %543 = arith.select %540, %538, %542 : vector<8x128xi1>, vector<8x128xf32>
    %c0_436 = arith.constant 0 : index
    %c0_437 = arith.constant 0 : index
    %544 = vector.load %arg40[%c0_436, %c0_437] : memref<128x128xbf16, #tpu.memory_space<vmem>>, vector<128x128xbf16>
    %545 = arith.truncf %543 : vector<8x128xf32> to vector<8x128xbf16>
    %cst_438 = arith.constant dense<0.000000e+00> : vector<8x128xf32>
    %546 = tpu.matmul %545, %544, %cst_438 {dimension_numbers = #tpu.dot_dimension_numbers<[1], [0], [0], [1], [0, 0, 1, 1], [], []>} : vector<8x128xbf16>, vector<128x128xbf16>, vector<8x128xf32> -> vector<8x128xf32>
    %c0_439 = arith.constant 0 : index
    %c0_440 = arith.constant 0 : index
    %547 = vector.load %arg41[%c0_439, %c0_440] : memref<1x128xf32, #tpu.memory_space<vmem>>, vector<1x128xf32>
    %548 = vector.broadcast %547 : vector<1x128xf32> to vector<8x128xf32>
    %549 = arith.addf %546, %548 : vector<8x128xf32>
    %cst_441 = arith.constant 0.000000e+00 : f32
    %550 = vector.broadcast %cst_441 : f32 to vector<8x128xf32>
    %551 = arith.cmpf oge, %549, %550 : vector<8x128xf32>
    %cst_442 = arith.constant 0.00999999977 : f32
    %552 = vector.broadcast %cst_442 : f32 to vector<8x128xf32>
    %553 = arith.mulf %552, %549 : vector<8x128xf32>
    %554 = arith.select %551, %549, %553 : vector<8x128xi1>, vector<8x128xf32>
    %c0_443 = arith.constant 0 : index
    %c0_444 = arith.constant 0 : index
    %555 = vector.load %arg42[%c0_443, %c0_444] : memref<128x128xbf16, #tpu.memory_space<vmem>>, vector<128x128xbf16>
    %556 = arith.truncf %554 : vector<8x128xf32> to vector<8x128xbf16>
    %cst_445 = arith.constant dense<0.000000e+00> : vector<8x128xf32>
    %557 = tpu.matmul %556, %555, %cst_445 {dimension_numbers = #tpu.dot_dimension_numbers<[1], [0], [0], [1], [0, 0, 1, 1], [], []>} : vector<8x128xbf16>, vector<128x128xbf16>, vector<8x128xf32> -> vector<8x128xf32>
    %c0_446 = arith.constant 0 : index
    %c0_447 = arith.constant 0 : index
    %558 = vector.load %arg43[%c0_446, %c0_447] : memref<1x128xf32, #tpu.memory_space<vmem>>, vector<1x128xf32>
    %559 = vector.broadcast %558 : vector<1x128xf32> to vector<8x128xf32>
    %560 = arith.addf %557, %559 : vector<8x128xf32>
    %cst_448 = arith.constant 0.000000e+00 : f32
    %561 = vector.broadcast %cst_448 : f32 to vector<8x128xf32>
    %562 = arith.cmpf oge, %560, %561 : vector<8x128xf32>
    %cst_449 = arith.constant 0.00999999977 : f32
    %563 = vector.broadcast %cst_449 : f32 to vector<8x128xf32>
    %564 = arith.mulf %563, %560 : vector<8x128xf32>
    %565 = arith.select %562, %560, %564 : vector<8x128xi1>, vector<8x128xf32>
    %c0_450 = arith.constant 0 : index
    %c0_451 = arith.constant 0 : index
    %566 = vector.load %arg44[%c0_450, %c0_451] : memref<128x128xbf16, #tpu.memory_space<vmem>>, vector<128x128xbf16>
    %567 = arith.truncf %565 : vector<8x128xf32> to vector<8x128xbf16>
    %cst_452 = arith.constant dense<0.000000e+00> : vector<8x128xf32>
    %568 = tpu.matmul %567, %566, %cst_452 {dimension_numbers = #tpu.dot_dimension_numbers<[1], [0], [0], [1], [0, 0, 1, 1], [], []>} : vector<8x128xbf16>, vector<128x128xbf16>, vector<8x128xf32> -> vector<8x128xf32>
    %c0_453 = arith.constant 0 : index
    %c0_454 = arith.constant 0 : index
    %569 = vector.load %arg45[%c0_453, %c0_454] : memref<1x128xf32, #tpu.memory_space<vmem>>, vector<1x128xf32>
    %570 = vector.broadcast %569 : vector<1x128xf32> to vector<8x128xf32>
    %571 = arith.addf %568, %570 : vector<8x128xf32>
    %cst_455 = arith.constant 0.000000e+00 : f32
    %572 = vector.broadcast %cst_455 : f32 to vector<8x128xf32>
    %573 = arith.cmpf oge, %571, %572 : vector<8x128xf32>
    %cst_456 = arith.constant 0.00999999977 : f32
    %574 = vector.broadcast %cst_456 : f32 to vector<8x128xf32>
    %575 = arith.mulf %574, %571 : vector<8x128xf32>
    %576 = arith.select %573, %571, %575 : vector<8x128xi1>, vector<8x128xf32>
    %c0_457 = arith.constant 0 : index
    %c0_458 = arith.constant 0 : index
    %577 = vector.load %arg46[%c0_457, %c0_458] : memref<128x128xbf16, #tpu.memory_space<vmem>>, vector<128x128xbf16>
    %578 = arith.truncf %576 : vector<8x128xf32> to vector<8x128xbf16>
    %cst_459 = arith.constant dense<0.000000e+00> : vector<8x128xf32>
    %579 = tpu.matmul %578, %577, %cst_459 {dimension_numbers = #tpu.dot_dimension_numbers<[1], [0], [0], [1], [0, 0, 1, 1], [], []>} : vector<8x128xbf16>, vector<128x128xbf16>, vector<8x128xf32> -> vector<8x128xf32>
    %c0_460 = arith.constant 0 : index
    %c0_461 = arith.constant 0 : index
    %580 = vector.load %arg47[%c0_460, %c0_461] : memref<1x128xf32, #tpu.memory_space<vmem>>, vector<1x128xf32>
    %581 = vector.broadcast %580 : vector<1x128xf32> to vector<8x128xf32>
    %582 = arith.addf %579, %581 : vector<8x128xf32>
    %cst_462 = arith.constant 0.000000e+00 : f32
    %583 = vector.broadcast %cst_462 : f32 to vector<8x128xf32>
    %584 = arith.cmpf oge, %582, %583 : vector<8x128xf32>
    %cst_463 = arith.constant 0.00999999977 : f32
    %585 = vector.broadcast %cst_463 : f32 to vector<8x128xf32>
    %586 = arith.mulf %585, %582 : vector<8x128xf32>
    %587 = arith.select %584, %582, %586 : vector<8x128xi1>, vector<8x128xf32>
    %c0_464 = arith.constant 0 : index
    %c0_465 = arith.constant 0 : index
    %588 = vector.load %arg48[%c0_464, %c0_465] : memref<128x128xbf16, #tpu.memory_space<vmem>>, vector<128x128xbf16>
    %589 = arith.truncf %587 : vector<8x128xf32> to vector<8x128xbf16>
    %cst_466 = arith.constant dense<0.000000e+00> : vector<8x128xf32>
    %590 = tpu.matmul %589, %588, %cst_466 {dimension_numbers = #tpu.dot_dimension_numbers<[1], [0], [0], [1], [0, 0, 1, 1], [], []>} : vector<8x128xbf16>, vector<128x128xbf16>, vector<8x128xf32> -> vector<8x128xf32>
    %c0_467 = arith.constant 0 : index
    %c0_468 = arith.constant 0 : index
    %591 = vector.load %arg49[%c0_467, %c0_468] : memref<1x128xf32, #tpu.memory_space<vmem>>, vector<1x128xf32>
    %592 = vector.broadcast %591 : vector<1x128xf32> to vector<8x128xf32>
    %593 = arith.addf %590, %592 : vector<8x128xf32>
    %cst_469 = arith.constant 0.000000e+00 : f32
    %594 = vector.broadcast %cst_469 : f32 to vector<8x128xf32>
    %595 = arith.cmpf oge, %593, %594 : vector<8x128xf32>
    %cst_470 = arith.constant 0.00999999977 : f32
    %596 = vector.broadcast %cst_470 : f32 to vector<8x128xf32>
    %597 = arith.mulf %596, %593 : vector<8x128xf32>
    %598 = arith.select %595, %593, %597 : vector<8x128xi1>, vector<8x128xf32>
    %c0_471 = arith.constant 0 : index
    %c0_472 = arith.constant 0 : index
    %599 = vector.load %arg50[%c0_471, %c0_472] : memref<128x128xbf16, #tpu.memory_space<vmem>>, vector<128x128xbf16>
    %600 = arith.truncf %598 : vector<8x128xf32> to vector<8x128xbf16>
    %cst_473 = arith.constant dense<0.000000e+00> : vector<8x128xf32>
    %601 = tpu.matmul %600, %599, %cst_473 {dimension_numbers = #tpu.dot_dimension_numbers<[1], [0], [0], [1], [0, 0, 1, 1], [], []>} : vector<8x128xbf16>, vector<128x128xbf16>, vector<8x128xf32> -> vector<8x128xf32>
    %c0_474 = arith.constant 0 : index
    %c0_475 = arith.constant 0 : index
    %602 = vector.load %arg51[%c0_474, %c0_475] : memref<1x128xf32, #tpu.memory_space<vmem>>, vector<1x128xf32>
    %603 = vector.broadcast %602 : vector<1x128xf32> to vector<8x128xf32>
    %604 = arith.addf %601, %603 : vector<8x128xf32>
    %c0_476 = arith.constant 0 : index
    %c0_477 = arith.constant 0 : index
    %605 = vector.load %arg52[%c0_476, %c0_477] : memref<128x128xbf16, #tpu.memory_space<vmem>>, vector<128x128xbf16>
    %606 = arith.truncf %604 : vector<8x128xf32> to vector<8x128xbf16>
    %cst_478 = arith.constant dense<0.000000e+00> : vector<8x128xf32>
    %607 = tpu.matmul %606, %605, %cst_478 {dimension_numbers = #tpu.dot_dimension_numbers<[1], [0], [0], [1], [0, 0, 1, 1], [], []>} : vector<8x128xbf16>, vector<128x128xbf16>, vector<8x128xf32> -> vector<8x128xf32>
    %c0_479 = arith.constant 0 : index
    %c0_480 = arith.constant 0 : index
    %608 = vector.load %arg53[%c0_479, %c0_480] : memref<1x128xf32, #tpu.memory_space<vmem>>, vector<1x128xf32>
    %609 = vector.broadcast %608 : vector<1x128xf32> to vector<8x128xf32>
    %610 = arith.addf %607, %609 : vector<8x128xf32>
    %c0_481 = arith.constant 0 : index
    %c0_482 = arith.constant 0 : index
    %611 = vector.load %arg54[%c0_481, %c0_482] : memref<8x128xf32, #tpu.memory_space<vmem>>, vector<8x128xf32>
    tpu.vector_store %arg54[%c0_481, %c0_482], %610 {strides = array<i32>} : memref<8x128xf32, #tpu.memory_space<vmem>>, vector<8x128xf32>,
    return
  }
  func.func @transform_0(%arg0: i32) -> (i32, i32) {
    %c0_i32 = arith.constant 0 : i32
    %c0_i32_0 = arith.constant 0 : i32
    return %arg0, %c0_i32 : i32, i32
  }
  func.func @transform_1(%arg0: i32) -> (i32, i32) {
    %c0_i32 = arith.constant 0 : i32
    %c0_i32_0 = arith.constant 0 : i32
    %c0_i32_1 = arith.constant 0 : i32
    return %c0_i32, %c0_i32_0 : i32, i32
  }
  func.func @transform_2(%arg0: i32) -> (i32, i32) {
    %c0_i32 = arith.constant 0 : i32
    %c0_i32_0 = arith.constant 0 : i32
    %c0_i32_1 = arith.constant 0 : i32
    return %c0_i32, %c0_i32_0 : i32, i32
  }
  func.func @transform_3(%arg0: i32) -> (i32, i32) {
    %c0_i32 = arith.constant 0 : i32
    %c0_i32_0 = arith.constant 0 : i32
    %c0_i32_1 = arith.constant 0 : i32
    return %c0_i32, %c0_i32_0 : i32, i32
  }
  func.func @transform_4(%arg0: i32) -> (i32, i32) {
    %c0_i32 = arith.constant 0 : i32
    %c0_i32_0 = arith.constant 0 : i32
    %c0_i32_1 = arith.constant 0 : i32
    return %c0_i32, %c0_i32_0 : i32, i32
  }
  func.func @transform_5(%arg0: i32) -> (i32, i32) {
    %c0_i32 = arith.constant 0 : i32
    %c0_i32_0 = arith.constant 0 : i32
    %c0_i32_1 = arith.constant 0 : i32
    return %c0_i32, %c0_i32_0 : i32, i32
  }
  func.func @transform_6(%arg0: i32) -> (i32, i32) {
    %c0_i32 = arith.constant 0 : i32
    %c0_i32_0 = arith.constant 0 : i32
    %c0_i32_1 = arith.constant 0 : i32
    return %c0_i32, %c0_i32_0 : i32, i32
  }
  func.func @transform_7(%arg0: i32) -> (i32, i32) {
    %c0_i32 = arith.constant 0 : i32
    %c0_i32_0 = arith.constant 0 : i32
    %c0_i32_1 = arith.constant 0 : i32
    return %c0_i32, %c0_i32_0 : i32, i32
  }
  func.func @transform_8(%arg0: i32) -> (i32, i32) {
    %c0_i32 = arith.constant 0 : i32
    %c0_i32_0 = arith.constant 0 : i32
    %c0_i32_1 = arith.constant 0 : i32
    return %c0_i32, %c0_i32_0 : i32, i32
  }
  func.func @transform_9(%arg0: i32) -> (i32, i32) {
    %c0_i32 = arith.constant 0 : i32
    %c0_i32_0 = arith.constant 0 : i32
    %c0_i32_1 = arith.constant 0 : i32
    return %c0_i32, %c0_i32_0 : i32, i32
  }
  func.func @transform_10(%arg0: i32) -> (i32, i32) {
    %c0_i32 = arith.constant 0 : i32
    %c0_i32_0 = arith.constant 0 : i32
    %c0_i32_1 = arith.constant 0 : i32
    return %c0_i32, %c0_i32_0 : i32, i32
  }
  func.func @transform_11(%arg0: i32) -> (i32, i32) {
    %c0_i32 = arith.constant 0 : i32
    %c0_i32_0 = arith.constant 0 : i32
    %c0_i32_1 = arith.constant 0 : i32
    return %c0_i32, %c0_i32_0 : i32, i32
  }
  func.func @transform_12(%arg0: i32) -> (i32, i32) {
    %c0_i32 = arith.constant 0 : i32
    %c0_i32_0 = arith.constant 0 : i32
    %c0_i32_1 = arith.constant 0 : i32
    return %c0_i32, %c0_i32_0 : i32, i32
  }
  func.func @transform_13(%arg0: i32) -> (i32, i32) {
    %c0_i32 = arith.constant 0 : i32
    %c0_i32_0 = arith.constant 0 : i32
    %c0_i32_1 = arith.constant 0 : i32
    return %c0_i32, %c0_i32_0 : i32, i32
  }
  func.func @transform_14(%arg0: i32) -> (i32, i32) {
    %c0_i32 = arith.constant 0 : i32
    %c0_i32_0 = arith.constant 0 : i32
    %c0_i32_1 = arith.constant 0 : i32
    return %c0_i32, %c0_i32_0 : i32, i32
  }
  func.func @transform_15(%arg0: i32) -> (i32, i32) {
    %c0_i32 = arith.constant 0 : i32
    %c0_i32_0 = arith.constant 0 : i32
    %c0_i32_1 = arith.constant 0 : i32
    return %c0_i32, %c0_i32_0 : i32, i32
  }
  func.func @transform_16(%arg0: i32) -> (i32, i32) {
    %c0_i32 = arith.constant 0 : i32
    %c0_i32_0 = arith.constant 0 : i32
    %c0_i32_1 = arith.constant 0 : i32
    return %c0_i32, %c0_i32_0 : i32, i32
  }
  func.func @transform_17(%arg0: i32) -> (i32, i32) {
    %c0_i32 = arith.constant 0 : i32
    %c0_i32_0 = arith.constant 0 : i32
    %c0_i32_1 = arith.constant 0 : i32
    return %c0_i32, %c0_i32_0 : i32, i32
  }
  func.func @transform_18(%arg0: i32) -> (i32, i32) {
    %c0_i32 = arith.constant 0 : i32
    %c0_i32_0 = arith.constant 0 : i32
    %c0_i32_1 = arith.constant 0 : i32
    return %c0_i32, %c0_i32_0 : i32, i32
  }
  func.func @transform_19(%arg0: i32) -> (i32, i32) {
    %c0_i32 = arith.constant 0 : i32
    %c0_i32_0 = arith.constant 0 : i32
    %c0_i32_1 = arith.constant 0 : i32
    return %c0_i32, %c0_i32_0 : i32, i32
  }
  func.func @transform_20(%arg0: i32) -> (i32, i32) {
    %c0_i32 = arith.constant 0 : i32
    %c0_i32_0 = arith.constant 0 : i32
    %c0_i32_1 = arith.constant 0 : i32
    return %c0_i32, %c0_i32_0 : i32, i32
  }
  func.func @transform_21(%arg0: i32) -> (i32, i32) {
    %c0_i32 = arith.constant 0 : i32
    %c0_i32_0 = arith.constant 0 : i32
    %c0_i32_1 = arith.constant 0 : i32
    return %c0_i32, %c0_i32_0 : i32, i32
  }
  func.func @transform_22(%arg0: i32) -> (i32, i32) {
    %c0_i32 = arith.constant 0 : i32
    %c0_i32_0 = arith.constant 0 : i32
    %c0_i32_1 = arith.constant 0 : i32
    return %c0_i32, %c0_i32_0 : i32, i32
  }
  func.func @transform_23(%arg0: i32) -> (i32, i32) {
    %c0_i32 = arith.constant 0 : i32
    %c0_i32_0 = arith.constant 0 : i32
    %c0_i32_1 = arith.constant 0 : i32
    return %c0_i32, %c0_i32_0 : i32, i32
  }
  func.func @transform_24(%arg0: i32) -> (i32, i32) {
    %c0_i32 = arith.constant 0 : i32
    %c0_i32_0 = arith.constant 0 : i32
    %c0_i32_1 = arith.constant 0 : i32
    return %c0_i32, %c0_i32_0 : i32, i32
  }
  func.func @transform_25(%arg0: i32) -> (i32, i32) {
    %c0_i32 = arith.constant 0 : i32
    %c0_i32_0 = arith.constant 0 : i32
    %c0_i32_1 = arith.constant 0 : i32
    return %c0_i32, %c0_i32_0 : i32, i32
  }
  func.func @transform_26(%arg0: i32) -> (i32, i32) {
    %c0_i32 = arith.constant 0 : i32
    %c0_i32_0 = arith.constant 0 : i32
    %c0_i32_1 = arith.constant 0 : i32
    return %c0_i32, %c0_i32_0 : i32, i32
  }
  func.func @transform_27(%arg0: i32) -> (i32, i32) {
    %c0_i32 = arith.constant 0 : i32
    %c0_i32_0 = arith.constant 0 : i32
    %c0_i32_1 = arith.constant 0 : i32
    return %c0_i32, %c0_i32_0 : i32, i32
  }
  func.func @transform_28(%arg0: i32) -> (i32, i32) {
    %c0_i32 = arith.constant 0 : i32
    %c0_i32_0 = arith.constant 0 : i32
    %c0_i32_1 = arith.constant 0 : i32
    return %c0_i32, %c0_i32_0 : i32, i32
  }
  func.func @transform_29(%arg0: i32) -> (i32, i32) {
    %c0_i32 = arith.constant 0 : i32
    %c0_i32_0 = arith.constant 0 : i32
    %c0_i32_1 = arith.constant 0 : i32
    return %c0_i32, %c0_i32_0 : i32, i32
  }
  func.func @transform_30(%arg0: i32) -> (i32, i32) {
    %c0_i32 = arith.constant 0 : i32
    %c0_i32_0 = arith.constant 0 : i32
    %c0_i32_1 = arith.constant 0 : i32
    return %c0_i32, %c0_i32_0 : i32, i32
  }
  func.func @transform_31(%arg0: i32) -> (i32, i32) {
    %c0_i32 = arith.constant 0 : i32
    %c0_i32_0 = arith.constant 0 : i32
    %c0_i32_1 = arith.constant 0 : i32
    return %c0_i32, %c0_i32_0 : i32, i32
  }
  func.func @transform_32(%arg0: i32) -> (i32, i32) {
    %c0_i32 = arith.constant 0 : i32
    %c0_i32_0 = arith.constant 0 : i32
    %c0_i32_1 = arith.constant 0 : i32
    return %c0_i32, %c0_i32_0 : i32, i32
  }
  func.func @transform_33(%arg0: i32) -> (i32, i32) {
    %c0_i32 = arith.constant 0 : i32
    %c0_i32_0 = arith.constant 0 : i32
    %c0_i32_1 = arith.constant 0 : i32
    return %c0_i32, %c0_i32_0 : i32, i32
  }
  func.func @transform_34(%arg0: i32) -> (i32, i32) {
    %c0_i32 = arith.constant 0 : i32
    %c0_i32_0 = arith.constant 0 : i32
    %c0_i32_1 = arith.constant 0 : i32
    return %c0_i32, %c0_i32_0 : i32, i32
  }
  func.func @transform_35(%arg0: i32) -> (i32, i32) {
    %c0_i32 = arith.constant 0 : i32
    %c0_i32_0 = arith.constant 0 : i32
    %c0_i32_1 = arith.constant 0 : i32
    return %c0_i32, %c0_i32_0 : i32, i32
  }
  func.func @transform_36(%arg0: i32) -> (i32, i32) {
    %c0_i32 = arith.constant 0 : i32
    %c0_i32_0 = arith.constant 0 : i32
    %c0_i32_1 = arith.constant 0 : i32
    return %c0_i32, %c0_i32_0 : i32, i32
  }
  func.func @transform_37(%arg0: i32) -> (i32, i32) {
    %c0_i32 = arith.constant 0 : i32
    %c0_i32_0 = arith.constant 0 : i32
    %c0_i32_1 = arith.constant 0 : i32
    return %c0_i32, %c0_i32_0 : i32, i32
  }
  func.func @transform_38(%arg0: i32) -> (i32, i32) {
    %c0_i32 = arith.constant 0 : i32
    %c0_i32_0 = arith.constant 0 : i32
    %c0_i32_1 = arith.constant 0 : i32
    return %c0_i32, %c0_i32_0 : i32, i32
  }
  func.func @transform_39(%arg0: i32) -> (i32, i32) {
    %c0_i32 = arith.constant 0 : i32
    %c0_i32_0 = arith.constant 0 : i32
    %c0_i32_1 = arith.constant 0 : i32
    return %c0_i32, %c0_i32_0 : i32, i32
  }
  func.func @transform_40(%arg0: i32) -> (i32, i32) {
    %c0_i32 = arith.constant 0 : i32
    %c0_i32_0 = arith.constant 0 : i32
    %c0_i32_1 = arith.constant 0 : i32
    return %c0_i32, %c0_i32_0 : i32, i32
  }
  func.func @transform_41(%arg0: i32) -> (i32, i32) {
    %c0_i32 = arith.constant 0 : i32
    %c0_i32_0 = arith.constant 0 : i32
    %c0_i32_1 = arith.constant 0 : i32
    return %c0_i32, %c0_i32_0 : i32, i32
  }
  func.func @transform_42(%arg0: i32) -> (i32, i32) {
    %c0_i32 = arith.constant 0 : i32
    %c0_i32_0 = arith.constant 0 : i32
    %c0_i32_1 = arith.constant 0 : i32
    return %c0_i32, %c0_i32_0 : i32, i32
  }
  func.func @transform_43(%arg0: i32) -> (i32, i32) {
    %c0_i32 = arith.constant 0 : i32
    %c0_i32_0 = arith.constant 0 : i32
    %c0_i32_1 = arith.constant 0 : i32
    return %c0_i32, %c0_i32_0 : i32, i32
  }
  func.func @transform_44(%arg0: i32) -> (i32, i32) {
    %c0_i32 = arith.constant 0 : i32
    %c0_i32_0 = arith.constant 0 : i32
    %c0_i32_1 = arith.constant 0 : i32
    return %c0_i32, %c0_i32_0 : i32, i32
  }
  func.func @transform_45(%arg0: i32) -> (i32, i32) {
    %c0_i32 = arith.constant 0 : i32
    %c0_i32_0 = arith.constant 0 : i32
    %c0_i32_1 = arith.constant 0 : i32
    return %c0_i32, %c0_i32_0 : i32, i32
  }
  func.func @transform_46(%arg0: i32) -> (i32, i32) {
    %c0_i32 = arith.constant 0 : i32
    %c0_i32_0 = arith.constant 0 : i32
    %c0_i32_1 = arith.constant 0 : i32
    return %c0_i32, %c0_i32_0 : i32, i32
  }
  func.func @transform_47(%arg0: i32) -> (i32, i32) {
    %c0_i32 = arith.constant 0 : i32
    %c0_i32_0 = arith.constant 0 : i32
    %c0_i32_1 = arith.constant 0 : i32
    return %c0_i32, %c0_i32_0 : i32, i32
  }
  func.func @transform_48(%arg0: i32) -> (i32, i32) {
    %c0_i32 = arith.constant 0 : i32
    %c0_i32_0 = arith.constant 0 : i32
    %c0_i32_1 = arith.constant 0 : i32
    return %c0_i32, %c0_i32_0 : i32, i32
  }
  func.func @transform_49(%arg0: i32) -> (i32, i32) {
    %c0_i32 = arith.constant 0 : i32
    %c0_i32_0 = arith.constant 0 : i32
    %c0_i32_1 = arith.constant 0 : i32
    return %c0_i32, %c0_i32_0 : i32, i32
  }
  func.func @transform_50(%arg0: i32) -> (i32, i32) {
    %c0_i32 = arith.constant 0 : i32
    %c0_i32_0 = arith.constant 0 : i32
    %c0_i32_1 = arith.constant 0 : i32
    return %c0_i32, %c0_i32_0 : i32, i32
  }
  func.func @transform_51(%arg0: i32) -> (i32, i32) {
    %c0_i32 = arith.constant 0 : i32
    %c0_i32_0 = arith.constant 0 : i32
    %c0_i32_1 = arith.constant 0 : i32
    return %c0_i32, %c0_i32_0 : i32, i32
  }
  func.func @transform_52(%arg0: i32) -> (i32, i32) {
    %c0_i32 = arith.constant 0 : i32
    %c0_i32_0 = arith.constant 0 : i32
    %c0_i32_1 = arith.constant 0 : i32
    return %c0_i32, %c0_i32_0 : i32, i32
  }
  func.func @transform_53(%arg0: i32) -> (i32, i32) {
    %c0_i32 = arith.constant 0 : i32
    %c0_i32_0 = arith.constant 0 : i32
    return %arg0, %c0_i32 : i32, i32
  }
}

</mosaic_0001>

<llo_original>
// kernel: grunet_forward.1
$region0: #{grunet_forward.1}
  #allocation0 [shape = 'u32[]', space=smem, size = 0x4, offset = 0x4, fixed_abs, tag = 'smem constant byte address 0x4 - core index']
  #allocation1 [shape = 'u32[72,128]{1,0:T(1,128)}', space=vmem, size = 0x9000, scoped, tag = 'internal scratch']
  #allocation2 [shape = 'f32[192,128]{1,0:T(8,128)}', space=vmem, size = 0x18000, scoped, tag = 'scratch operand']
  #allocation3 [shape = 'f32[96,128]{1,0:T(8,128)}', space=vmem, size = 0xc000, scoped, tag = 'scratch operand']
  #allocation4 [shape = 'f32[32,128]{1,0:T(8,128)}', space=vmem, size = 0x4000, scoped, tag = 'scratch operand']
  #allocation5 [shape = 'f32[16,128]{1,0:T(8,128)}', space=vmem, size = 0x2000, scoped, tag = 'scratch operand']
  %s0 = inlined_call_operand.smem [shape: u32[54], index: -1, kind: input, shape index: {}]
  %s1 = sld [smem:[%s0]]
  %s2 = scalar_lea.smem %s0, 1
  %s3 = sld [smem:[%s2]]
  %s4 = scalar_lea.smem %s0, 2
  %s5 = sld [smem:[%s4]]
  %s6 = scalar_lea.smem %s0, 3
  %s7 = sld [smem:[%s6]]
  %s8 = scalar_lea.smem %s0, 4
  %s9 = sld [smem:[%s8]]
  %s10 = scalar_lea.smem %s0, 5
  %s11 = sld [smem:[%s10]]
  %s12 = scalar_lea.smem %s0, 6
  %s13 = sld [smem:[%s12]]
  %s14 = scalar_lea.smem %s0, 7
  %s15 = sld [smem:[%s14]]
  %s16 = scalar_lea.smem %s0, 8
  %s17 = sld [smem:[%s16]]
  %s18 = scalar_lea.smem %s0, 9
  %s19 = sld [smem:[%s18]]
  %s20 = scalar_lea.smem %s0, 10
  %s21 = sld [smem:[%s20]]
  %s22 = scalar_lea.smem %s0, 11
  %s23 = sld [smem:[%s22]]
  %s24 = scalar_lea.smem %s0, 12
  %s25 = sld [smem:[%s24]]
  %s26 = scalar_lea.smem %s0, 13
  %s27 = sld [smem:[%s26]]
  %s28 = scalar_lea.smem %s0, 14
  %s29 = sld [smem:[%s28]]
  %s30 = scalar_lea.smem %s0, 15
  %s31 = sld [smem:[%s30]]
  %s32 = scalar_lea.smem %s0, 16
  %s33 = sld [smem:[%s32]]
  %s34 = scalar_lea.smem %s0, 17
  %s35 = sld [smem:[%s34]]
  %s36 = scalar_lea.smem %s0, 18
  %s37 = sld [smem:[%s36]]
  %s38 = scalar_lea.smem %s0, 19
  %s39 = sld [smem:[%s38]]
  %s40 = scalar_lea.smem %s0, 20
  %s41 = sld [smem:[%s40]]
  %s42 = scalar_lea.smem %s0, 21
  %s43 = sld [smem:[%s42]]
  %s44 = scalar_lea.smem %s0, 22
  %s45 = sld [smem:[%s44]]
  %s46 = scalar_lea.smem %s0, 23
  %s47 = sld [smem:[%s46]]
  %s48 = scalar_lea.smem %s0, 24
  %s49 = sld [smem:[%s48]]
  %s50 = scalar_lea.smem %s0, 25
  %s51 = sld [smem:[%s50]]
  %s52 = scalar_lea.smem %s0, 26
  %s53 = sld [smem:[%s52]]
  %s54 = scalar_lea.smem %s0, 27
  %s55 = sld [smem:[%s54]]
  %s56 = scalar_lea.smem %s0, 28
  %s57 = sld [smem:[%s56]]
  %s58 = scalar_lea.smem %s0, 29
  %s59 = sld [smem:[%s58]]
  %s60 = scalar_lea.smem %s0, 30
  %s61 = sld [smem:[%s60]]
  %s62 = scalar_lea.smem %s0, 31
  %s63 = sld [smem:[%s62]]
  %s64 = scalar_lea.smem %s0, 32
  %s65 = sld [smem:[%s64]]
  %s66 = scalar_lea.smem %s0, 33
  %s67 = sld [smem:[%s66]]
  %s68 = scalar_lea.smem %s0, 34
  %s69 = sld [smem:[%s68]]
  %s70 = scalar_lea.smem %s0, 35
  %s71 = sld [smem:[%s70]]
  %s72 = scalar_lea.smem %s0, 36
  %s73 = sld [smem:[%s72]]
  %s74 = scalar_lea.smem %s0, 37
  %s75 = sld [smem:[%s74]]
  %s76 = scalar_lea.smem %s0, 38
  %s77 = sld [smem:[%s76]]
  %s78 = scalar_lea.smem %s0, 39
  %s79 = sld [smem:[%s78]]
  %s80 = scalar_lea.smem %s0, 40
  %s81 = sld [smem:[%s80]]
  %s82 = scalar_lea.smem %s0, 41
  %s83 = sld [smem:[%s82]]
  %s84 = scalar_lea.smem %s0, 42
  %s85 = sld [smem:[%s84]]
  %s86 = scalar_lea.smem %s0, 43
  %s87 = sld [smem:[%s86]]
  %s88 = scalar_lea.smem %s0, 44
  %s89 = sld [smem:[%s88]]
  %s90 = scalar_lea.smem %s0, 45
  %s91 = sld [smem:[%s90]]
  %s92 = scalar_lea.smem %s0, 46
  %s93 = sld [smem:[%s92]]
  %s94 = scalar_lea.smem %s0, 47
  %s95 = sld [smem:[%s94]]
  %s96 = scalar_lea.smem %s0, 48
  %s97 = sld [smem:[%s96]]
  %s98 = scalar_lea.smem %s0, 49
  %s99 = sld [smem:[%s98]]
  %s100 = scalar_lea.smem %s0, 50
  %s101 = sld [smem:[%s100]]
  %s102 = scalar_lea.smem %s0, 51
  %s103 = sld [smem:[%s102]]
  %s104 = scalar_lea.smem %s0, 52
  %s105 = sld [smem:[%s104]]
  %s106 = scalar_lea.smem %s0, 53
  %s107 = sld [smem:[%s106]]
  %s108 = sld [smem:[#allocation0]]
  $region222: #{grunet_forward.1} parent=0
    _
  %s110 = ssub.s32 1, %s108
  %s111 = scalar_select 0, %s110, %s108
  // Predicated region
  $region2: #{grunet_forward.1} parent=0 // pred_check
    _
  $region3: #{grunet_forward.1} parent=0 // pred_check_branch
    %113 = sbr.rel (0) target = $region5
  $region4: #{grunet_forward.1} parent=0 // pred_region
    _
  $region5: #{grunet_forward.1} parent=0 // pred_fallthru
    _
  // Predicated region
  $region6: #{grunet_forward.1} parent=0 // pred_check
    _
  $region7: #{grunet_forward.1} parent=0 // pred_check_branch
    %115 = sbr.rel (0) target = $region9
  $region8: #{grunet_forward.1} parent=0 // pred_region
    _
  $region9: #{grunet_forward.1} parent=0 // pred_fallthru
    _
  // Predicated region
  $region10: #{grunet_forward.1} parent=0 // pred_check
    _
  $region11: #{grunet_forward.1} parent=0 // pred_check_branch
    %117 = sbr.rel (0) target = $region13
  $region12: #{grunet_forward.1} parent=0 // pred_region
    _
  $region13: #{grunet_forward.1} parent=0 // pred_fallthru
    _
  // Predicated region
  $region14: #{grunet_forward.1} parent=0 // pred_check
    _
  $region15: #{grunet_forward.1} parent=0 // pred_check_branch
    %119 = sbr.rel (0) target = $region17
  $region16: #{grunet_forward.1} parent=0 // pred_region
    _
  $region17: #{grunet_forward.1} parent=0 // pred_fallthru
    _
  // Predicated region
  $region18: #{grunet_forward.1} parent=0 // pred_check
    _
  $region19: #{grunet_forward.1} parent=0 // pred_check_branch
    %121 = sbr.rel (0) target = $region21
  $region20: #{grunet_forward.1} parent=0 // pred_region
    _
  $region21: #{grunet_forward.1} parent=0 // pred_fallthru
    _
  // Predicated region
  $region22: #{grunet_forward.1} parent=0 // pred_check
    _
  $region23: #{grunet_forward.1} parent=0 // pred_check_branch
    %123 = sbr.rel (0) target = $region25
  $region24: #{grunet_forward.1} parent=0 // pred_region
    _
  $region25: #{grunet_forward.1} parent=0 // pred_fallthru
    _
  // Predicated region
  $region26: #{grunet_forward.1} parent=0 // pred_check
    _
  $region27: #{grunet_forward.1} parent=0 // pred_check_branch
    %125 = sbr.rel (0) target = $region29
  $region28: #{grunet_forward.1} parent=0 // pred_region
    _
  $region29: #{grunet_forward.1} parent=0 // pred_fallthru
    _
  // Predicated region
  $region30: #{grunet_forward.1} parent=0 // pred_check
    _
  $region31: #{grunet_forward.1} parent=0 // pred_check_branch
    %127 = sbr.rel (0) target = $region33
  $region32: #{grunet_forward.1} parent=0 // pred_region
    _
  $region33: #{grunet_forward.1} parent=0 // pred_fallthru
    _
  // Predicated region
  $region34: #{grunet_forward.1} parent=0 // pred_check
    _
  $region35: #{grunet_forward.1} parent=0 // pred_check_branch
    %129 = sbr.rel (0) target = $region37
  $region36: #{grunet_forward.1} parent=0 // pred_region
    _
  $region37: #{grunet_forward.1} parent=0 // pred_fallthru
    _
  // Predicated region
  $region38: #{grunet_forward.1} parent=0 // pred_check
    _
  $region39: #{grunet_forward.1} parent=0 // pred_check_branch
    %131 = sbr.rel (0) target = $region41
  $region40: #{grunet_forward.1} parent=0 // pred_region
    _
  $region41: #{grunet_forward.1} parent=0 // pred_fallthru
    _
  // Predicated region
  $region42: #{grunet_forward.1} parent=0 // pred_check
    _
  $region43: #{grunet_forward.1} parent=0 // pred_check_branch
    %133 = sbr.rel (0) target = $region45
  $region44: #{grunet_forward.1} parent=0 // pred_region
    _
  $region45: #{grunet_forward.1} parent=0 // pred_fallthru
    _
  // Predicated region
  $region46: #{grunet_forward.1} parent=0 // pred_check
    _
  $region47: #{grunet_forward.1} parent=0 // pred_check_branch
    %135 = sbr.rel (0) target = $region49
  $region48: #{grunet_forward.1} parent=0 // pred_region
    _
  $region49: #{grunet_forward.1} parent=0 // pred_fallthru
    _
  // Predicated region
  $region50: #{grunet_forward.1} parent=0 // pred_check
    _
  $region51: #{grunet_forward.1} parent=0 // pred_check_branch
    %137 = sbr.rel (0) target = $region53
  $region52: #{grunet_forward.1} parent=0 // pred_region
    _
  $region53: #{grunet_forward.1} parent=0 // pred_fallthru
    _
  // Predicated region
  $region54: #{grunet_forward.1} parent=0 // pred_check
    _
  $region55: #{grunet_forward.1} parent=0 // pred_check_branch
    %139 = sbr.rel (0) target = $region57
  $region56: #{grunet_forward.1} parent=0 // pred_region
    _
  $region57: #{grunet_forward.1} parent=0 // pred_fallthru
    _
  // Predicated region
  $region58: #{grunet_forward.1} parent=0 // pred_check
    _
  $region59: #{grunet_forward.1} parent=0 // pred_check_branch
    %141 = sbr.rel (0) target = $region61
  $region60: #{grunet_forward.1} parent=0 // pred_region
    _
  $region61: #{grunet_forward.1} parent=0 // pred_fallthru
    _
  // Predicated region
  $region62: #{grunet_forward.1} parent=0 // pred_check
    _
  $region63: #{grunet_forward.1} parent=0 // pred_check_branch
    %143 = sbr.rel (0) target = $region65
  $region64: #{grunet_forward.1} parent=0 // pred_region
    _
  $region65: #{grunet_forward.1} parent=0 // pred_fallthru
    _
  // Predicated region
  $region66: #{grunet_forward.1} parent=0 // pred_check
    _
  $region67: #{grunet_forward.1} parent=0 // pred_check_branch
    %145 = sbr.rel (0) target = $region69
  $region68: #{grunet_forward.1} parent=0 // pred_region
    _
  $region69: #{grunet_forward.1} parent=0 // pred_fallthru
    _
  // Predicated region
  $region70: #{grunet_forward.1} parent=0 // pred_check
    _
  $region71: #{grunet_forward.1} parent=0 // pred_check_branch
    %147 = sbr.rel (0) target = $region73
  $region72: #{grunet_forward.1} parent=0 // pred_region
    _
  $region73: #{grunet_forward.1} parent=0 // pred_fallthru
    _
  // Predicated region
  $region74: #{grunet_forward.1} parent=0 // pred_check
    _
  $region75: #{grunet_forward.1} parent=0 // pred_check_branch
    %149 = sbr.rel (0) target = $region77
  $region76: #{grunet_forward.1} parent=0 // pred_region
    _
  $region77: #{grunet_forward.1} parent=0 // pred_fallthru
    _
  // Predicated region
  $region78: #{grunet_forward.1} parent=0 // pred_check
    _
  $region79: #{grunet_forward.1} parent=0 // pred_check_branch
    %151 = sbr.rel (0) target = $region81
  $region80: #{grunet_forward.1} parent=0 // pred_region
    _
  $region81: #{grunet_forward.1} parent=0 // pred_fallthru
    _
  // Predicated region
  $region82: #{grunet_forward.1} parent=0 // pred_check
    _
  $region83: #{grunet_forward.1} parent=0 // pred_check_branch
    %153 = sbr.rel (0) target = $region85
  $region84: #{grunet_forward.1} parent=0 // pred_region
    _
  $region85: #{grunet_forward.1} parent=0 // pred_fallthru
    _
  // Predicated region
  $region86: #{grunet_forward.1} parent=0 // pred_check
    _
  $region87: #{grunet_forward.1} parent=0 // pred_check_branch
    %155 = sbr.rel (0) target = $region89
  $region88: #{grunet_forward.1} parent=0 // pred_region
    _
  $region89: #{grunet_forward.1} parent=0 // pred_fallthru
    _
  // Predicated region
  $region90: #{grunet_forward.1} parent=0 // pred_check
    _
  $region91: #{grunet_forward.1} parent=0 // pred_check_branch
    %157 = sbr.rel (0) target = $region93
  $region92: #{grunet_forward.1} parent=0 // pred_region
    _
  $region93: #{grunet_forward.1} parent=0 // pred_fallthru
    _
  // Predicated region
  $region94: #{grunet_forward.1} parent=0 // pred_check
    _
  $region95: #{grunet_forward.1} parent=0 // pred_check_branch
    %159 = sbr.rel (0) target = $region97
  $region96: #{grunet_forward.1} parent=0 // pred_region
    _
  $region97: #{grunet_forward.1} parent=0 // pred_fallthru
    _
  // Predicated region
  $region98: #{grunet_forward.1} parent=0 // pred_check
    _
  $region99: #{grunet_forward.1} parent=0 // pred_check_branch
    %161 = sbr.rel (0) target = $region101
  $region100: #{grunet_forward.1} parent=0 // pred_region
    _
  $region101: #{grunet_forward.1} parent=0 // pred_fallthru
    _
  // Predicated region
  $region102: #{grunet_forward.1} parent=0 // pred_check
    _
  $region103: #{grunet_forward.1} parent=0 // pred_check_branch
    %163 = sbr.rel (0) target = $region105
  $region104: #{grunet_forward.1} parent=0 // pred_region
    _
  $region105: #{grunet_forward.1} parent=0 // pred_fallthru
    _
  // Predicated region
  $region106: #{grunet_forward.1} parent=0 // pred_check
    _
  $region107: #{grunet_forward.1} parent=0 // pred_check_branch
    %165 = sbr.rel (0) target = $region109
  $region108: #{grunet_forward.1} parent=0 // pred_region
    _
  $region109: #{grunet_forward.1} parent=0 // pred_fallthru
    _
  // Predicated region
  $region110: #{grunet_forward.1} parent=0 // pred_check
    _
  $region111: #{grunet_forward.1} parent=0 // pred_check_branch
    %167 = sbr.rel (0) target = $region113
  $region112: #{grunet_forward.1} parent=0 // pred_region
    _
  $region113: #{grunet_forward.1} parent=0 // pred_fallthru
    _
  // Predicated region
  $region114: #{grunet_forward.1} parent=0 // pred_check
    _
  $region115: #{grunet_forward.1} parent=0 // pred_check_branch
    %169 = sbr.rel (0) target = $region117
  $region116: #{grunet_forward.1} parent=0 // pred_region
    _
  $region117: #{grunet_forward.1} parent=0 // pred_fallthru
    _
  // Predicated region
  $region118: #{grunet_forward.1} parent=0 // pred_check
    _
  $region119: #{grunet_forward.1} parent=0 // pred_check_branch
    %171 = sbr.rel (0) target = $region121
  $region120: #{grunet_forward.1} parent=0 // pred_region
    _
  $region121: #{grunet_forward.1} parent=0 // pred_fallthru
    _
  // Predicated region
  $region122: #{grunet_forward.1} parent=0 // pred_check
    _
  $region123: #{grunet_forward.1} parent=0 // pred_check_branch
    %173 = sbr.rel (0) target = $region125
  $region124: #{grunet_forward.1} parent=0 // pred_region
    _
  $region125: #{grunet_forward.1} parent=0 // pred_fallthru
    _
  // Predicated region
  $region126: #{grunet_forward.1} parent=0 // pred_check
    _
  $region127: #{grunet_forward.1} parent=0 // pred_check_branch
    %175 = sbr.rel (0) target = $region129
  $region128: #{grunet_forward.1} parent=0 // pred_region
    _
  $region129: #{grunet_forward.1} parent=0 // pred_fallthru
    _
  // Predicated region
  $region130: #{grunet_forward.1} parent=0 // pred_check
    _
  $region131: #{grunet_forward.1} parent=0 // pred_check_branch
    %177 = sbr.rel (0) target = $region133
  $region132: #{grunet_forward.1} parent=0 // pred_region
    _
  $region133: #{grunet_forward.1} parent=0 // pred_fallthru
    _
  // Predicated region
  $region134: #{grunet_forward.1} parent=0 // pred_check
    _
  $region135: #{grunet_forward.1} parent=0 // pred_check_branch
    %179 = sbr.rel (0) target = $region137
  $region136: #{grunet_forward.1} parent=0 // pred_region
    _
  $region137: #{grunet_forward.1} parent=0 // pred_fallthru
    _
  // Predicated region
  $region138: #{grunet_forward.1} parent=0 // pred_check
    _
  $region139: #{grunet_forward.1} parent=0 // pred_check_branch
    %181 = sbr.rel (0) target = $region141
  $region140: #{grunet_forward.1} parent=0 // pred_region
    _
  $region141: #{grunet_forward.1} parent=0 // pred_fallthru
    _
  // Predicated region
  $region142: #{grunet_forward.1} parent=0 // pred_check
    _
  $region143: #{grunet_forward.1} parent=0 // pred_check_branch
    %183 = sbr.rel (0) target = $region145
  $region144: #{grunet_forward.1} parent=0 // pred_region
    _
  $region145: #{grunet_forward.1} parent=0 // pred_fallthru
    _
  // Predicated region
  $region146: #{grunet_forward.1} parent=0 // pred_check
    _
  $region147: #{grunet_forward.1} parent=0 // pred_check_branch
    %185 = sbr.rel (0) target = $region149
  $region148: #{grunet_forward.1} parent=0 // pred_region
    _
  $region149: #{grunet_forward.1} parent=0 // pred_fallthru
    _
  // Predicated region
  $region150: #{grunet_forward.1} parent=0 // pred_check
    _
  $region151: #{grunet_forward.1} parent=0 // pred_check_branch
    %187 = sbr.rel (0) target = $region153
  $region152: #{grunet_forward.1} parent=0 // pred_region
    _
  $region153: #{grunet_forward.1} parent=0 // pred_fallthru
    _
  // Predicated region
  $region154: #{grunet_forward.1} parent=0 // pred_check
    _
  $region155: #{grunet_forward.1} parent=0 // pred_check_branch
    %189 = sbr.rel (0) target = $region157
  $region156: #{grunet_forward.1} parent=0 // pred_region
    _
  $region157: #{grunet_forward.1} parent=0 // pred_fallthru
    _
  // Predicated region
  $region158: #{grunet_forward.1} parent=0 // pred_check
    _
  $region159: #{grunet_forward.1} parent=0 // pred_check_branch
    %191 = sbr.rel (0) target = $region161
  $region160: #{grunet_forward.1} parent=0 // pred_region
    _
  $region161: #{grunet_forward.1} parent=0 // pred_fallthru
    _
  // Predicated region
  $region162: #{grunet_forward.1} parent=0 // pred_check
    _
  $region163: #{grunet_forward.1} parent=0 // pred_check_branch
    %193 = sbr.rel (0) target = $region165
  $region164: #{grunet_forward.1} parent=0 // pred_region
    _
  $region165: #{grunet_forward.1} parent=0 // pred_fallthru
    _
  // Predicated region
  $region166: #{grunet_forward.1} parent=0 // pred_check
    _
  $region167: #{grunet_forward.1} parent=0 // pred_check_branch
    %195 = sbr.rel (0) target = $region169
  $region168: #{grunet_forward.1} parent=0 // pred_region
    _
  $region169: #{grunet_forward.1} parent=0 // pred_fallthru
    _
  // Predicated region
  $region170: #{grunet_forward.1} parent=0 // pred_check
    _
  $region171: #{grunet_forward.1} parent=0 // pred_check_branch
    %197 = sbr.rel (0) target = $region173
  $region172: #{grunet_forward.1} parent=0 // pred_region
    _
  $region173: #{grunet_forward.1} parent=0 // pred_fallthru
    _
  // Predicated region
  $region174: #{grunet_forward.1} parent=0 // pred_check
    _
  $region175: #{grunet_forward.1} parent=0 // pred_check_branch
    %199 = sbr.rel (0) target = $region177
  $region176: #{grunet_forward.1} parent=0 // pred_region
    _
  $region177: #{grunet_forward.1} parent=0 // pred_fallthru
    _
  // Predicated region
  $region178: #{grunet_forward.1} parent=0 // pred_check
    _
  $region179: #{grunet_forward.1} parent=0 // pred_check_branch
    %201 = sbr.rel (0) target = $region181
  $region180: #{grunet_forward.1} parent=0 // pred_region
    _
  $region181: #{grunet_forward.1} parent=0 // pred_fallthru
    _
  // Predicated region
  $region182: #{grunet_forward.1} parent=0 // pred_check
    _
  $region183: #{grunet_forward.1} parent=0 // pred_check_branch
    %203 = sbr.rel (0) target = $region185
  $region184: #{grunet_forward.1} parent=0 // pred_region
    _
  $region185: #{grunet_forward.1} parent=0 // pred_fallthru
    _
  // Predicated region
  $region186: #{grunet_forward.1} parent=0 // pred_check
    _
  $region187: #{grunet_forward.1} parent=0 // pred_check_branch
    %205 = sbr.rel (0) target = $region189
  $region188: #{grunet_forward.1} parent=0 // pred_region
    _
  $region189: #{grunet_forward.1} parent=0 // pred_fallthru
    _
  // Predicated region
  $region190: #{grunet_forward.1} parent=0 // pred_check
    _
  $region191: #{grunet_forward.1} parent=0 // pred_check_branch
    %207 = sbr.rel (0) target = $region193
  $region192: #{grunet_forward.1} parent=0 // pred_region
    _
  $region193: #{grunet_forward.1} parent=0 // pred_fallthru
    _
  // Predicated region
  $region194: #{grunet_forward.1} parent=0 // pred_check
    _
  $region195: #{grunet_forward.1} parent=0 // pred_check_branch
    %209 = sbr.rel (0) target = $region197
  $region196: #{grunet_forward.1} parent=0 // pred_region
    _
  $region197: #{grunet_forward.1} parent=0 // pred_fallthru
    _
  // Predicated region
  $region198: #{grunet_forward.1} parent=0 // pred_check
    _
  $region199: #{grunet_forward.1} parent=0 // pred_check_branch
    %211 = sbr.rel (0) target = $region201
  $region200: #{grunet_forward.1} parent=0 // pred_region
    _
  $region201: #{grunet_forward.1} parent=0 // pred_fallthru
    _
  // Predicated region
  $region202: #{grunet_forward.1} parent=0 // pred_check
    _
  $region203: #{grunet_forward.1} parent=0 // pred_check_branch
    %213 = sbr.rel (0) target = $region205
  $region204: #{grunet_forward.1} parent=0 // pred_region
    _
  $region205: #{grunet_forward.1} parent=0 // pred_fallthru
    _
  // Predicated region
  $region206: #{grunet_forward.1} parent=0 // pred_check
    _
  $region207: #{grunet_forward.1} parent=0 // pred_check_branch
    %215 = sbr.rel (0) target = $region209
  $region208: #{grunet_forward.1} parent=0 // pred_region
    _
  $region209: #{grunet_forward.1} parent=0 // pred_fallthru
    _
  // Predicated region
  $region210: #{grunet_forward.1} parent=0 // pred_check
    _
  $region211: #{grunet_forward.1} parent=0 // pred_check_branch
    %217 = sbr.rel (0) target = $region213
  $region212: #{grunet_forward.1} parent=0 // pred_region
    _
  $region213: #{grunet_forward.1} parent=0 // pred_fallthru
    _
  %v219 = vld [vmem:[%s1] sm:$0xff]
  %v220 = vld [vmem:[%s1 + $0x8] sm:$0xff]
  %v221 = vld [vmem:[%s1 + $0x10] sm:$0xff]
  %v222 = vld [vmem:[%s1 + $0x18] sm:$0xff]
  %v223 = vld [vmem:[%s1 + $0x20] sm:$0xff]
  %v224 = vld [vmem:[%s1 + $0x28] sm:$0xff]
  %v225 = vld [vmem:[%s1 + $0x30] sm:$0xff]
  %v226 = vld [vmem:[%s1 + $0x38] sm:$0xff]
  %v227 = vld [vmem:[%s1 + $0x40] sm:$0xff]
  %v228 = vld [vmem:[%s1 + $0x48] sm:$0xff]
  %v229 = vld [vmem:[%s1 + $0x50] sm:$0xff]
  %v230 = vld [vmem:[%s1 + $0x58] sm:$0xff]
  %v231 = vld [vmem:[%s1 + $0x60] sm:$0xff]
  %v232 = vld [vmem:[%s1 + $0x68] sm:$0xff]
  %v233 = vld [vmem:[%s1 + $0x70] sm:$0xff]
  %v234 = vld [vmem:[%s1 + $0x78] sm:$0xff]
  %v235 = vld [vmem:[%s1 + $0x80] sm:$0xff]
  %v236 = vld [vmem:[%s1 + $0x88] sm:$0xff]
  %v237 = vld [vmem:[%s1 + $0x90] sm:$0xff]
  %v238 = vld [vmem:[%s1 + $0x98] sm:$0xff]
  %v239 = vld [vmem:[%s1 + $0xa0] sm:$0xff]
  %v240 = vld [vmem:[%s1 + $0xa8] sm:$0xff]
  %v241 = vld [vmem:[%s1 + $0xb0] sm:$0xff]
  %v242 = vld [vmem:[%s1 + $0xb8] sm:$0xff]
  %v243 = vld [vmem:[%s3] sm:$0x1]
  %245 = vset.pattern.permute.xlu0 0
  %246 = vperm.xlu0 %245, %v219
  %v247 = vpop.permute.xlu0 %246
  %250 = vset.pattern.permute.xlu0 0
  %251 = vperm.xlu0 %250, %v220
  %v252 = vpop.permute.xlu0 %251
  %255 = vset.pattern.permute.xlu0 0
  %256 = vperm.xlu0 %255, %v221
  %v257 = vpop.permute.xlu0 %256
  %260 = vset.pattern.permute.xlu0 0
  %261 = vperm.xlu0 %260, %v222
  %v262 = vpop.permute.xlu0 %261
  %265 = vset.pattern.permute.xlu0 0
  %266 = vperm.xlu0 %265, %v223
  %v267 = vpop.permute.xlu0 %266
  %270 = vset.pattern.permute.xlu0 0
  %271 = vperm.xlu0 %270, %v224
  %v272 = vpop.permute.xlu0 %271
  %275 = vset.pattern.permute.xlu0 0
  %276 = vperm.xlu0 %275, %v225
  %v277 = vpop.permute.xlu0 %276
  %280 = vset.pattern.permute.xlu0 0
  %281 = vperm.xlu0 %280, %v226
  %v282 = vpop.permute.xlu0 %281
  %285 = vset.pattern.permute.xlu0 0
  %286 = vperm.xlu0 %285, %v227
  %v287 = vpop.permute.xlu0 %286
  %290 = vset.pattern.permute.xlu0 0
  %291 = vperm.xlu0 %290, %v228
  %v292 = vpop.permute.xlu0 %291
  %295 = vset.pattern.permute.xlu0 0
  %296 = vperm.xlu0 %295, %v229
  %v297 = vpop.permute.xlu0 %296
  %300 = vset.pattern.permute.xlu0 0
  %301 = vperm.xlu0 %300, %v230
  %v302 = vpop.permute.xlu0 %301
  %305 = vset.pattern.permute.xlu0 0
  %306 = vperm.xlu0 %305, %v231
  %v307 = vpop.permute.xlu0 %306
  %310 = vset.pattern.permute.xlu0 0
  %311 = vperm.xlu0 %310, %v232
  %v312 = vpop.permute.xlu0 %311
  %315 = vset.pattern.permute.xlu0 0
  %316 = vperm.xlu0 %315, %v233
  %v317 = vpop.permute.xlu0 %316
  %320 = vset.pattern.permute.xlu0 0
  %321 = vperm.xlu0 %320, %v234
  %v322 = vpop.permute.xlu0 %321
  %325 = vset.pattern.permute.xlu0 0
  %326 = vperm.xlu0 %325, %v235
  %v327 = vpop.permute.xlu0 %326
  %330 = vset.pattern.permute.xlu0 0
  %331 = vperm.xlu0 %330, %v236
  %v332 = vpop.permute.xlu0 %331
  %335 = vset.pattern.permute.xlu0 0
  %336 = vperm.xlu0 %335, %v237
  %v337 = vpop.permute.xlu0 %336
  %340 = vset.pattern.permute.xlu0 0
  %341 = vperm.xlu0 %340, %v238
  %v342 = vpop.permute.xlu0 %341
  %345 = vset.pattern.permute.xlu0 0
  %346 = vperm.xlu0 %345, %v239
  %v347 = vpop.permute.xlu0 %346
  %350 = vset.pattern.permute.xlu0 0
  %351 = vperm.xlu0 %350, %v240
  %v352 = vpop.permute.xlu0 %351
  %355 = vset.pattern.permute.xlu0 0
  %356 = vperm.xlu0 %355, %v241
  %v357 = vpop.permute.xlu0 %356
  %360 = vset.pattern.permute.xlu0 0
  %361 = vperm.xlu0 %360, %v242
  %v362 = vpop.permute.xlu0 %361
  %v364 = vperm.slane %v243, 0
  %v365 = vmul.f32 %v247, %v364
  %v366 = vmul.f32 %v252, %v364
  %v367 = vmul.f32 %v257, %v364
  %v368 = vmul.f32 %v262, %v364
  %v369 = vmul.f32 %v267, %v364
  %v370 = vmul.f32 %v272, %v364
  %v371 = vmul.f32 %v277, %v364
  %v372 = vmul.f32 %v282, %v364
  %v373 = vmul.f32 %v287, %v364
  %v374 = vmul.f32 %v292, %v364
  %v375 = vmul.f32 %v297, %v364
  %v376 = vmul.f32 %v302, %v364
  %v377 = vmul.f32 %v307, %v364
  %v378 = vmul.f32 %v312, %v364
  %v379 = vmul.f32 %v317, %v364
  %v380 = vmul.f32 %v322, %v364
  %v381 = vmul.f32 %v327, %v364
  %v382 = vmul.f32 %v332, %v364
  %v383 = vmul.f32 %v337, %v364
  %v384 = vmul.f32 %v342, %v364
  %v385 = vmul.f32 %v347, %v364
  %v386 = vmul.f32 %v352, %v364
  %v387 = vmul.f32 %v357, %v364
  %v388 = vmul.f32 %v362, %v364
  %v389 = vld [vmem:[%s1 + $0x18] sm:$0xff]
  %v390 = vld [vmem:[%s1 + $0x20] sm:$0xff]
  %v391 = vld [vmem:[%s1 + $0x28] sm:$0xff]
  %v392 = vld [vmem:[%s1 + $0x30] sm:$0xff]
  %v393 = vld [vmem:[%s1 + $0x38] sm:$0xff]
  %v394 = vld [vmem:[%s1 + $0x40] sm:$0xff]
  %v395 = vld [vmem:[%s1 + $0x48] sm:$0xff]
  %v396 = vld [vmem:[%s1 + $0x50] sm:$0xff]
  %v397 = vld [vmem:[%s1 + $0x58] sm:$0xff]
  %v398 = vld [vmem:[%s1 + $0x60] sm:$0xff]
  %v399 = vld [vmem:[%s1 + $0x68] sm:$0xff]
  %v400 = vld [vmem:[%s1 + $0x70] sm:$0xff]
  %v401 = vld [vmem:[%s1 + $0x78] sm:$0xff]
  %v402 = vld [vmem:[%s1 + $0x80] sm:$0xff]
  %v403 = vld [vmem:[%s1 + $0x88] sm:$0xff]
  %v404 = vld [vmem:[%s1 + $0x90] sm:$0xff]
  %v405 = vld [vmem:[%s1 + $0x98] sm:$0xff]
  %v406 = vld [vmem:[%s1 + $0xa0] sm:$0xff]
  %v407 = vld [vmem:[%s1 + $0xa8] sm:$0xff]
  %v408 = vld [vmem:[%s1 + $0xb0] sm:$0xff]
  %v409 = vld [vmem:[%s1 + $0xb8] sm:$0xff]
  %v410 = vld [vmem:[%s1 + $0xc0] sm:$0xff]
  %v411 = vld [vmem:[%s1 + $0xc8] sm:$0xff]
  %v412 = vld [vmem:[%s1 + $0xd0] sm:$0xff]
  %v413 = vld [vmem:[%s3 + $0x1] sm:$0x1]
  %415 = vset.pattern.permute.xlu0 0
  %416 = vperm.xlu0 %415, %v389
  %v417 = vpop.permute.xlu0 %416
  %420 = vset.pattern.permute.xlu0 0
  %421 = vperm.xlu0 %420, %v390
  %v422 = vpop.permute.xlu0 %421
  %425 = vset.pattern.permute.xlu0 0
  %426 = vperm.xlu0 %425, %v391
  %v427 = vpop.permute.xlu0 %426
  %430 = vset.pattern.permute.xlu0 0
  %431 = vperm.xlu0 %430, %v392
  %v432 = vpop.permute.xlu0 %431
  %435 = vset.pattern.permute.xlu0 0
  %436 = vperm.xlu0 %435, %v393
  %v437 = vpop.permute.xlu0 %436
  %440 = vset.pattern.permute.xlu0 0
  %441 = vperm.xlu0 %440, %v394
  %v442 = vpop.permute.xlu0 %441
  %445 = vset.pattern.permute.xlu0 0
  %446 = vperm.xlu0 %445, %v395
  %v447 = vpop.permute.xlu0 %446
  %450 = vset.pattern.permute.xlu0 0
  %451 = vperm.xlu0 %450, %v396
  %v452 = vpop.permute.xlu0 %451
  %455 = vset.pattern.permute.xlu0 0
  %456 = vperm.xlu0 %455, %v397
  %v457 = vpop.permute.xlu0 %456
  %460 = vset.pattern.permute.xlu0 0
  %461 = vperm.xlu0 %460, %v398
  %v462 = vpop.permute.xlu0 %461
  %465 = vset.pattern.permute.xlu0 0
  %466 = vperm.xlu0 %465, %v399
  %v467 = vpop.permute.xlu0 %466
  %470 = vset.pattern.permute.xlu0 0
  %471 = vperm.xlu0 %470, %v400
  %v472 = vpop.permute.xlu0 %471
  %475 = vset.pattern.permute.xlu0 0
  %476 = vperm.xlu0 %475, %v401
  %v477 = vpop.permute.xlu0 %476
  %480 = vset.pattern.permute.xlu0 0
  %481 = vperm.xlu0 %480, %v402
  %v482 = vpop.permute.xlu0 %481
  %485 = vset.pattern.permute.xlu0 0
  %486 = vperm.xlu0 %485, %v403
  %v487 = vpop.permute.xlu0 %486
  %490 = vset.pattern.permute.xlu0 0
  %491 = vperm.xlu0 %490, %v404
  %v492 = vpop.permute.xlu0 %491
  %495 = vset.pattern.permute.xlu0 0
  %496 = vperm.xlu0 %495, %v405
  %v497 = vpop.permute.xlu0 %496
  %500 = vset.pattern.permute.xlu0 0
  %501 = vperm.xlu0 %500, %v406
  %v502 = vpop.permute.xlu0 %501
  %505 = vset.pattern.permute.xlu0 0
  %506 = vperm.xlu0 %505, %v407
  %v507 = vpop.permute.xlu0 %506
  %510 = vset.pattern.permute.xlu0 0
  %511 = vperm.xlu0 %510, %v408
  %v512 = vpop.permute.xlu0 %511
  %515 = vset.pattern.permute.xlu0 0
  %516 = vperm.xlu0 %515, %v409
  %v517 = vpop.permute.xlu0 %516
  %520 = vset.pattern.permute.xlu0 0
  %521 = vperm.xlu0 %520, %v410
  %v522 = vpop.permute.xlu0 %521
  %525 = vset.pattern.permute.xlu0 0
  %526 = vperm.xlu0 %525, %v411
  %v527 = vpop.permute.xlu0 %526
  %530 = vset.pattern.permute.xlu0 0
  %531 = vperm.xlu0 %530, %v412
  %v532 = vpop.permute.xlu0 %531
  %v534 = vperm.slane %v413, 0
  %v535 = vmul.f32 %v417, %v534
  %v536 = vmul.f32 %v422, %v534
  %v537 = vmul.f32 %v427, %v534
  %v538 = vmul.f32 %v432, %v534
  %v539 = vmul.f32 %v437, %v534
  %v540 = vmul.f32 %v442, %v534
  %v541 = vmul.f32 %v447, %v534
  %v542 = vmul.f32 %v452, %v534
  %v543 = vmul.f32 %v457, %v534
  %v544 = vmul.f32 %v462, %v534
  %v545 = vmul.f32 %v467, %v534
  %v546 = vmul.f32 %v472, %v534
  %v547 = vmul.f32 %v477, %v534
  %v548 = vmul.f32 %v482, %v534
  %v549 = vmul.f32 %v487, %v534
  %v550 = vmul.f32 %v492, %v534
  %v551 = vmul.f32 %v497, %v534
  %v552 = vmul.f32 %v502, %v534
  %v553 = vmul.f32 %v507, %v534
  %v554 = vmul.f32 %v512, %v534
  %v555 = vmul.f32 %v517, %v534
  %v556 = vmul.f32 %v522, %v534
  %v557 = vmul.f32 %v527, %v534
  %v558 = vmul.f32 %v532, %v534
  %v559 = vadd.f32 %v365, %v535
  %v560 = vadd.f32 %v366, %v536
  %v561 = vadd.f32 %v367, %v537
  %v562 = vadd.f32 %v368, %v538
  %v563 = vadd.f32 %v369, %v539
  %v564 = vadd.f32 %v370, %v540
  %v565 = vadd.f32 %v371, %v541
  %v566 = vadd.f32 %v372, %v542
  %v567 = vadd.f32 %v373, %v543
  %v568 = vadd.f32 %v374, %v544
  %v569 = vadd.f32 %v375, %v545
  %v570 = vadd.f32 %v376, %v546
  %v571 = vadd.f32 %v377, %v547
  %v572 = vadd.f32 %v378, %v548
  %v573 = vadd.f32 %v379, %v549
  %v574 = vadd.f32 %v380, %v550
  %v575 = vadd.f32 %v381, %v551
  %v576 = vadd.f32 %v382, %v552
  %v577 = vadd.f32 %v383, %v553
  %v578 = vadd.f32 %v384, %v554
  %v579 = vadd.f32 %v385, %v555
  %v580 = vadd.f32 %v386, %v556
  %v581 = vadd.f32 %v387, %v557
  %v582 = vadd.f32 %v388, %v558
  %v583 = vld [vmem:[%s1 + $0x30] sm:$0xff]
  %v584 = vld [vmem:[%s1 + $0x38] sm:$0xff]
  %v585 = vld [vmem:[%s1 + $0x40] sm:$0xff]
  %v586 = vld [vmem:[%s1 + $0x48] sm:$0xff]
  %v587 = vld [vmem:[%s1 + $0x50] sm:$0xff]
  %v588 = vld [vmem:[%s1 + $0x58] sm:$0xff]
  %v589 = vld [vmem:[%s1 + $0x60] sm:$0xff]
  %v590 = vld [vmem:[%s1 + $0x68] sm:$0xff]
  %v591 = vld [vmem:[%s1 + $0x70] sm:$0xff]
  %v592 = vld [vmem:[%s1 + $0x78] sm:$0xff]
  %v593 = vld [vmem:[%s1 + $0x80] sm:$0xff]
  %v594 = vld [vmem:[%s1 + $0x88] sm:$0xff]
  %v595 = vld [vmem:[%s1 + $0x90] sm:$0xff]
  %v596 = vld [vmem:[%s1 + $0x98] sm:$0xff]
  %v597 = vld [vmem:[%s1 + $0xa0] sm:$0xff]
  %v598 = vld [vmem:[%s1 + $0xa8] sm:$0xff]
  %v599 = vld [vmem:[%s1 + $0xb0] sm:$0xff]
  %v600 = vld [vmem:[%s1 + $0xb8] sm:$0xff]
  %v601 = vld [vmem:[%s1 + $0xc0] sm:$0xff]
  %v602 = vld [vmem:[%s1 + $0xc8] sm:$0xff]
  %v603 = vld [vmem:[%s1 + $0xd0] sm:$0xff]
  %v604 = vld [vmem:[%s1 + $0xd8] sm:$0xff]
  %v605 = vld [vmem:[%s1 + $0xe0] sm:$0xff]
  %v606 = vld [vmem:[%s1 + $0xe8] sm:$0xff]
  %v607 = vld [vmem:[%s3 + $0x2] sm:$0x1]
  %609 = vset.pattern.permute.xlu0 0
  %610 = vperm.xlu0 %609, %v583
  %v611 = vpop.permute.xlu0 %610
  %614 = vset.pattern.permute.xlu0 0
  %615 = vperm.xlu0 %614, %v584
  %v616 = vpop.permute.xlu0 %615
  %619 = vset.pattern.permute.xlu0 0
  %620 = vperm.xlu0 %619, %v585
  %v621 = vpop.permute.xlu0 %620
  %624 = vset.pattern.permute.xlu0 0
  %625 = vperm.xlu0 %624, %v586
  %v626 = vpop.permute.xlu0 %625
  %629 = vset.pattern.permute.xlu0 0
  %630 = vperm.xlu0 %629, %v587
  %v631 = vpop.permute.xlu0 %630
  %634 = vset.pattern.permute.xlu0 0
  %635 = vperm.xlu0 %634, %v588
  %v636 = vpop.permute.xlu0 %635
  %639 = vset.pattern.permute.xlu0 0
  %640 = vperm.xlu0 %639, %v589
  %v641 = vpop.permute.xlu0 %640
  %644 = vset.pattern.permute.xlu0 0
  %645 = vperm.xlu0 %644, %v590
  %v646 = vpop.permute.xlu0 %645
  %649 = vset.pattern.permute.xlu0 0
  %650 = vperm.xlu0 %649, %v591
  %v651 = vpop.permute.xlu0 %650
  %654 = vset.pattern.permute.xlu0 0
  %655 = vperm.xlu0 %654, %v592
  %v656 = vpop.permute.xlu0 %655
  %659 = vset.pattern.permute.xlu0 0
  %660 = vperm.xlu0 %659, %v593
  %v661 = vpop.permute.xlu0 %660
  %664 = vset.pattern.permute.xlu0 0
  %665 = vperm.xlu0 %664, %v594
  %v666 = vpop.permute.xlu0 %665
  %669 = vset.pattern.permute.xlu0 0
  %670 = vperm.xlu0 %669, %v595
  %v671 = vpop.permute.xlu0 %670
  %674 = vset.pattern.permute.xlu0 0
  %675 = vperm.xlu0 %674, %v596
  %v676 = vpop.permute.xlu0 %675
  %679 = vset.pattern.permute.xlu0 0
  %680 = vperm.xlu0 %679, %v597
  %v681 = vpop.permute.xlu0 %680
  %684 = vset.pattern.permute.xlu0 0
  %685 = vperm.xlu0 %684, %v598
  %v686 = vpop.permute.xlu0 %685
  %689 = vset.pattern.permute.xlu0 0
  %690 = vperm.xlu0 %689, %v599
  %v691 = vpop.permute.xlu0 %690
  %694 = vset.pattern.permute.xlu0 0
  %695 = vperm.xlu0 %694, %v600
  %v696 = vpop.permute.xlu0 %695
  %699 = vset.pattern.permute.xlu0 0
  %700 = vperm.xlu0 %699, %v601
  %v701 = vpop.permute.xlu0 %700
  %704 = vset.pattern.permute.xlu0 0
  %705 = vperm.xlu0 %704, %v602
  %v706 = vpop.permute.xlu0 %705
  %709 = vset.pattern.permute.xlu0 0
  %710 = vperm.xlu0 %709, %v603
  %v711 = vpop.permute.xlu0 %710
  %714 = vset.pattern.permute.xlu0 0
  %715 = vperm.xlu0 %714, %v604
  %v716 = vpop.permute.xlu0 %715
  %719 = vset.pattern.permute.xlu0 0
  %720 = vperm.xlu0 %719, %v605
  %v721 = vpop.permute.xlu0 %720
  %724 = vset.pattern.permute.xlu0 0
  %725 = vperm.xlu0 %724, %v606
  %v726 = vpop.permute.xlu0 %725
  %v728 = vperm.slane %v607, 0
  %v729 = vmul.f32 %v611, %v728
  %v730 = vmul.f32 %v616, %v728
  %v731 = vmul.f32 %v621, %v728
  %v732 = vmul.f32 %v626, %v728
  %v733 = vmul.f32 %v631, %v728
  %v734 = vmul.f32 %v636, %v728
  %v735 = vmul.f32 %v641, %v728
  %v736 = vmul.f32 %v646, %v728
  %v737 = vmul.f32 %v651, %v728
  %v738 = vmul.f32 %v656, %v728
  %v739 = vmul.f32 %v661, %v728
  %v740 = vmul.f32 %v666, %v728
  %v741 = vmul.f32 %v671, %v728
  %v742 = vmul.f32 %v676, %v728
  %v743 = vmul.f32 %v681, %v728
  %v744 = vmul.f32 %v686, %v728
  %v745 = vmul.f32 %v691, %v728
  %v746 = vmul.f32 %v696, %v728
  %v747 = vmul.f32 %v701, %v728
  %v748 = vmul.f32 %v706, %v728
  %v749 = vmul.f32 %v711, %v728
  %v750 = vmul.f32 %v716, %v728
  %v751 = vmul.f32 %v721, %v728
  %v752 = vmul.f32 %v726, %v728
  %v753 = vadd.f32 %v559, %v729
  %v754 = vadd.f32 %v560, %v730
  %v755 = vadd.f32 %v561, %v731
  %v756 = vadd.f32 %v562, %v732
  %v757 = vadd.f32 %v563, %v733
  %v758 = vadd.f32 %v564, %v734
  %v759 = vadd.f32 %v565, %v735
  %v760 = vadd.f32 %v566, %v736
  %v761 = vadd.f32 %v567, %v737
  %v762 = vadd.f32 %v568, %v738
  %v763 = vadd.f32 %v569, %v739
  %v764 = vadd.f32 %v570, %v740
  %v765 = vadd.f32 %v571, %v741
  %v766 = vadd.f32 %v572, %v742
  %v767 = vadd.f32 %v573, %v743
  %v768 = vadd.f32 %v574, %v744
  %v769 = vadd.f32 %v575, %v745
  %v770 = vadd.f32 %v576, %v746
  %v771 = vadd.f32 %v577, %v747
  %v772 = vadd.f32 %v578, %v748
  %v773 = vadd.f32 %v579, %v749
  %v774 = vadd.f32 %v580, %v750
  %v775 = vadd.f32 %v581, %v751
  %v776 = vadd.f32 %v582, %v752
  %v777 = vld [vmem:[%s1 + $0x48] sm:$0xff]
  %v778 = vld [vmem:[%s1 + $0x50] sm:$0xff]
  %v779 = vld [vmem:[%s1 + $0x58] sm:$0xff]
  %v780 = vld [vmem:[%s1 + $0x60] sm:$0xff]
  %v781 = vld [vmem:[%s1 + $0x68] sm:$0xff]
  %v782 = vld [vmem:[%s1 + $0x70] sm:$0xff]
  %v783 = vld [vmem:[%s1 + $0x78] sm:$0xff]
  %v784 = vld [vmem:[%s1 + $0x80] sm:$0xff]
  %v785 = vld [vmem:[%s1 + $0x88] sm:$0xff]
  %v786 = vld [vmem:[%s1 + $0x90] sm:$0xff]
  %v787 = vld [vmem:[%s1 + $0x98] sm:$0xff]
  %v788 = vld [vmem:[%s1 + $0xa0] sm:$0xff]
  %v789 = vld [vmem:[%s1 + $0xa8] sm:$0xff]
  %v790 = vld [vmem:[%s1 + $0xb0] sm:$0xff]
  %v791 = vld [vmem:[%s1 + $0xb8] sm:$0xff]
  %v792 = vld [vmem:[%s1 + $0xc0] sm:$0xff]
  %v793 = vld [vmem:[%s1 + $0xc8] sm:$0xff]
  %v794 = vld [vmem:[%s1 + $0xd0] sm:$0xff]
  %v795 = vld [vmem:[%s1 + $0xd8] sm:$0xff]
  %v796 = vld [vmem:[%s1 + $0xe0] sm:$0xff]
  %v797 = vld [vmem:[%s1 + $0xe8] sm:$0xff]
  %v798 = vld [vmem:[%s1 + $0xf0] sm:$0xff]
  %v799 = vld [vmem:[%s1 + $0xf8] sm:$0xff]
  %v800 = vld [vmem:[%s1 + $0x100] sm:$0xff]
  %v801 = vld [vmem:[%s3 + $0x3] sm:$0x1]
  %803 = vset.pattern.permute.xlu0 0
  %804 = vperm.xlu0 %803, %v777
  %v805 = vpop.permute.xlu0 %804
  %808 = vset.pattern.permute.xlu0 0
  %809 = vperm.xlu0 %808, %v778
  %v810 = vpop.permute.xlu0 %809
  %813 = vset.pattern.permute.xlu0 0
  %814 = vperm.xlu0 %813, %v779
  %v815 = vpop.permute.xlu0 %814
  %818 = vset.pattern.permute.xlu0 0
  %819 = vperm.xlu0 %818, %v780
  %v820 = vpop.permute.xlu0 %819
  %823 = vset.pattern.permute.xlu0 0
  %824 = vperm.xlu0 %823, %v781
  %v825 = vpop.permute.xlu0 %824
  %828 = vset.pattern.permute.xlu0 0
  %829 = vperm.xlu0 %828, %v782
  %v830 = vpop.permute.xlu0 %829
  %833 = vset.pattern.permute.xlu0 0
  %834 = vperm.xlu0 %833, %v783
  %v835 = vpop.permute.xlu0 %834
  %838 = vset.pattern.permute.xlu0 0
  %839 = vperm.xlu0 %838, %v784
  %v840 = vpop.permute.xlu0 %839
  %843 = vset.pattern.permute.xlu0 0
  %844 = vperm.xlu0 %843, %v785
  %v845 = vpop.permute.xlu0 %844
  %848 = vset.pattern.permute.xlu0 0
  %849 = vperm.xlu0 %848, %v786
  %v850 = vpop.permute.xlu0 %849
  %853 = vset.pattern.permute.xlu0 0
  %854 = vperm.xlu0 %853, %v787
  %v855 = vpop.permute.xlu0 %854
  %858 = vset.pattern.permute.xlu0 0
  %859 = vperm.xlu0 %858, %v788
  %v860 = vpop.permute.xlu0 %859
  %863 = vset.pattern.permute.xlu0 0
  %864 = vperm.xlu0 %863, %v789
  %v865 = vpop.permute.xlu0 %864
  %868 = vset.pattern.permute.xlu0 0
  %869 = vperm.xlu0 %868, %v790
  %v870 = vpop.permute.xlu0 %869
  %873 = vset.pattern.permute.xlu0 0
  %874 = vperm.xlu0 %873, %v791
  %v875 = vpop.permute.xlu0 %874
  %878 = vset.pattern.permute.xlu0 0
  %879 = vperm.xlu0 %878, %v792
  %v880 = vpop.permute.xlu0 %879
  %883 = vset.pattern.permute.xlu0 0
  %884 = vperm.xlu0 %883, %v793
  %v885 = vpop.permute.xlu0 %884
  %888 = vset.pattern.permute.xlu0 0
  %889 = vperm.xlu0 %888, %v794
  %v890 = vpop.permute.xlu0 %889
  %893 = vset.pattern.permute.xlu0 0
  %894 = vperm.xlu0 %893, %v795
  %v895 = vpop.permute.xlu0 %894
  %898 = vset.pattern.permute.xlu0 0
  %899 = vperm.xlu0 %898, %v796
  %v900 = vpop.permute.xlu0 %899
  %903 = vset.pattern.permute.xlu0 0
  %904 = vperm.xlu0 %903, %v797
  %v905 = vpop.permute.xlu0 %904
  %908 = vset.pattern.permute.xlu0 0
  %909 = vperm.xlu0 %908, %v798
  %v910 = vpop.permute.xlu0 %909
  %913 = vset.pattern.permute.xlu0 0
  %914 = vperm.xlu0 %913, %v799
  %v915 = vpop.permute.xlu0 %914
  %918 = vset.pattern.permute.xlu0 0
  %919 = vperm.xlu0 %918, %v800
  %v920 = vpop.permute.xlu0 %919
  %v922 = vperm.slane %v801, 0
  %v923 = vmul.f32 %v805, %v922
  %v924 = vmul.f32 %v810, %v922
  %v925 = vmul.f32 %v815, %v922
  %v926 = vmul.f32 %v820, %v922
  %v927 = vmul.f32 %v825, %v922
  %v928 = vmul.f32 %v830, %v922
  %v929 = vmul.f32 %v835, %v922
  %v930 = vmul.f32 %v840, %v922
  %v931 = vmul.f32 %v845, %v922
  %v932 = vmul.f32 %v850, %v922
  %v933 = vmul.f32 %v855, %v922
  %v934 = vmul.f32 %v860, %v922
  %v935 = vmul.f32 %v865, %v922
  %v936 = vmul.f32 %v870, %v922
  %v937 = vmul.f32 %v875, %v922
  %v938 = vmul.f32 %v880, %v922
  %v939 = vmul.f32 %v885, %v922
  %v940 = vmul.f32 %v890, %v922
  %v941 = vmul.f32 %v895, %v922
  %v942 = vmul.f32 %v900, %v922
  %v943 = vmul.f32 %v905, %v922
  %v944 = vmul.f32 %v910, %v922
  %v945 = vmul.f32 %v915, %v922
  %v946 = vmul.f32 %v920, %v922
  %v947 = vadd.f32 %v753, %v923
  %v948 = vadd.f32 %v754, %v924
  %v949 = vadd.f32 %v755, %v925
  %v950 = vadd.f32 %v756, %v926
  %v951 = vadd.f32 %v757, %v927
  %v952 = vadd.f32 %v758, %v928
  %v953 = vadd.f32 %v759, %v929
  %v954 = vadd.f32 %v760, %v930
  %v955 = vadd.f32 %v761, %v931
  %v956 = vadd.f32 %v762, %v932
  %v957 = vadd.f32 %v763, %v933
  %v958 = vadd.f32 %v764, %v934
  %v959 = vadd.f32 %v765, %v935
  %v960 = vadd.f32 %v766, %v936
  %v961 = vadd.f32 %v767, %v937
  %v962 = vadd.f32 %v768, %v938
  %v963 = vadd.f32 %v769, %v939
  %v964 = vadd.f32 %v770, %v940
  %v965 = vadd.f32 %v771, %v941
  %v966 = vadd.f32 %v772, %v942
  %v967 = vadd.f32 %v773, %v943
  %v968 = vadd.f32 %v774, %v944
  %v969 = vadd.f32 %v775, %v945
  %v970 = vadd.f32 %v776, %v946
  %v971 = vld [vmem:[%s1 + $0x60] sm:$0xff]
  %v972 = vld [vmem:[%s1 + $0x68] sm:$0xff]
  %v973 = vld [vmem:[%s1 + $0x70] sm:$0xff]
  %v974 = vld [vmem:[%s1 + $0x78] sm:$0xff]
  %v975 = vld [vmem:[%s1 + $0x80] sm:$0xff]
  %v976 = vld [vmem:[%s1 + $0x88] sm:$0xff]
  %v977 = vld [vmem:[%s1 + $0x90] sm:$0xff]
  %v978 = vld [vmem:[%s1 + $0x98] sm:$0xff]
  %v979 = vld [vmem:[%s1 + $0xa0] sm:$0xff]
  %v980 = vld [vmem:[%s1 + $0xa8] sm:$0xff]
  %v981 = vld [vmem:[%s1 + $0xb0] sm:$0xff]
  %v982 = vld [vmem:[%s1 + $0xb8] sm:$0xff]
  %v983 = vld [vmem:[%s1 + $0xc0] sm:$0xff]
  %v984 = vld [vmem:[%s1 + $0xc8] sm:$0xff]
  %v985 = vld [vmem:[%s1 + $0xd0] sm:$0xff]
  %v986 = vld [vmem:[%s1 + $0xd8] sm:$0xff]
  %v987 = vld [vmem:[%s1 + $0xe0] sm:$0xff]
  %v988 = vld [vmem:[%s1 + $0xe8] sm:$0xff]
  %v989 = vld [vmem:[%s1 + $0xf0] sm:$0xff]
  %v990 = vld [vmem:[%s1 + $0xf8] sm:$0xff]
  %v991 = vld [vmem:[%s1 + $0x100] sm:$0xff]
  %v992 = vld [vmem:[%s1 + $0x108] sm:$0xff]
  %v993 = vld [vmem:[%s1 + $0x110] sm:$0xff]
  %v994 = vld [vmem:[%s1 + $0x118] sm:$0xff]
  %v995 = vld [vmem:[%s3 + $0x4] sm:$0x1]
  %997 = vset.pattern.permute.xlu0 0
  %998 = vperm.xlu0 %997, %v971
  %v999 = vpop.permute.xlu0 %998
  %1002 = vset.pattern.permute.xlu0 0
  %1003 = vperm.xlu0 %1002, %v972
  %v1004 = vpop.permute.xlu0 %1003
  %1007 = vset.pattern.permute.xlu0 0
  %1008 = vperm.xlu0 %1007, %v973
  %v1009 = vpop.permute.xlu0 %1008
  %1012 = vset.pattern.permute.xlu0 0
  %1013 = vperm.xlu0 %1012, %v974
  %v1014 = vpop.permute.xlu0 %1013
  %1017 = vset.pattern.permute.xlu0 0
  %1018 = vperm.xlu0 %1017, %v975
  %v1019 = vpop.permute.xlu0 %1018
  %1022 = vset.pattern.permute.xlu0 0
  %1023 = vperm.xlu0 %1022, %v976
  %v1024 = vpop.permute.xlu0 %1023
  %1027 = vset.pattern.permute.xlu0 0
  %1028 = vperm.xlu0 %1027, %v977
  %v1029 = vpop.permute.xlu0 %1028
  %1032 = vset.pattern.permute.xlu0 0
  %1033 = vperm.xlu0 %1032, %v978
  %v1034 = vpop.permute.xlu0 %1033
  %1037 = vset.pattern.permute.xlu0 0
  %1038 = vperm.xlu0 %1037, %v979
  %v1039 = vpop.permute.xlu0 %1038
  %1042 = vset.pattern.permute.xlu0 0
  %1043 = vperm.xlu0 %1042, %v980
  %v1044 = vpop.permute.xlu0 %1043
  %1047 = vset.pattern.permute.xlu0 0
  %1048 = vperm.xlu0 %1047, %v981
  %v1049 = vpop.permute.xlu0 %1048
  %1052 = vset.pattern.permute.xlu0 0
  %1053 = vperm.xlu0 %1052, %v982
  %v1054 = vpop.permute.xlu0 %1053
  %1057 = vset.pattern.permute.xlu0 0
  %1058 = vperm.xlu0 %1057, %v983
  %v1059 = vpop.permute.xlu0 %1058
  %1062 = vset.pattern.permute.xlu0 0
  %1063 = vperm.xlu0 %1062, %v984
  %v1064 = vpop.permute.xlu0 %1063
  %1067 = vset.pattern.permute.xlu0 0
  %1068 = vperm.xlu0 %1067, %v985
  %v1069 = vpop.permute.xlu0 %1068
  %1072 = vset.pattern.permute.xlu0 0
  %1073 = vperm.xlu0 %1072, %v986
  %v1074 = vpop.permute.xlu0 %1073
  %1077 = vset.pattern.permute.xlu0 0
  %1078 = vperm.xlu0 %1077, %v987
  %v1079 = vpop.permute.xlu0 %1078
  %1082 = vset.pattern.permute.xlu0 0
  %1083 = vperm.xlu0 %1082, %v988
  %v1084 = vpop.permute.xlu0 %1083
  %1087 = vset.pattern.permute.xlu0 0
  %1088 = vperm.xlu0 %1087, %v989
  %v1089 = vpop.permute.xlu0 %1088
  %1092 = vset.pattern.permute.xlu0 0
  %1093 = vperm.xlu0 %1092, %v990
  %v1094 = vpop.permute.xlu0 %1093
  %1097 = vset.pattern.permute.xlu0 0
  %1098 = vperm.xlu0 %1097, %v991
  %v1099 = vpop.permute.xlu0 %1098
  %1102 = vset.pattern.permute.xlu0 0
  %1103 = vperm.xlu0 %1102, %v992
  %v1104 = vpop.permute.xlu0 %1103
  %1107 = vset.pattern.permute.xlu0 0
  %1108 = vperm.xlu0 %1107, %v993
  %v1109 = vpop.permute.xlu0 %1108
  %1112 = vset.pattern.permute.xlu0 0
  %1113 = vperm.xlu0 %1112, %v994
  %v1114 = vpop.permute.xlu0 %1113
  %v1116 = vperm.slane %v995, 0
  %v1117 = vmul.f32 %v999, %v1116
  %v1118 = vmul.f32 %v1004, %v1116
  %v1119 = vmul.f32 %v1009, %v1116
  %v1120 = vmul.f32 %v1014, %v1116
  %v1121 = vmul.f32 %v1019, %v1116
  %v1122 = vmul.f32 %v1024, %v1116
  %v1123 = vmul.f32 %v1029, %v1116
  %v1124 = vmul.f32 %v1034, %v1116
  %v1125 = vmul.f32 %v1039, %v1116
  %v1126 = vmul.f32 %v1044, %v1116
  %v1127 = vmul.f32 %v1049, %v1116
  %v1128 = vmul.f32 %v1054, %v1116
  %v1129 = vmul.f32 %v1059, %v1116
  %v1130 = vmul.f32 %v1064, %v1116
  %v1131 = vmul.f32 %v1069, %v1116
  %v1132 = vmul.f32 %v1074, %v1116
  %v1133 = vmul.f32 %v1079, %v1116
  %v1134 = vmul.f32 %v1084, %v1116
  %v1135 = vmul.f32 %v1089, %v1116
  %v1136 = vmul.f32 %v1094, %v1116
  %v1137 = vmul.f32 %v1099, %v1116
  %v1138 = vmul.f32 %v1104, %v1116
  %v1139 = vmul.f32 %v1109, %v1116
  %v1140 = vmul.f32 %v1114, %v1116
  %v1141 = vadd.f32 %v947, %v1117
  %v1142 = vadd.f32 %v948, %v1118
  %v1143 = vadd.f32 %v949, %v1119
  %v1144 = vadd.f32 %v950, %v1120
  %v1145 = vadd.f32 %v951, %v1121
  %v1146 = vadd.f32 %v952, %v1122
  %v1147 = vadd.f32 %v953, %v1123
  %v1148 = vadd.f32 %v954, %v1124
  %v1149 = vadd.f32 %v955, %v1125
  %v1150 = vadd.f32 %v956, %v1126
  %v1151 = vadd.f32 %v957, %v1127
  %v1152 = vadd.f32 %v958, %v1128
  %v1153 = vadd.f32 %v959, %v1129
  %v1154 = vadd.f32 %v960, %v1130
  %v1155 = vadd.f32 %v961, %v1131
  %v1156 = vadd.f32 %v962, %v1132
  %v1157 = vadd.f32 %v963, %v1133
  %v1158 = vadd.f32 %v964, %v1134
  %v1159 = vadd.f32 %v965, %v1135
  %v1160 = vadd.f32 %v966, %v1136
  %v1161 = vadd.f32 %v967, %v1137
  %v1162 = vadd.f32 %v968, %v1138
  %v1163 = vadd.f32 %v969, %v1139
  %v1164 = vadd.f32 %v970, %v1140
  %1165 = vst [vmem:[#allocation2] sm:$0xff] %v1141
  %1166 = vst [vmem:[#allocation2 + $0x8] sm:$0xff] %v1142
  %1167 = vst [vmem:[#allocation2 + $0x10] sm:$0xff] %v1143
  %1168 = vst [vmem:[#allocation2 + $0x18] sm:$0xff] %v1144
  %1169 = vst [vmem:[#allocation2 + $0x20] sm:$0xff] %v1145
  %1170 = vst [vmem:[#allocation2 + $0x28] sm:$0xff] %v1146
  %1171 = vst [vmem:[#allocation2 + $0x30] sm:$0xff] %v1147
  %1172 = vst [vmem:[#allocation2 + $0x38] sm:$0xff] %v1148
  %1173 = vst [vmem:[#allocation2 + $0x40] sm:$0xff] %v1149
  %1174 = vst [vmem:[#allocation2 + $0x48] sm:$0xff] %v1150
  %1175 = vst [vmem:[#allocation2 + $0x50] sm:$0xff] %v1151
  %1176 = vst [vmem:[#allocation2 + $0x58] sm:$0xff] %v1152
  %1177 = vst [vmem:[#allocation2 + $0x60] sm:$0xff] %v1153
  %1178 = vst [vmem:[#allocation2 + $0x68] sm:$0xff] %v1154
  %1179 = vst [vmem:[#allocation2 + $0x70] sm:$0xff] %v1155
  %1180 = vst [vmem:[#allocation2 + $0x78] sm:$0xff] %v1156
  %1181 = vst [vmem:[#allocation2 + $0x80] sm:$0xff] %v1157
  %1182 = vst [vmem:[#allocation2 + $0x88] sm:$0xff] %v1158
  %1183 = vst [vmem:[#allocation2 + $0x90] sm:$0xff] %v1159
  %1184 = vst [vmem:[#allocation2 + $0x98] sm:$0xff] %v1160
  %1185 = vst [vmem:[#allocation2 + $0xa0] sm:$0xff] %v1161
  %1186 = vst [vmem:[#allocation2 + $0xa8] sm:$0xff] %v1162
  %1187 = vst [vmem:[#allocation2 + $0xb0] sm:$0xff] %v1163
  %1188 = vst [vmem:[#allocation2 + $0xb8] sm:$0xff] %v1164
  %v1189 = vld [vmem:[%s5] sm:$0x1]
  %v1190 = vld [vmem:[%s7] sm:$0xf]
  %v1191 = vld [vmem:[%s7 + $0x4] sm:$0xf]
  %v1192 = vld [vmem:[%s7 + $0x8] sm:$0xf]
  %v1193 = vld [vmem:[%s7 + $0xc] sm:$0xf]
  %v1194 = vld [vmem:[%s7 + $0x10] sm:$0xf]
  %v1195 = vld [vmem:[%s7 + $0x14] sm:$0xf]
  %v1196 = vld [vmem:[%s7 + $0x18] sm:$0xf]
  %v1197 = vld [vmem:[%s7 + $0x1c] sm:$0xf]
  %v1198 = vld [vmem:[%s7 + $0x20] sm:$0xf]
  %v1199 = vld [vmem:[%s7 + $0x24] sm:$0xf]
  %v1200 = vld [vmem:[%s7 + $0x28] sm:$0xf]
  %v1201 = vld [vmem:[%s7 + $0x2c] sm:$0xf]
  %v1202 = vld [vmem:[%s7 + $0x30] sm:$0xf]
  %v1203 = vld [vmem:[%s7 + $0x34] sm:$0xf]
  %v1204 = vld [vmem:[%s7 + $0x38] sm:$0xf]
  %v1205 = vld [vmem:[%s7 + $0x3c] sm:$0xf]
  %v1206 = vld [vmem:[%s9] sm:$0x1]
  %v1207 = vld [vmem:[#allocation2] sm:$0xff]
  %v1208 = vld [vmem:[#allocation2 + $0x8] sm:$0xff]
  %v1209 = vld [vmem:[#allocation2 + $0x10] sm:$0xff]
  %v1210 = vld [vmem:[#allocation2 + $0x18] sm:$0xff]
  %v1211 = vld [vmem:[#allocation2 + $0x20] sm:$0xff]
  %v1212 = vld [vmem:[#allocation2 + $0x28] sm:$0xff]
  %v1213 = vmax.f32 %v1207, %v1210
  %v1214 = vmax.f32 %v1208, %v1211
  %v1215 = vmax.f32 %v1209, %v1212
  %v1216 = vld [vmem:[#allocation2 + $0x30] sm:$0xff]
  %v1217 = vld [vmem:[#allocation2 + $0x38] sm:$0xff]
  %v1218 = vld [vmem:[#allocation2 + $0x40] sm:$0xff]
  %v1219 = vmax.f32 %v1213, %v1216
  %v1220 = vmax.f32 %v1214, %v1217
  %v1221 = vmax.f32 %v1215, %v1218
  %v1222 = vld [vmem:[#allocation2 + $0x48] sm:$0xff]
  %v1223 = vld [vmem:[#allocation2 + $0x50] sm:$0xff]
  %v1224 = vld [vmem:[#allocation2 + $0x58] sm:$0xff]
  %v1225 = vmax.f32 %v1219, %v1222
  %v1226 = vmax.f32 %v1220, %v1223
  %v1227 = vmax.f32 %v1221, %v1224
  %v1229 = vperm.slane %v1189, 0
  %v1231 = vadd.f32 %v1225, %v1229
  %v1232 = vadd.f32 %v1226, %v1229
  %v1233 = vadd.f32 %v1227, %v1229
  %vm1234 = vcmp.ge.f32.partialorder %v1231, 0.0
  %vm1235 = vcmp.ge.f32.partialorder %v1232, 0.0
  %vm1236 = vcmp.ge.f32.partialorder %v1233, 0.0
  %v1237 = vmul.f32 %v1231, 0.01
  %v1238 = vmul.f32 %v1232, 0.01
  %v1239 = vmul.f32 %v1233, 0.01
  %v1240 = vsel %vm1234, %v1231, %v1237
  %v1241 = vsel %vm1235, %v1232, %v1238
  %v1242 = vsel %vm1236, %v1233, %v1239
  %v1243 = vpack.c.bf16 %v1241, %v1240
  %v1244 = vpack.c.bf16 %v1242, %v1242
  %v1246 = vperm.slane %v1206, 0
  %v1264 = vunpack.c.l.b16 %v1190
  %v1265 = vunpack.c.l.b16 %v1191
  %v1266 = vunpack.c.l.b16 %v1192
  %v1267 = vunpack.c.l.b16 %v1193
  %v1268 = vunpack.c.l.b16 %v1194
  %v1269 = vunpack.c.l.b16 %v1195
  %v1270 = vunpack.c.l.b16 %v1196
  %v1271 = vunpack.c.l.b16 %v1197
  %v1272 = vunpack.c.l.b16 %v1198
  %v1273 = vunpack.c.l.b16 %v1199
  %v1274 = vunpack.c.l.b16 %v1200
  %v1275 = vunpack.c.l.b16 %v1201
  %v1276 = vunpack.c.l.b16 %v1202
  %v1277 = vunpack.c.l.b16 %v1203
  %v1278 = vunpack.c.l.b16 %v1204
  %v1279 = vunpack.c.l.b16 %v1205
  %v1280 = vpack.c.b16 %v1265, %v1264
  %v1281 = vpack.c.b16 %v1267, %v1266
  %v1282 = vpack.c.b16 %v1269, %v1268
  %v1283 = vpack.c.b16 %v1271, %v1270
  %v1284 = vpack.c.b16 %v1273, %v1272
  %v1285 = vpack.c.b16 %v1275, %v1274
  %v1286 = vpack.c.b16 %v1277, %v1276
  %v1287 = vpack.c.b16 %v1279, %v1278
  %1296 = vmatpush.bf16.msra.mxu0 %v1287
  %1297 = vmatpush.bf16.msra.mxu0 %v1286
  %1298 = vmatpush.bf16.msra.mxu0 %v1285
  %1299 = vmatpush.bf16.msra.mxu0 %v1284
  %1300 = vmatpush.bf16.msra.mxu0 %v1283
  %1301 = vmatpush.bf16.msra.mxu0 %v1282
  %1302 = vmatpush.bf16.msra.mxu0 %v1281
  %1303 = vmatpush.bf16.msra.mxu0 %v1280
  %1304 = vmatmul.bf16.gmra.mxu0 %v1243
  %v1305 = vpop.f32.mrf.mxu0
  %v1306 = vadd.f32 %v1246, %v1305
  %v1307 = vpop.f32.mrf.mxu0
  %v1308 = vadd.f32 %v1246, %v1307
  %1309 = vmatmul.bf16.gmra.mxu0 %v1244
  %v1310 = vpop.f32.mrf.mxu0
  %v1311 = vadd.f32 %v1246, %v1310
  %v1312 = vpop.f32.mrf.mxu0
  %1313 = vdwg.mxu0
  %vm1314 = vcmp.ge.f32.partialorder %v1306, 0.0
  %vm1315 = vcmp.ge.f32.partialorder %v1308, 0.0
  %vm1316 = vcmp.ge.f32.partialorder %v1311, 0.0
  %v1317 = vmul.f32 %v1306, 0.01
  %v1318 = vmul.f32 %v1308, 0.01
  %v1319 = vmul.f32 %v1311, 0.01
  %v1320 = vsel %vm1314, %v1306, %v1317
  %v1321 = vsel %vm1315, %v1308, %v1318
  %v1322 = vsel %vm1316, %v1311, %v1319
  %1323 = vst [vmem:[#allocation3] sm:$0xff] %v1320
  %1324 = vst [vmem:[#allocation3 + $0x20] sm:$0xff] %v1321
  %1325 = vst [vmem:[#allocation3 + $0x40] sm:$0xff] %v1322
  %v1326 = vld [vmem:[#allocation2] sm:$0xff]
  %v1327 = vld [vmem:[#allocation2 + $0x8] sm:$0xff]
  %v1328 = vld [vmem:[#allocation2 + $0x10] sm:$0xff]
  %v1329 = vld [vmem:[#allocation2 + $0x18] sm:$0xff]
  %v1330 = vld [vmem:[#allocation2 + $0x20] sm:$0xff]
  %v1331 = vld [vmem:[#allocation2 + $0x28] sm:$0xff]
  %v1332 = vmax.f32 %v1326, %v1329
  %v1333 = vmax.f32 %v1327, %v1330
  %v1334 = vmax.f32 %v1328, %v1331
  %v1335 = vld [vmem:[#allocation2 + $0x30] sm:$0xff]
  %v1336 = vld [vmem:[#allocation2 + $0x38] sm:$0xff]
  %v1337 = vld [vmem:[#allocation2 + $0x40] sm:$0xff]
  %v1338 = vmax.f32 %v1332, %v1335
  %v1339 = vmax.f32 %v1333, %v1336
  %v1340 = vmax.f32 %v1334, %v1337
  %v1341 = vld [vmem:[#allocation2 + $0x48] sm:$0xff]
  %v1342 = vld [vmem:[#allocation2 + $0x50] sm:$0xff]
  %v1343 = vld [vmem:[#allocation2 + $0x58] sm:$0xff]
  %v1344 = vmax.f32 %v1338, %v1341
  %v1345 = vmax.f32 %v1339, %v1342
  %v1346 = vmax.f32 %v1340, %v1343
  %v1347 = vld [vmem:[#allocation2 + $0x60] sm:$0xff]
  %v1348 = vld [vmem:[#allocation2 + $0x68] sm:$0xff]
  %v1349 = vld [vmem:[#allocation2 + $0x70] sm:$0xff]
  %v1350 = vmax.f32 %v1344, %v1347
  %v1351 = vmax.f32 %v1345, %v1348
  %v1352 = vmax.f32 %v1346, %v1349
  %v1353 = vld [vmem:[#allocation2 + $0x78] sm:$0xff]
  %v1354 = vld [vmem:[#allocation2 + $0x80] sm:$0xff]
  %v1355 = vld [vmem:[#allocation2 + $0x88] sm:$0xff]
  %v1356 = vmax.f32 %v1350, %v1353
  %v1357 = vmax.f32 %v1351, %v1354
  %v1358 = vmax.f32 %v1352, %v1355
  %v1359 = vadd.f32 %v1356, %v1229
  %v1360 = vadd.f32 %v1357, %v1229
  %v1361 = vadd.f32 %v1358, %v1229
  %vm1362 = vcmp.ge.f32.partialorder %v1359, 0.0
  %vm1363 = vcmp.ge.f32.partialorder %v1360, 0.0
  %vm1364 = vcmp.ge.f32.partialorder %v1361, 0.0
  %v1365 = vmul.f32 %v1359, 0.01
  %v1366 = vmul.f32 %v1360, 0.01
  %v1367 = vmul.f32 %v1361, 0.01
  %v1368 = vsel %vm1362, %v1359, %v1365
  %v1369 = vsel %vm1363, %v1360, %v1366
  %v1370 = vsel %vm1364, %v1361, %v1367
  %v1371 = vpack.c.bf16 %v1369, %v1368
  %v1372 = vpack.c.bf16 %v1370, %v1370
  %1373 = vmatpush.bf16.msra.mxu0 %v1287
  %1374 = vmatpush.bf16.msra.mxu0 %v1286
  %1375 = vmatpush.bf16.msra.mxu0 %v1285
  %1376 = vmatpush.bf16.msra.mxu0 %v1284
  %1377 = vmatpush.bf16.msra.mxu0 %v1283
  %1378 = vmatpush.bf16.msra.mxu0 %v1282
  %1379 = vmatpush.bf16.msra.mxu0 %v1281
  %1380 = vmatpush.bf16.msra.mxu0 %v1280
  %1381 = vmatmul.bf16.gmra.mxu0 %v1371
  %v1382 = vpop.f32.mrf.mxu0
  %v1383 = vadd.f32 %v1246, %v1382
  %v1384 = vpop.f32.mrf.mxu0
  %v1385 = vadd.f32 %v1246, %v1384
  %1386 = vmatmul.bf16.gmra.mxu0 %v1372
  %v1387 = vpop.f32.mrf.mxu0
  %v1388 = vadd.f32 %v1246, %v1387
  %v1389 = vpop.f32.mrf.mxu0
  %1390 = vdwg.mxu0
  %vm1391 = vcmp.ge.f32.partialorder %v1383, 0.0
  %vm1392 = vcmp.ge.f32.partialorder %v1385, 0.0
  %vm1393 = vcmp.ge.f32.partialorder %v1388, 0.0
  %v1394 = vmul.f32 %v1383, 0.01
  %v1395 = vmul.f32 %v1385, 0.01
  %v1396 = vmul.f32 %v1388, 0.01
  %v1397 = vsel %vm1391, %v1383, %v1394
  %v1398 = vsel %vm1392, %v1385, %v1395
  %v1399 = vsel %vm1393, %v1388, %v1396
  %1400 = vst [vmem:[#allocation3 + $0x8] sm:$0xff] %v1397
  %1401 = vst [vmem:[#allocation3 + $0x28] sm:$0xff] %v1398
  %1402 = vst [vmem:[#allocation3 + $0x48] sm:$0xff] %v1399
  %v1403 = vld [vmem:[#allocation2 + $0x18] sm:$0xff]
  %v1404 = vld [vmem:[#allocation2 + $0x20] sm:$0xff]
  %v1405 = vld [vmem:[#allocation2 + $0x28] sm:$0xff]
  %v1406 = vld [vmem:[#allocation2 + $0x30] sm:$0xff]
  %v1407 = vld [vmem:[#allocation2 + $0x38] sm:$0xff]
  %v1408 = vld [vmem:[#allocation2 + $0x40] sm:$0xff]
  %v1409 = vmax.f32 %v1403, %v1406
  %v1410 = vmax.f32 %v1404, %v1407
  %v1411 = vmax.f32 %v1405, %v1408
  %v1412 = vld [vmem:[#allocation2 + $0x48] sm:$0xff]
  %v1413 = vld [vmem:[#allocation2 + $0x50] sm:$0xff]
  %v1414 = vld [vmem:[#allocation2 + $0x58] sm:$0xff]
  %v1415 = vmax.f32 %v1409, %v1412
  %v1416 = vmax.f32 %v1410, %v1413
  %v1417 = vmax.f32 %v1411, %v1414
  %v1418 = vld [vmem:[#allocation2 + $0x60] sm:$0xff]
  %v1419 = vld [vmem:[#allocation2 + $0x68] sm:$0xff]
  %v1420 = vld [vmem:[#allocation2 + $0x70] sm:$0xff]
  %v1421 = vmax.f32 %v1415, %v1418
  %v1422 = vmax.f32 %v1416, %v1419
  %v1423 = vmax.f32 %v1417, %v1420
  %v1424 = vld [vmem:[#allocation2 + $0x78] sm:$0xff]
  %v1425 = vld [vmem:[#allocation2 + $0x80] sm:$0xff]
  %v1426 = vld [vmem:[#allocation2 + $0x88] sm:$0xff]
  %v1427 = vmax.f32 %v1421, %v1424
  %v1428 = vmax.f32 %v1422, %v1425
  %v1429 = vmax.f32 %v1423, %v1426
  %v1430 = vld [vmem:[#allocation2 + $0x90] sm:$0xff]
  %v1431 = vld [vmem:[#allocation2 + $0x98] sm:$0xff]
  %v1432 = vld [vmem:[#allocation2 + $0xa0] sm:$0xff]
  %v1433 = vmax.f32 %v1427, %v1430
  %v1434 = vmax.f32 %v1428, %v1431
  %v1435 = vmax.f32 %v1429, %v1432
  %v1436 = vld [vmem:[#allocation2 + $0xa8] sm:$0xff]
  %v1437 = vld [vmem:[#allocation2 + $0xb0] sm:$0xff]
  %v1438 = vld [vmem:[#allocation2 + $0xb8] sm:$0xff]
  %v1439 = vmax.f32 %v1433, %v1436
  %v1440 = vmax.f32 %v1434, %v1437
  %v1441 = vmax.f32 %v1435, %v1438
  %v1442 = vadd.f32 %v1439, %v1229
  %v1443 = vadd.f32 %v1440, %v1229
  %v1444 = vadd.f32 %v1441, %v1229
  %vm1445 = vcmp.ge.f32.partialorder %v1442, 0.0
  %vm1446 = vcmp.ge.f32.partialorder %v1443, 0.0
  %vm1447 = vcmp.ge.f32.partialorder %v1444, 0.0
  %v1448 = vmul.f32 %v1442, 0.01
  %v1449 = vmul.f32 %v1443, 0.01
  %v1450 = vmul.f32 %v1444, 0.01
  %v1451 = vsel %vm1445, %v1442, %v1448
  %v1452 = vsel %vm1446, %v1443, %v1449
  %v1453 = vsel %vm1447, %v1444, %v1450
  %v1454 = vpack.c.bf16 %v1452, %v1451
  %v1455 = vpack.c.bf16 %v1453, %v1453
  %1456 = vmatpush.bf16.msra.mxu0 %v1287
  %1457 = vmatpush.bf16.msra.mxu0 %v1286
  %1458 = vmatpush.bf16.msra.mxu0 %v1285
  %1459 = vmatpush.bf16.msra.mxu0 %v1284
  %1460 = vmatpush.bf16.msra.mxu0 %v1283
  %1461 = vmatpush.bf16.msra.mxu0 %v1282
  %1462 = vmatpush.bf16.msra.mxu0 %v1281
  %1463 = vmatpush.bf16.msra.mxu0 %v1280
  %1464 = vmatmul.bf16.gmra.mxu0 %v1454
  %v1465 = vpop.f32.mrf.mxu0
  %v1466 = vadd.f32 %v1246, %v1465
  %v1467 = vpop.f32.mrf.mxu0
  %v1468 = vadd.f32 %v1246, %v1467
  %1469 = vmatmul.bf16.gmra.mxu0 %v1455
  %v1470 = vpop.f32.mrf.mxu0
  %v1471 = vadd.f32 %v1246, %v1470
  %v1472 = vpop.f32.mrf.mxu0
  %1473 = vdwg.mxu0
  %vm1474 = vcmp.ge.f32.partialorder %v1466, 0.0
  %vm1475 = vcmp.ge.f32.partialorder %v1468, 0.0
  %vm1476 = vcmp.ge.f32.partialorder %v1471, 0.0
  %v1477 = vmul.f32 %v1466, 0.01
  %v1478 = vmul.f32 %v1468, 0.01
  %v1479 = vmul.f32 %v1471, 0.01
  %v1480 = vsel %vm1474, %v1466, %v1477
  %v1481 = vsel %vm1475, %v1468, %v1478
  %v1482 = vsel %vm1476, %v1471, %v1479
  %1483 = vst [vmem:[#allocation3 + $0x10] sm:$0xff] %v1480
  %1484 = vst [vmem:[#allocation3 + $0x30] sm:$0xff] %v1481
  %1485 = vst [vmem:[#allocation3 + $0x50] sm:$0xff] %v1482
  %v1486 = vld [vmem:[#allocation2 + $0x48] sm:$0xff]
  %v1487 = vld [vmem:[#allocation2 + $0x50] sm:$0xff]
  %v1488 = vld [vmem:[#allocation2 + $0x58] sm:$0xff]
  %v1489 = vld [vmem:[#allocation2 + $0x60] sm:$0xff]
  %v1490 = vld [vmem:[#allocation2 + $0x68] sm:$0xff]
  %v1491 = vld [vmem:[#allocation2 + $0x70] sm:$0xff]
  %v1492 = vmax.f32 %v1486, %v1489
  %v1493 = vmax.f32 %v1487, %v1490
  %v1494 = vmax.f32 %v1488, %v1491
  %v1495 = vld [vmem:[#allocation2 + $0x78] sm:$0xff]
  %v1496 = vld [vmem:[#allocation2 + $0x80] sm:$0xff]
  %v1497 = vld [vmem:[#allocation2 + $0x88] sm:$0xff]
  %v1498 = vmax.f32 %v1492, %v1495
  %v1499 = vmax.f32 %v1493, %v1496
  %v1500 = vmax.f32 %v1494, %v1497
  %v1501 = vld [vmem:[#allocation2 + $0x90] sm:$0xff]
  %v1502 = vld [vmem:[#allocation2 + $0x98] sm:$0xff]
  %v1503 = vld [vmem:[#allocation2 + $0xa0] sm:$0xff]
  %v1504 = vmax.f32 %v1498, %v1501
  %v1505 = vmax.f32 %v1499, %v1502
  %v1506 = vmax.f32 %v1500, %v1503
  %v1507 = vld [vmem:[#allocation2 + $0xa8] sm:$0xff]
  %v1508 = vld [vmem:[#allocation2 + $0xb0] sm:$0xff]
  %v1509 = vld [vmem:[#allocation2 + $0xb8] sm:$0xff]
  %v1510 = vmax.f32 %v1504, %v1507
  %v1511 = vmax.f32 %v1505, %v1508
  %v1512 = vmax.f32 %v1506, %v1509
  %v1513 = vadd.f32 %v1510, %v1229
  %v1514 = vadd.f32 %v1511, %v1229
  %v1515 = vadd.f32 %v1512, %v1229
  %vm1516 = vcmp.ge.f32.partialorder %v1513, 0.0
  %vm1517 = vcmp.ge.f32.partialorder %v1514, 0.0
  %vm1518 = vcmp.ge.f32.partialorder %v1515, 0.0
  %v1519 = vmul.f32 %v1513, 0.01
  %v1520 = vmul.f32 %v1514, 0.01
  %v1521 = vmul.f32 %v1515, 0.01
  %v1522 = vsel %vm1516, %v1513, %v1519
  %v1523 = vsel %vm1517, %v1514, %v1520
  %v1524 = vsel %vm1518, %v1515, %v1521
  %v1525 = vpack.c.bf16 %v1523, %v1522
  %v1526 = vpack.c.bf16 %v1524, %v1524
  %1527 = vmatpush.bf16.msra.mxu0 %v1287
  %1528 = vmatpush.bf16.msra.mxu0 %v1286
  %1529 = vmatpush.bf16.msra.mxu0 %v1285
  %1530 = vmatpush.bf16.msra.mxu0 %v1284
  %1531 = vmatpush.bf16.msra.mxu0 %v1283
  %1532 = vmatpush.bf16.msra.mxu0 %v1282
  %1533 = vmatpush.bf16.msra.mxu0 %v1281
  %1534 = vmatpush.bf16.msra.mxu0 %v1280
  %1535 = vmatmul.bf16.gmra.mxu0 %v1525
  %v1536 = vpop.f32.mrf.mxu0
  %v1537 = vadd.f32 %v1246, %v1536
  %v1538 = vpop.f32.mrf.mxu0
  %v1539 = vadd.f32 %v1246, %v1538
  %1540 = vmatmul.bf16.gmra.mxu0 %v1526
  %v1541 = vpop.f32.mrf.mxu0
  %v1542 = vadd.f32 %v1246, %v1541
  %v1543 = vpop.f32.mrf.mxu0
  %1544 = vdwg.mxu0
  %vm1545 = vcmp.ge.f32.partialorder %v1537, 0.0
  %vm1546 = vcmp.ge.f32.partialorder %v1539, 0.0
  %vm1547 = vcmp.ge.f32.partialorder %v1542, 0.0
  %v1548 = vmul.f32 %v1537, 0.01
  %v1549 = vmul.f32 %v1539, 0.01
  %v1550 = vmul.f32 %v1542, 0.01
  %v1551 = vsel %vm1545, %v1537, %v1548
  %v1552 = vsel %vm1546, %v1539, %v1549
  %v1553 = vsel %vm1547, %v1542, %v1550
  %1554 = vst [vmem:[#allocation3 + $0x18] sm:$0xff] %v1551
  %1555 = vst [vmem:[#allocation3 + $0x38] sm:$0xff] %v1552
  %1556 = vst [vmem:[#allocation3 + $0x58] sm:$0xff] %v1553
  %1557 = vst [vmem:[#allocation4] sm:$0xff] 0.0
  %1558 = vst [vmem:[#allocation4 + $0x8] sm:$0xff] 0.0
  %1559 = vst [vmem:[#allocation4 + $0x10] sm:$0xff] 0.0
  %1560 = vst [vmem:[#allocation4 + $0x18] sm:$0xff] 0.0
  %v1561 = vld [vmem:[#allocation3] sm:$0xff]
  %v1562 = vld [vmem:[#allocation3 + $0x8] sm:$0xff]
  %v1563 = vld [vmem:[#allocation4 + $0x10] sm:$0xff]
  %v1564 = vld [vmem:[#allocation4 + $0x18] sm:$0xff]
  %v1565 = vld [vmem:[%s11] sm:$0xf]
  %v1566 = vpack.c.bf16 %v1562, %v1561
  %vm1567 = vcmask 64512
  %v1569 = vsel %vm1567, %v1566, 0
  %vm1571 = vcmask 1043456
  %v1573 = vsel %vm1571, %v1565, 0
  %1575 = vmatpush.bf16.msra.mxu0 0
  %1576 = vmatpush.bf16.msra.mxu0 0
  %1577 = vmatpush.bf16.msra.mxu0 0
  %1578 = vmatpush.bf16.msra.mxu0 0
  %1579 = vmatpush.bf16.msra.mxu0 0
  %1580 = vmatpush.bf16.msra.mxu0 0
  %1581 = vmatpush.bf16.msra.mxu0 0
  %1582 = vmatpush.bf16.msra.mxu0 %v1573
  %1583 = vmatmul.bf16.gmra.mxu0 %v1569
  %v1584 = vpop.f32.mrf.mxu0
  %v1585 = vadd.f32 0.0, %v1584
  %v1586 = vpop.f32.mrf.mxu0
  %v1587 = vadd.f32 0.0, %v1586
  %1588 = vdwg.mxu0
  %v1589 = vadd.f32 %v1563, %v1585
  %v1590 = vadd.f32 %v1564, %v1587
  %1591 = vst [vmem:[#allocation4 + $0x10] sm:$0xff] %v1589
  %1592 = vst [vmem:[#allocation4 + $0x18] sm:$0xff] %v1590
  %v1593 = vld [vmem:[#allocation3 + $0x20] sm:$0xff]
  %v1594 = vld [vmem:[#allocation3 + $0x28] sm:$0xff]
  %v1595 = vld [vmem:[#allocation4 + $0x10] sm:$0xff]
  %v1596 = vld [vmem:[#allocation4 + $0x18] sm:$0xff]
  %v1597 = vld [vmem:[%s11 + $0x4] sm:$0xf]
  %v1598 = vpack.c.bf16 %v1594, %v1593
  %v1600 = vsel %vm1567, %v1598, 0
  %v1603 = vsel %vm1571, %v1597, 0
  %1605 = vmatpush.bf16.msra.mxu0 0
  %1606 = vmatpush.bf16.msra.mxu0 0
  %1607 = vmatpush.bf16.msra.mxu0 0
  %1608 = vmatpush.bf16.msra.mxu0 0
  %1609 = vmatpush.bf16.msra.mxu0 0
  %1610 = vmatpush.bf16.msra.mxu0 0
  %1611 = vmatpush.bf16.msra.mxu0 0
  %1612 = vmatpush.bf16.msra.mxu0 %v1603
  %1613 = vmatmul.bf16.gmra.mxu0 %v1600
  %v1614 = vpop.f32.mrf.mxu0
  %v1615 = vadd.f32 0.0, %v1614
  %v1616 = vpop.f32.mrf.mxu0
  %v1617 = vadd.f32 0.0, %v1616
  %1618 = vdwg.mxu0
  %v1619 = vadd.f32 %v1595, %v1615
  %v1620 = vadd.f32 %v1596, %v1617
  %1621 = vst [vmem:[#allocation4 + $0x10] sm:$0xff] %v1619
  %1622 = vst [vmem:[#allocation4 + $0x18] sm:$0xff] %v1620
  %v1623 = vld [vmem:[#allocation3 + $0x40] sm:$0xff]
  %v1624 = vld [vmem:[#allocation3 + $0x48] sm:$0xff]
  %v1625 = vld [vmem:[#allocation4 + $0x10] sm:$0xff]
  %v1626 = vld [vmem:[#allocation4 + $0x18] sm:$0xff]
  %v1627 = vld [vmem:[%s11 + $0x8] sm:$0xf]
  %v1628 = vpack.c.bf16 %v1624, %v1623
  %v1630 = vsel %vm1567, %v1628, 0
  %v1633 = vsel %vm1571, %v1627, 0
  %1635 = vmatpush.bf16.msra.mxu0 0
  %1636 = vmatpush.bf16.msra.mxu0 0
  %1637 = vmatpush.bf16.msra.mxu0 0
  %1638 = vmatpush.bf16.msra.mxu0 0
  %1639 = vmatpush.bf16.msra.mxu0 0
  %1640 = vmatpush.bf16.msra.mxu0 0
  %1641 = vmatpush.bf16.msra.mxu0 0
  %1642 = vmatpush.bf16.msra.mxu0 %v1633
  %1643 = vmatmul.bf16.gmra.mxu0 %v1630
  %v1644 = vpop.f32.mrf.mxu0
  %v1645 = vadd.f32 0.0, %v1644
  %v1646 = vpop.f32.mrf.mxu0
  %v1647 = vadd.f32 0.0, %v1646
  %1648 = vdwg.mxu0
  %v1649 = vadd.f32 %v1625, %v1645
  %v1650 = vadd.f32 %v1626, %v1647
  %1651 = vst [vmem:[#allocation4 + $0x10] sm:$0xff] %v1649
  %1652 = vst [vmem:[#allocation4 + $0x18] sm:$0xff] %v1650
  %v1653 = vld [vmem:[#allocation3] sm:$0xff]
  %v1654 = vld [vmem:[#allocation3 + $0x8] sm:$0xff]
  %v1655 = vld [vmem:[#allocation3 + $0x10] sm:$0xff]
  %v1656 = vld [vmem:[#allocation4 + $0x8] sm:$0xff]
  %v1657 = vld [vmem:[#allocation4 + $0x10] sm:$0xff]
  %v1658 = vld [vmem:[#allocation4 + $0x18] sm:$0xff]
  %v1659 = vld [vmem:[%s11 + $0xc] sm:$0xf]
  %v1660 = vpack.c.bf16 %v1654, %v1653
  %v1661 = vpack.c.bf16 %v1655, %v1655
  %v1663 = vsel %vm1567, %v1660, 0
  %v1666 = vsel %vm1567, %v1661, 0
  %v1669 = vsel %vm1571, %v1659, 0
  %1671 = vmatpush.bf16.msra.mxu0 0
  %1672 = vmatpush.bf16.msra.mxu0 0
  %1673 = vmatpush.bf16.msra.mxu0 0
  %1674 = vmatpush.bf16.msra.mxu0 0
  %1675 = vmatpush.bf16.msra.mxu0 0
  %1676 = vmatpush.bf16.msra.mxu0 0
  %1677 = vmatpush.bf16.msra.mxu0 0
  %1678 = vmatpush.bf16.msra.mxu0 %v1669
  %1679 = vmatmul.bf16.gmra.mxu0 %v1663
  %v1680 = vpop.f32.mrf.mxu0
  %v1681 = vadd.f32 0.0, %v1680
  %v1682 = vpop.f32.mrf.mxu0
  %v1683 = vadd.f32 0.0, %v1682
  %1684 = vmatmul.bf16.gmra.mxu0 %v1666
  %v1685 = vpop.f32.mrf.mxu0
  %v1686 = vadd.f32 0.0, %v1685
  %v1687 = vpop.f32.mrf.mxu0
  %1688 = vdwg.mxu0
  %v1689 = vadd.f32 %v1656, %v1681
  %v1690 = vadd.f32 %v1657, %v1683
  %v1691 = vadd.f32 %v1658, %v1686
  %1692 = vst [vmem:[#allocation4 + $0x8] sm:$0xff] %v1689
  %1693 = vst [vmem:[#allocation4 + $0x10] sm:$0xff] %v1690
  %1694 = vst [vmem:[#allocation4 + $0x18] sm:$0xff] %v1691
  %v1695 = vld [vmem:[#allocation3 + $0x20] sm:$0xff]
  %v1696 = vld [vmem:[#allocation3 + $0x28] sm:$0xff]
  %v1697 = vld [vmem:[#allocation3 + $0x30] sm:$0xff]
  %v1698 = vld [vmem:[#allocation4 + $0x8] sm:$0xff]
  %v1699 = vld [vmem:[#allocation4 + $0x10] sm:$0xff]
  %v1700 = vld [vmem:[#allocation4 + $0x18] sm:$0xff]
  %v1701 = vld [vmem:[%s11 + $0x10] sm:$0xf]
  %v1702 = vpack.c.bf16 %v1696, %v1695
  %v1703 = vpack.c.bf16 %v1697, %v1697
  %v1705 = vsel %vm1567, %v1702, 0
  %v1708 = vsel %vm1567, %v1703, 0
  %v1711 = vsel %vm1571, %v1701, 0
  %1713 = vmatpush.bf16.msra.mxu0 0
  %1714 = vmatpush.bf16.msra.mxu0 0
  %1715 = vmatpush.bf16.msra.mxu0 0
  %1716 = vmatpush.bf16.msra.mxu0 0
  %1717 = vmatpush.bf16.msra.mxu0 0
  %1718 = vmatpush.bf16.msra.mxu0 0
  %1719 = vmatpush.bf16.msra.mxu0 0
  %1720 = vmatpush.bf16.msra.mxu0 %v1711
  %1721 = vmatmul.bf16.gmra.mxu0 %v1705
  %v1722 = vpop.f32.mrf.mxu0
  %v1723 = vadd.f32 0.0, %v1722
  %v1724 = vpop.f32.mrf.mxu0
  %v1725 = vadd.f32 0.0, %v1724
  %1726 = vmatmul.bf16.gmra.mxu0 %v1708
  %v1727 = vpop.f32.mrf.mxu0
  %v1728 = vadd.f32 0.0, %v1727
  %v1729 = vpop.f32.mrf.mxu0
  %1730 = vdwg.mxu0
  %v1731 = vadd.f32 %v1698, %v1723
  %v1732 = vadd.f32 %v1699, %v1725
  %v1733 = vadd.f32 %v1700, %v1728
  %1734 = vst [vmem:[#allocation4 + $0x8] sm:$0xff] %v1731
  %1735 = vst [vmem:[#allocation4 + $0x10] sm:$0xff] %v1732
  %1736 = vst [vmem:[#allocation4 + $0x18] sm:$0xff] %v1733
  %v1737 = vld [vmem:[#allocation3 + $0x40] sm:$0xff]
  %v1738 = vld [vmem:[#allocation3 + $0x48] sm:$0xff]
  %v1739 = vld [vmem:[#allocation3 + $0x50] sm:$0xff]
  %v1740 = vld [vmem:[#allocation4 + $0x8] sm:$0xff]
  %v1741 = vld [vmem:[#allocation4 + $0x10] sm:$0xff]
  %v1742 = vld [vmem:[#allocation4 + $0x18] sm:$0xff]
  %v1743 = vld [vmem:[%s11 + $0x14] sm:$0xf]
  %v1744 = vpack.c.bf16 %v1738, %v1737
  %v1745 = vpack.c.bf16 %v1739, %v1739
  %v1747 = vsel %vm1567, %v1744, 0
  %v1750 = vsel %vm1567, %v1745, 0
  %v1753 = vsel %vm1571, %v1743, 0
  %1755 = vmatpush.bf16.msra.mxu0 0
  %1756 = vmatpush.bf16.msra.mxu0 0
  %1757 = vmatpush.bf16.msra.mxu0 0
  %1758 = vmatpush.bf16.msra.mxu0 0
  %1759 = vmatpush.bf16.msra.mxu0 0
  %1760 = vmatpush.bf16.msra.mxu0 0
  %1761 = vmatpush.bf16.msra.mxu0 0
  %1762 = vmatpush.bf16.msra.mxu0 %v1753
  %1763 = vmatmul.bf16.gmra.mxu0 %v1747
  %v1764 = vpop.f32.mrf.mxu0
  %v1765 = vadd.f32 0.0, %v1764
  %v1766 = vpop.f32.mrf.mxu0
  %v1767 = vadd.f32 0.0, %v1766
  %1768 = vmatmul.bf16.gmra.mxu0 %v1750
  %v1769 = vpop.f32.mrf.mxu0
  %v1770 = vadd.f32 0.0, %v1769
  %v1771 = vpop.f32.mrf.mxu0
  %1772 = vdwg.mxu0
  %v1773 = vadd.f32 %v1740, %v1765
  %v1774 = vadd.f32 %v1741, %v1767
  %v1775 = vadd.f32 %v1742, %v1770
  %1776 = vst [vmem:[#allocation4 + $0x8] sm:$0xff] %v1773
  %1777 = vst [vmem:[#allocation4 + $0x10] sm:$0xff] %v1774
  %1778 = vst [vmem:[#allocation4 + $0x18] sm:$0xff] %v1775
  %v1779 = vld [vmem:[#allocation3] sm:$0xff]
  %v1780 = vld [vmem:[#allocation3 + $0x8] sm:$0xff]
  %v1781 = vld [vmem:[#allocation3 + $0x10] sm:$0xff]
  %v1782 = vld [vmem:[#allocation3 + $0x18] sm:$0xff]
  %v1783 = vld [vmem:[#allocation4] sm:$0xff]
  %v1784 = vld [vmem:[#allocation4 + $0x8] sm:$0xff]
  %v1785 = vld [vmem:[#allocation4 + $0x10] sm:$0xff]
  %v1786 = vld [vmem:[#allocation4 + $0x18] sm:$0xff]
  %v1787 = vld [vmem:[%s11 + $0x18] sm:$0xf]
  %v1788 = vpack.c.bf16 %v1780, %v1779
  %v1789 = vpack.c.bf16 %v1782, %v1781
  %v1791 = vsel %vm1567, %v1788, 0
  %v1794 = vsel %vm1567, %v1789, 0
  %v1797 = vsel %vm1571, %v1787, 0
  %1799 = vmatpush.bf16.msra.mxu0 0
  %1800 = vmatpush.bf16.msra.mxu0 0
  %1801 = vmatpush.bf16.msra.mxu0 0
  %1802 = vmatpush.bf16.msra.mxu0 0
  %1803 = vmatpush.bf16.msra.mxu0 0
  %1804 = vmatpush.bf16.msra.mxu0 0
  %1805 = vmatpush.bf16.msra.mxu0 0
  %1806 = vmatpush.bf16.msra.mxu0 %v1797
  %1807 = vmatmul.bf16.gmra.mxu0 %v1791
  %v1808 = vpop.f32.mrf.mxu0
  %v1809 = vadd.f32 0.0, %v1808
  %v1810 = vpop.f32.mrf.mxu0
  %v1811 = vadd.f32 0.0, %v1810
  %1812 = vmatmul.bf16.gmra.mxu0 %v1794
  %v1813 = vpop.f32.mrf.mxu0
  %v1814 = vadd.f32 0.0, %v1813
  %v1815 = vpop.f32.mrf.mxu0
  %v1816 = vadd.f32 0.0, %v1815
  %1817 = vdwg.mxu0
  %v1818 = vadd.f32 %v1783, %v1809
  %v1819 = vadd.f32 %v1784, %v1811
  %v1820 = vadd.f32 %v1785, %v1814
  %v1821 = vadd.f32 %v1786, %v1816
  %1822 = vst [vmem:[#allocation4] sm:$0xff] %v1818
  %1823 = vst [vmem:[#allocation4 + $0x8] sm:$0xff] %v1819
  %1824 = vst [vmem:[#allocation4 + $0x10] sm:$0xff] %v1820
  %1825 = vst [vmem:[#allocation4 + $0x18] sm:$0xff] %v1821
  %v1826 = vld [vmem:[#allocation3 + $0x20] sm:$0xff]
  %v1827 = vld [vmem:[#allocation3 + $0x28] sm:$0xff]
  %v1828 = vld [vmem:[#allocation3 + $0x30] sm:$0xff]
  %v1829 = vld [vmem:[#allocation3 + $0x38] sm:$0xff]
  %v1830 = vld [vmem:[#allocation4] sm:$0xff]
  %v1831 = vld [vmem:[#allocation4 + $0x8] sm:$0xff]
  %v1832 = vld [vmem:[#allocation4 + $0x10] sm:$0xff]
  %v1833 = vld [vmem:[#allocation4 + $0x18] sm:$0xff]
  %v1834 = vld [vmem:[%s11 + $0x1c] sm:$0xf]
  %v1835 = vpack.c.bf16 %v1827, %v1826
  %v1836 = vpack.c.bf16 %v1829, %v1828
  %v1838 = vsel %vm1567, %v1835, 0
  %v1841 = vsel %vm1567, %v1836, 0
  %v1844 = vsel %vm1571, %v1834, 0
  %1846 = vmatpush.bf16.msra.mxu0 0
  %1847 = vmatpush.bf16.msra.mxu0 0
  %1848 = vmatpush.bf16.msra.mxu0 0
  %1849 = vmatpush.bf16.msra.mxu0 0
  %1850 = vmatpush.bf16.msra.mxu0 0
  %1851 = vmatpush.bf16.msra.mxu0 0
  %1852 = vmatpush.bf16.msra.mxu0 0
  %1853 = vmatpush.bf16.msra.mxu0 %v1844
  %1854 = vmatmul.bf16.gmra.mxu0 %v1838
  %v1855 = vpop.f32.mrf.mxu0
  %v1856 = vadd.f32 0.0, %v1855
  %v1857 = vpop.f32.mrf.mxu0
  %v1858 = vadd.f32 0.0, %v1857
  %1859 = vmatmul.bf16.gmra.mxu0 %v1841
  %v1860 = vpop.f32.mrf.mxu0
  %v1861 = vadd.f32 0.0, %v1860
  %v1862 = vpop.f32.mrf.mxu0
  %v1863 = vadd.f32 0.0, %v1862
  %1864 = vdwg.mxu0
  %v1865 = vadd.f32 %v1830, %v1856
  %v1866 = vadd.f32 %v1831, %v1858
  %v1867 = vadd.f32 %v1832, %v1861
  %v1868 = vadd.f32 %v1833, %v1863
  %1869 = vst [vmem:[#allocation4] sm:$0xff] %v1865
  %1870 = vst [vmem:[#allocation4 + $0x8] sm:$0xff] %v1866
  %1871 = vst [vmem:[#allocation4 + $0x10] sm:$0xff] %v1867
  %1872 = vst [vmem:[#allocation4 + $0x18] sm:$0xff] %v1868
  %v1873 = vld [vmem:[#allocation3 + $0x40] sm:$0xff]
  %v1874 = vld [vmem:[#allocation3 + $0x48] sm:$0xff]
  %v1875 = vld [vmem:[#allocation3 + $0x50] sm:$0xff]
  %v1876 = vld [vmem:[#allocation3 + $0x58] sm:$0xff]
  %v1877 = vld [vmem:[#allocation4] sm:$0xff]
  %v1878 = vld [vmem:[#allocation4 + $0x8] sm:$0xff]
  %v1879 = vld [vmem:[#allocation4 + $0x10] sm:$0xff]
  %v1880 = vld [vmem:[#allocation4 + $0x18] sm:$0xff]
  %v1881 = vld [vmem:[%s11 + $0x20] sm:$0xf]
  %v1882 = vpack.c.bf16 %v1874, %v1873
  %v1883 = vpack.c.bf16 %v1876, %v1875
  %v1885 = vsel %vm1567, %v1882, 0
  %v1888 = vsel %vm1567, %v1883, 0
  %v1891 = vsel %vm1571, %v1881, 0
  %1893 = vmatpush.bf16.msra.mxu0 0
  %1894 = vmatpush.bf16.msra.mxu0 0
  %1895 = vmatpush.bf16.msra.mxu0 0
  %1896 = vmatpush.bf16.msra.mxu0 0
  %1897 = vmatpush.bf16.msra.mxu0 0
  %1898 = vmatpush.bf16.msra.mxu0 0
  %1899 = vmatpush.bf16.msra.mxu0 0
  %1900 = vmatpush.bf16.msra.mxu0 %v1891
  %1901 = vmatmul.bf16.gmra.mxu0 %v1885
  %v1902 = vpop.f32.mrf.mxu0
  %v1903 = vadd.f32 0.0, %v1902
  %v1904 = vpop.f32.mrf.mxu0
  %v1905 = vadd.f32 0.0, %v1904
  %1906 = vmatmul.bf16.gmra.mxu0 %v1888
  %v1907 = vpop.f32.mrf.mxu0
  %v1908 = vadd.f32 0.0, %v1907
  %v1909 = vpop.f32.mrf.mxu0
  %v1910 = vadd.f32 0.0, %v1909
  %1911 = vdwg.mxu0
  %v1912 = vadd.f32 %v1877, %v1903
  %v1913 = vadd.f32 %v1878, %v1905
  %v1914 = vadd.f32 %v1879, %v1908
  %v1915 = vadd.f32 %v1880, %v1910
  %1916 = vst [vmem:[#allocation4] sm:$0xff] %v1912
  %1917 = vst [vmem:[#allocation4 + $0x8] sm:$0xff] %v1913
  %1918 = vst [vmem:[#allocation4 + $0x10] sm:$0xff] %v1914
  %1919 = vst [vmem:[#allocation4 + $0x18] sm:$0xff] %v1915
  %v1920 = vld [vmem:[#allocation3 + $0x8] sm:$0xff]
  %v1921 = vld [vmem:[#allocation3 + $0x10] sm:$0xff]
  %v1922 = vld [vmem:[#allocation3 + $0x18] sm:$0xff]
  %v1923 = vld [vmem:[#allocation4] sm:$0xff]
  %v1924 = vld [vmem:[#allocation4 + $0x8] sm:$0xff]
  %v1925 = vld [vmem:[#allocation4 + $0x10] sm:$0xff]
  %v1926 = vld [vmem:[%s11 + $0x24] sm:$0xf]
  %v1927 = vpack.c.bf16 %v1921, %v1920
  %v1928 = vpack.c.bf16 %v1922, %v1922
  %v1930 = vsel %vm1567, %v1927, 0
  %v1933 = vsel %vm1567, %v1928, 0
  %v1936 = vsel %vm1571, %v1926, 0
  %1938 = vmatpush.bf16.msra.mxu0 0
  %1939 = vmatpush.bf16.msra.mxu0 0
  %1940 = vmatpush.bf16.msra.mxu0 0
  %1941 = vmatpush.bf16.msra.mxu0 0
  %1942 = vmatpush.bf16.msra.mxu0 0
  %1943 = vmatpush.bf16.msra.mxu0 0
  %1944 = vmatpush.bf16.msra.mxu0 0
  %1945 = vmatpush.bf16.msra.mxu0 %v1936
  %1946 = vmatmul.bf16.gmra.mxu0 %v1930
  %v1947 = vpop.f32.mrf.mxu0
  %v1948 = vadd.f32 0.0, %v1947
  %v1949 = vpop.f32.mrf.mxu0
  %v1950 = vadd.f32 0.0, %v1949
  %1951 = vmatmul.bf16.gmra.mxu0 %v1933
  %v1952 = vpop.f32.mrf.mxu0
  %v1953 = vadd.f32 0.0, %v1952
  %v1954 = vpop.f32.mrf.mxu0
  %1955 = vdwg.mxu0
  %v1956 = vadd.f32 %v1923, %v1948
  %v1957 = vadd.f32 %v1924, %v1950
  %v1958 = vadd.f32 %v1925, %v1953
  %1959 = vst [vmem:[#allocation4] sm:$0xff] %v1956
  %1960 = vst [vmem:[#allocation4 + $0x8] sm:$0xff] %v1957
  %1961 = vst [vmem:[#allocation4 + $0x10] sm:$0xff] %v1958
  %v1962 = vld [vmem:[#allocation3 + $0x28] sm:$0xff]
  %v1963 = vld [vmem:[#allocation3 + $0x30] sm:$0xff]
  %v1964 = vld [vmem:[#allocation3 + $0x38] sm:$0xff]
  %v1965 = vld [vmem:[#allocation4] sm:$0xff]
  %v1966 = vld [vmem:[#allocation4 + $0x8] sm:$0xff]
  %v1967 = vld [vmem:[#allocation4 + $0x10] sm:$0xff]
  %v1968 = vld [vmem:[%s11 + $0x28] sm:$0xf]
  %v1969 = vpack.c.bf16 %v1963, %v1962
  %v1970 = vpack.c.bf16 %v1964, %v1964
  %v1972 = vsel %vm1567, %v1969, 0
  %v1975 = vsel %vm1567, %v1970, 0
  %v1978 = vsel %vm1571, %v1968, 0
  %1980 = vmatpush.bf16.msra.mxu0 0
  %1981 = vmatpush.bf16.msra.mxu0 0
  %1982 = vmatpush.bf16.msra.mxu0 0
  %1983 = vmatpush.bf16.msra.mxu0 0
  %1984 = vmatpush.bf16.msra.mxu0 0
  %1985 = vmatpush.bf16.msra.mxu0 0
  %1986 = vmatpush.bf16.msra.mxu0 0
  %1987 = vmatpush.bf16.msra.mxu0 %v1978
  %1988 = vmatmul.bf16.gmra.mxu0 %v1972
  %v1989 = vpop.f32.mrf.mxu0
  %v1990 = vadd.f32 0.0, %v1989
  %v1991 = vpop.f32.mrf.mxu0
  %v1992 = vadd.f32 0.0, %v1991
  %1993 = vmatmul.bf16.gmra.mxu0 %v1975
  %v1994 = vpop.f32.mrf.mxu0
  %v1995 = vadd.f32 0.0, %v1994
  %v1996 = vpop.f32.mrf.mxu0
  %1997 = vdwg.mxu0
  %v1998 = vadd.f32 %v1965, %v1990
  %v1999 = vadd.f32 %v1966, %v1992
  %v2000 = vadd.f32 %v1967, %v1995
  %2001 = vst [vmem:[#allocation4] sm:$0xff] %v1998
  %2002 = vst [vmem:[#allocation4 + $0x8] sm:$0xff] %v1999
  %2003 = vst [vmem:[#allocation4 + $0x10] sm:$0xff] %v2000
  %v2004 = vld [vmem:[#allocation3 + $0x48] sm:$0xff]
  %v2005 = vld [vmem:[#allocation3 + $0x50] sm:$0xff]
  %v2006 = vld [vmem:[#allocation3 + $0x58] sm:$0xff]
  %v2007 = vld [vmem:[#allocation4] sm:$0xff]
  %v2008 = vld [vmem:[#allocation4 + $0x8] sm:$0xff]
  %v2009 = vld [vmem:[#allocation4 + $0x10] sm:$0xff]
  %v2010 = vld [vmem:[%s11 + $0x2c] sm:$0xf]
  %v2011 = vpack.c.bf16 %v2005, %v2004
  %v2012 = vpack.c.bf16 %v2006, %v2006
  %v2014 = vsel %vm1567, %v2011, 0
  %v2017 = vsel %vm1567, %v2012, 0
  %v2020 = vsel %vm1571, %v2010, 0
  %2022 = vmatpush.bf16.msra.mxu0 0
  %2023 = vmatpush.bf16.msra.mxu0 0
  %2024 = vmatpush.bf16.msra.mxu0 0
  %2025 = vmatpush.bf16.msra.mxu0 0
  %2026 = vmatpush.bf16.msra.mxu0 0
  %2027 = vmatpush.bf16.msra.mxu0 0
  %2028 = vmatpush.bf16.msra.mxu0 0
  %2029 = vmatpush.bf16.msra.mxu0 %v2020
  %2030 = vmatmul.bf16.gmra.mxu0 %v2014
  %v2031 = vpop.f32.mrf.mxu0
  %v2032 = vadd.f32 0.0, %v2031
  %v2033 = vpop.f32.mrf.mxu0
  %v2034 = vadd.f32 0.0, %v2033
  %2035 = vmatmul.bf16.gmra.mxu0 %v2017
  %v2036 = vpop.f32.mrf.mxu0
  %v2037 = vadd.f32 0.0, %v2036
  %v2038 = vpop.f32.mrf.mxu0
  %2039 = vdwg.mxu0
  %v2040 = vadd.f32 %v2007, %v2032
  %v2041 = vadd.f32 %v2008, %v2034
  %v2042 = vadd.f32 %v2009, %v2037
  %2043 = vst [vmem:[#allocation4] sm:$0xff] %v2040
  %2044 = vst [vmem:[#allocation4 + $0x8] sm:$0xff] %v2041
  %2045 = vst [vmem:[#allocation4 + $0x10] sm:$0xff] %v2042
  %v2046 = vld [vmem:[#allocation3 + $0x10] sm:$0xff]
  %v2047 = vld [vmem:[#allocation3 + $0x18] sm:$0xff]
  %v2048 = vld [vmem:[#allocation4] sm:$0xff]
  %v2049 = vld [vmem:[#allocation4 + $0x8] sm:$0xff]
  %v2050 = vld [vmem:[%s11 + $0x30] sm:$0xf]
  %v2051 = vpack.c.bf16 %v2047, %v2046
  %v2053 = vsel %vm1567, %v2051, 0
  %v2056 = vsel %vm1571, %v2050, 0
  %2058 = vmatpush.bf16.msra.mxu0 0
  %2059 = vmatpush.bf16.msra.mxu0 0
  %2060 = vmatpush.bf16.msra.mxu0 0
  %2061 = vmatpush.bf16.msra.mxu0 0
  %2062 = vmatpush.bf16.msra.mxu0 0
  %2063 = vmatpush.bf16.msra.mxu0 0
  %2064 = vmatpush.bf16.msra.mxu0 0
  %2065 = vmatpush.bf16.msra.mxu0 %v2056
  %2066 = vmatmul.bf16.gmra.mxu0 %v2053
  %v2067 = vpop.f32.mrf.mxu0
  %v2068 = vadd.f32 0.0, %v2067
  %v2069 = vpop.f32.mrf.mxu0
  %v2070 = vadd.f32 0.0, %v2069
  %2071 = vdwg.mxu0
  %v2072 = vadd.f32 %v2048, %v2068
  %v2073 = vadd.f32 %v2049, %v2070
  %2074 = vst [vmem:[#allocation4] sm:$0xff] %v2072
  %2075 = vst [vmem:[#allocation4 + $0x8] sm:$0xff] %v2073
  %v2076 = vld [vmem:[#allocation3 + $0x30] sm:$0xff]
  %v2077 = vld [vmem:[#allocation3 + $0x38] sm:$0xff]
  %v2078 = vld [vmem:[#allocation4] sm:$0xff]
  %v2079 = vld [vmem:[#allocation4 + $0x8] sm:$0xff]
  %v2080 = vld [vmem:[%s11 + $0x34] sm:$0xf]
  %v2081 = vpack.c.bf16 %v2077, %v2076
  %v2083 = vsel %vm1567, %v2081, 0
  %v2086 = vsel %vm1571, %v2080, 0
  %2088 = vmatpush.bf16.msra.mxu0 0
  %2089 = vmatpush.bf16.msra.mxu0 0
  %2090 = vmatpush.bf16.msra.mxu0 0
  %2091 = vmatpush.bf16.msra.mxu0 0
  %2092 = vmatpush.bf16.msra.mxu0 0
  %2093 = vmatpush.bf16.msra.mxu0 0
  %2094 = vmatpush.bf16.msra.mxu0 0
  %2095 = vmatpush.bf16.msra.mxu0 %v2086
  %2096 = vmatmul.bf16.gmra.mxu0 %v2083
  %v2097 = vpop.f32.mrf.mxu0
  %v2098 = vadd.f32 0.0, %v2097
  %v2099 = vpop.f32.mrf.mxu0
  %v2100 = vadd.f32 0.0, %v2099
  %2101 = vdwg.mxu0
  %v2102 = vadd.f32 %v2078, %v2098
  %v2103 = vadd.f32 %v2079, %v2100
  %2104 = vst [vmem:[#allocation4] sm:$0xff] %v2102
  %2105 = vst [vmem:[#allocation4 + $0x8] sm:$0xff] %v2103
  %v2106 = vld [vmem:[#allocation3 + $0x50] sm:$0xff]
  %v2107 = vld [vmem:[#allocation3 + $0x58] sm:$0xff]
  %v2108 = vld [vmem:[#allocation4] sm:$0xff]
  %v2109 = vld [vmem:[#allocation4 + $0x8] sm:$0xff]
  %v2110 = vld [vmem:[%s11 + $0x38] sm:$0xf]
  %v2111 = vpack.c.bf16 %v2107, %v2106
  %v2113 = vsel %vm1567, %v2111, 0
  %v2116 = vsel %vm1571, %v2110, 0
  %2118 = vmatpush.bf16.msra.mxu0 0
  %2119 = vmatpush.bf16.msra.mxu0 0
  %2120 = vmatpush.bf16.msra.mxu0 0
  %2121 = vmatpush.bf16.msra.mxu0 0
  %2122 = vmatpush.bf16.msra.mxu0 0
  %2123 = vmatpush.bf16.msra.mxu0 0
  %2124 = vmatpush.bf16.msra.mxu0 0
  %2125 = vmatpush.bf16.msra.mxu0 %v2116
  %2126 = vmatmul.bf16.gmra.mxu0 %v2113
  %v2127 = vpop.f32.mrf.mxu0
  %v2128 = vadd.f32 0.0, %v2127
  %v2129 = vpop.f32.mrf.mxu0
  %v2130 = vadd.f32 0.0, %v2129
  %2131 = vdwg.mxu0
  %v2132 = vadd.f32 %v2108, %v2128
  %v2133 = vadd.f32 %v2109, %v2130
  %2134 = vst [vmem:[#allocation4] sm:$0xff] %v2132
  %2135 = vst [vmem:[#allocation4 + $0x8] sm:$0xff] %v2133
  %v2136 = vld [vmem:[%s13] sm:$0x1]
  %v2137 = vld [vmem:[%s15] sm:$0xf]
  %v2138 = vld [vmem:[%s15 + $0x4] sm:$0xf]
  %v2139 = vld [vmem:[%s15 + $0x8] sm:$0xf]
  %v2140 = vld [vmem:[%s15 + $0xc] sm:$0xf]
  %v2141 = vld [vmem:[%s15 + $0x10] sm:$0xf]
  %v2142 = vld [vmem:[%s15 + $0x14] sm:$0xf]
  %v2143 = vld [vmem:[%s15 + $0x18] sm:$0xf]
  %v2144 = vld [vmem:[%s15 + $0x1c] sm:$0xf]
  %v2145 = vld [vmem:[%s15 + $0x20] sm:$0xf]
  %v2146 = vld [vmem:[%s15 + $0x24] sm:$0xf]
  %v2147 = vld [vmem:[%s15 + $0x28] sm:$0xf]
  %v2148 = vld [vmem:[%s15 + $0x2c] sm:$0xf]
  %v2149 = vld [vmem:[%s15 + $0x30] sm:$0xf]
  %v2150 = vld [vmem:[%s15 + $0x34] sm:$0xf]
  %v2151 = vld [vmem:[%s15 + $0x38] sm:$0xf]
  %v2152 = vld [vmem:[%s15 + $0x3c] sm:$0xf]
  %v2153 = vld [vmem:[%s17] sm:$0x1]
  %v2154 = vld [vmem:[#allocation4] sm:$0xff]
  %v2155 = vld [vmem:[#allocation4 + $0x8] sm:$0xff]
  %v2156 = vmax.f32 %v2154, %v2155
  %v2157 = vld [vmem:[#allocation4 + $0x10] sm:$0xff]
  %v2158 = vmax.f32 %v2156, %v2157
  %v2159 = vld [vmem:[#allocation4 + $0x18] sm:$0xff]
  %v2160 = vmax.f32 %v2158, %v2159
  %v2162 = vperm.slane %v2136, 0
  %v2164 = vadd.f32 %v2160, %v2162
  %vm2165 = vcmp.ge.f32.partialorder %v2164, 0.0
  %v2166 = vmul.f32 %v2164, 0.01
  %v2167 = vsel %vm2165, %v2164, %v2166
  %v2168 = vpack.c.bf16 %v2167, %v2167
  %v2170 = vperm.slane %v2153, 0
  %v2188 = vunpack.c.l.b16 %v2137
  %v2189 = vunpack.c.l.b16 %v2138
  %v2190 = vunpack.c.l.b16 %v2139
  %v2191 = vunpack.c.l.b16 %v2140
  %v2192 = vunpack.c.l.b16 %v2141
  %v2193 = vunpack.c.l.b16 %v2142
  %v2194 = vunpack.c.l.b16 %v2143
  %v2195 = vunpack.c.l.b16 %v2144
  %v2196 = vunpack.c.l.b16 %v2145
  %v2197 = vunpack.c.l.b16 %v2146
  %v2198 = vunpack.c.l.b16 %v2147
  %v2199 = vunpack.c.l.b16 %v2148
  %v2200 = vunpack.c.l.b16 %v2149
  %v2201 = vunpack.c.l.b16 %v2150
  %v2202 = vunpack.c.l.b16 %v2151
  %v2203 = vunpack.c.l.b16 %v2152
  %v2204 = vpack.c.b16 %v2189, %v2188
  %v2205 = vpack.c.b16 %v2191, %v2190
  %v2206 = vpack.c.b16 %v2193, %v2192
  %v2207 = vpack.c.b16 %v2195, %v2194
  %v2208 = vpack.c.b16 %v2197, %v2196
  %v2209 = vpack.c.b16 %v2199, %v2198
  %v2210 = vpack.c.b16 %v2201, %v2200
  %v2211 = vpack.c.b16 %v2203, %v2202
  %2220 = vmatpush.bf16.msra.mxu0 %v2211
  %2221 = vmatpush.bf16.msra.mxu0 %v2210
  %2222 = vmatpush.bf16.msra.mxu0 %v2209
  %2223 = vmatpush.bf16.msra.mxu0 %v2208
  %2224 = vmatpush.bf16.msra.mxu0 %v2207
  %2225 = vmatpush.bf16.msra.mxu0 %v2206
  %2226 = vmatpush.bf16.msra.mxu0 %v2205
  %2227 = vmatpush.bf16.msra.mxu0 %v2204
  %2228 = vmatmul.bf16.gmra.mxu0 %v2168
  %v2229 = vpop.f32.mrf.mxu0
  %v2230 = vadd.f32 %v2170, %v2229
  %v2231 = vpop.f32.mrf.mxu0
  %2232 = vdwg.mxu0
  %vm2233 = vcmp.ge.f32.partialorder %v2230, 0.0
  %v2234 = vmul.f32 %v2230, 0.01
  %v2235 = vsel %vm2233, %v2230, %v2234
  %2236 = vst [vmem:[#allocation5] sm:$0xff] %v2235
  %v2237 = vld [vmem:[#allocation4] sm:$0xff]
  %v2238 = vld [vmem:[#allocation4 + $0x8] sm:$0xff]
  %v2239 = vmax.f32 %v2237, %v2238
  %v2240 = vld [vmem:[#allocation4 + $0x10] sm:$0xff]
  %v2241 = vmax.f32 %v2239, %v2240
  %v2242 = vld [vmem:[#allocation4 + $0x18] sm:$0xff]
  %v2243 = vmax.f32 %v2241, %v2242
  %v2244 = vadd.f32 %v2243, %v2162
  %vm2245 = vcmp.ge.f32.partialorder %v2244, 0.0
  %v2246 = vmul.f32 %v2244, 0.01
  %v2247 = vsel %vm2245, %v2244, %v2246
  %v2248 = vpack.c.bf16 %v2247, %v2247
  %2249 = vmatpush.bf16.msra.mxu0 %v2211
  %2250 = vmatpush.bf16.msra.mxu0 %v2210
  %2251 = vmatpush.bf16.msra.mxu0 %v2209
  %2252 = vmatpush.bf16.msra.mxu0 %v2208
  %2253 = vmatpush.bf16.msra.mxu0 %v2207
  %2254 = vmatpush.bf16.msra.mxu0 %v2206
  %2255 = vmatpush.bf16.msra.mxu0 %v2205
  %2256 = vmatpush.bf16.msra.mxu0 %v2204
  %2257 = vmatmul.bf16.gmra.mxu0 %v2248
  %v2258 = vpop.f32.mrf.mxu0
  %v2259 = vadd.f32 %v2170, %v2258
  %v2260 = vpop.f32.mrf.mxu0
  %2261 = vdwg.mxu0
  %vm2262 = vcmp.ge.f32.partialorder %v2259, 0.0
  %v2263 = vmul.f32 %v2259, 0.01
  %v2264 = vsel %vm2262, %v2259, %v2263
  %2265 = vst [vmem:[#allocation5 + $0x8] sm:$0xff] %v2264
  %v2266 = vld [vmem:[#allocation3] sm:$0xff]
  %v2267 = vld [vmem:[%s19] sm:$0xf]
  %v2268 = vpack.c.bf16 %v2266, %v2266
  %v2269 = vld [vmem:[#allocation3 + $0x8] sm:$0xff]
  %v2270 = vld [vmem:[%s19 + $0x4] sm:$0xf]
  %v2271 = vpack.c.bf16 %v2269, %v2269
  %v2273 = vsel %vm1567, %v2271, 0
  %v2276 = vsel %vm1571, %v2270, 0
  %2278 = vmatpush.bf16.msra.mxu0 0
  %2279 = vmatpush.bf16.msra.mxu0 0
  %2280 = vmatpush.bf16.msra.mxu0 0
  %2281 = vmatpush.bf16.msra.mxu0 0
  %2282 = vmatpush.bf16.msra.mxu0 0
  %2283 = vmatpush.bf16.msra.mxu0 0
  %2284 = vmatpush.bf16.msra.mxu0 0
  %2285 = vmatpush.bf16.msra.mxu0 %v2276
  %2286 = vmatmul.bf16.gmra.mxu0 %v2273
  %v2287 = vpop.f32.mrf.mxu0
  %v2288 = vadd.f32 0.0, %v2287
  %v2289 = vpop.f32.mrf.mxu0
  %2290 = vdwg.mxu0
  %v2292 = vsel %vm1567, %v2268, 0
  %v2295 = vsel %vm1571, %v2267, 0
  %2297 = vmatpush.bf16.msra.mxu0 0
  %2298 = vmatpush.bf16.msra.mxu0 0
  %2299 = vmatpush.bf16.msra.mxu0 0
  %2300 = vmatpush.bf16.msra.mxu0 0
  %2301 = vmatpush.bf16.msra.mxu0 0
  %2302 = vmatpush.bf16.msra.mxu0 0
  %2303 = vmatpush.bf16.msra.mxu0 0
  %2304 = vmatpush.bf16.msra.mxu0 %v2295
  %2305 = vmatmul.bf16.gmra.mxu0 %v2292
  %v2306 = vpop.f32.mrf.mxu0
  %v2307 = vadd.f32 %v2288, %v2306
  %v2308 = vpop.f32.mrf.mxu0
  %2309 = vdwg.mxu0
  %v2310 = vld [vmem:[#allocation3 + $0x10] sm:$0xff]
  %v2311 = vld [vmem:[%s19 + $0x8] sm:$0xf]
  %v2312 = vpack.c.bf16 %v2310, %v2310
  %v2314 = vsel %vm1567, %v2312, 0
  %v2317 = vsel %vm1571, %v2311, 0
  %2319 = vmatpush.bf16.msra.mxu0 0
  %2320 = vmatpush.bf16.msra.mxu0 0
  %2321 = vmatpush.bf16.msra.mxu0 0
  %2322 = vmatpush.bf16.msra.mxu0 0
  %2323 = vmatpush.bf16.msra.mxu0 0
  %2324 = vmatpush.bf16.msra.mxu0 0
  %2325 = vmatpush.bf16.msra.mxu0 0
  %2326 = vmatpush.bf16.msra.mxu0 %v2317
  %2327 = vmatmul.bf16.gmra.mxu0 %v2314
  %v2328 = vpop.f32.mrf.mxu0
  %v2329 = vadd.f32 0.0, %v2328
  %v2330 = vpop.f32.mrf.mxu0
  %2331 = vdwg.mxu0
  %v2332 = vadd.f32 %v2307, %v2329
  %v2333 = vld [vmem:[#allocation3 + $0x18] sm:$0xff]
  %v2334 = vld [vmem:[%s19 + $0xc] sm:$0xf]
  %v2335 = vpack.c.bf16 %v2333, %v2333
  %v2337 = vsel %vm1567, %v2335, 0
  %v2340 = vsel %vm1571, %v2334, 0
  %2342 = vmatpush.bf16.msra.mxu0 0
  %2343 = vmatpush.bf16.msra.mxu0 0
  %2344 = vmatpush.bf16.msra.mxu0 0
  %2345 = vmatpush.bf16.msra.mxu0 0
  %2346 = vmatpush.bf16.msra.mxu0 0
  %2347 = vmatpush.bf16.msra.mxu0 0
  %2348 = vmatpush.bf16.msra.mxu0 0
  %2349 = vmatpush.bf16.msra.mxu0 %v2340
  %2350 = vmatmul.bf16.gmra.mxu0 %v2337
  %v2351 = vpop.f32.mrf.mxu0
  %v2352 = vadd.f32 0.0, %v2351
  %v2353 = vpop.f32.mrf.mxu0
  %2354 = vdwg.mxu0
  %v2355 = vadd.f32 %v2332, %v2352
  %v2356 = vld [vmem:[#allocation3 + $0x20] sm:$0xff]
  %v2357 = vld [vmem:[%s19 + $0x10] sm:$0xf]
  %v2358 = vpack.c.bf16 %v2356, %v2356
  %v2360 = vsel %vm1567, %v2358, 0
  %v2363 = vsel %vm1571, %v2357, 0
  %2365 = vmatpush.bf16.msra.mxu0 0
  %2366 = vmatpush.bf16.msra.mxu0 0
  %2367 = vmatpush.bf16.msra.mxu0 0
  %2368 = vmatpush.bf16.msra.mxu0 0
  %2369 = vmatpush.bf16.msra.mxu0 0
  %2370 = vmatpush.bf16.msra.mxu0 0
  %2371 = vmatpush.bf16.msra.mxu0 0
  %2372 = vmatpush.bf16.msra.mxu0 %v2363
  %2373 = vmatmul.bf16.gmra.mxu0 %v2360
  %v2374 = vpop.f32.mrf.mxu0
  %v2375 = vadd.f32 0.0, %v2374
  %v2376 = vpop.f32.mrf.mxu0
  %2377 = vdwg.mxu0
  %v2378 = vadd.f32 %v2355, %v2375
  %v2379 = vld [vmem:[#allocation3 + $0x28] sm:$0xff]
  %v2380 = vld [vmem:[%s19 + $0x14] sm:$0xf]
  %v2381 = vpack.c.bf16 %v2379, %v2379
  %v2383 = vsel %vm1567, %v2381, 0
  %v2386 = vsel %vm1571, %v2380, 0
  %2388 = vmatpush.bf16.msra.mxu0 0
  %2389 = vmatpush.bf16.msra.mxu0 0
  %2390 = vmatpush.bf16.msra.mxu0 0
  %2391 = vmatpush.bf16.msra.mxu0 0
  %2392 = vmatpush.bf16.msra.mxu0 0
  %2393 = vmatpush.bf16.msra.mxu0 0
  %2394 = vmatpush.bf16.msra.mxu0 0
  %2395 = vmatpush.bf16.msra.mxu0 %v2386
  %2396 = vmatmul.bf16.gmra.mxu0 %v2383
  %v2397 = vpop.f32.mrf.mxu0
  %v2398 = vadd.f32 0.0, %v2397
  %v2399 = vpop.f32.mrf.mxu0
  %2400 = vdwg.mxu0
  %v2401 = vadd.f32 %v2378, %v2398
  %v2402 = vld [vmem:[#allocation3 + $0x30] sm:$0xff]
  %v2403 = vld [vmem:[%s19 + $0x18] sm:$0xf]
  %v2404 = vpack.c.bf16 %v2402, %v2402
  %v2406 = vsel %vm1567, %v2404, 0
  %v2409 = vsel %vm1571, %v2403, 0
  %2411 = vmatpush.bf16.msra.mxu0 0
  %2412 = vmatpush.bf16.msra.mxu0 0
  %2413 = vmatpush.bf16.msra.mxu0 0
  %2414 = vmatpush.bf16.msra.mxu0 0
  %2415 = vmatpush.bf16.msra.mxu0 0
  %2416 = vmatpush.bf16.msra.mxu0 0
  %2417 = vmatpush.bf16.msra.mxu0 0
  %2418 = vmatpush.bf16.msra.mxu0 %v2409
  %2419 = vmatmul.bf16.gmra.mxu0 %v2406
  %v2420 = vpop.f32.mrf.mxu0
  %v2421 = vadd.f32 0.0, %v2420
  %v2422 = vpop.f32.mrf.mxu0
  %2423 = vdwg.mxu0
  %v2424 = vadd.f32 %v2401, %v2421
  %v2425 = vld [vmem:[#allocation3 + $0x38] sm:$0xff]
  %v2426 = vld [vmem:[%s19 + $0x1c] sm:$0xf]
  %v2427 = vpack.c.bf16 %v2425, %v2425
  %v2429 = vsel %vm1567, %v2427, 0
  %v2432 = vsel %vm1571, %v2426, 0
  %2434 = vmatpush.bf16.msra.mxu0 0
  %2435 = vmatpush.bf16.msra.mxu0 0
  %2436 = vmatpush.bf16.msra.mxu0 0
  %2437 = vmatpush.bf16.msra.mxu0 0
  %2438 = vmatpush.bf16.msra.mxu0 0
  %2439 = vmatpush.bf16.msra.mxu0 0
  %2440 = vmatpush.bf16.msra.mxu0 0
  %2441 = vmatpush.bf16.msra.mxu0 %v2432
  %2442 = vmatmul.bf16.gmra.mxu0 %v2429
  %v2443 = vpop.f32.mrf.mxu0
  %v2444 = vadd.f32 0.0, %v2443
  %v2445 = vpop.f32.mrf.mxu0
  %2446 = vdwg.mxu0
  %v2447 = vadd.f32 %v2424, %v2444
  %v2448 = vld [vmem:[#allocation3 + $0x40] sm:$0xff]
  %v2449 = vld [vmem:[%s19 + $0x20] sm:$0xf]
  %v2450 = vpack.c.bf16 %v2448, %v2448
  %v2452 = vsel %vm1567, %v2450, 0
  %v2455 = vsel %vm1571, %v2449, 0
  %2457 = vmatpush.bf16.msra.mxu0 0
  %2458 = vmatpush.bf16.msra.mxu0 0
  %2459 = vmatpush.bf16.msra.mxu0 0
  %2460 = vmatpush.bf16.msra.mxu0 0
  %2461 = vmatpush.bf16.msra.mxu0 0
  %2462 = vmatpush.bf16.msra.mxu0 0
  %2463 = vmatpush.bf16.msra.mxu0 0
  %2464 = vmatpush.bf16.msra.mxu0 %v2455
  %2465 = vmatmul.bf16.gmra.mxu0 %v2452
  %v2466 = vpop.f32.mrf.mxu0
  %v2467 = vadd.f32 0.0, %v2466
  %v2468 = vpop.f32.mrf.mxu0
  %2469 = vdwg.mxu0
  %v2470 = vadd.f32 %v2447, %v2467
  %v2471 = vld [vmem:[#allocation3 + $0x48] sm:$0xff]
  %v2472 = vld [vmem:[%s19 + $0x24] sm:$0xf]
  %v2473 = vpack.c.bf16 %v2471, %v2471
  %v2475 = vsel %vm1567, %v2473, 0
  %v2478 = vsel %vm1571, %v2472, 0
  %2480 = vmatpush.bf16.msra.mxu0 0
  %2481 = vmatpush.bf16.msra.mxu0 0
  %2482 = vmatpush.bf16.msra.mxu0 0
  %2483 = vmatpush.bf16.msra.mxu0 0
  %2484 = vmatpush.bf16.msra.mxu0 0
  %2485 = vmatpush.bf16.msra.mxu0 0
  %2486 = vmatpush.bf16.msra.mxu0 0
  %2487 = vmatpush.bf16.msra.mxu0 %v2478
  %2488 = vmatmul.bf16.gmra.mxu0 %v2475
  %v2489 = vpop.f32.mrf.mxu0
  %v2490 = vadd.f32 0.0, %v2489
  %v2491 = vpop.f32.mrf.mxu0
  %2492 = vdwg.mxu0
  %v2493 = vadd.f32 %v2470, %v2490
  %v2494 = vld [vmem:[#allocation3 + $0x50] sm:$0xff]
  %v2495 = vld [vmem:[%s19 + $0x28] sm:$0xf]
  %v2496 = vpack.c.bf16 %v2494, %v2494
  %v2498 = vsel %vm1567, %v2496, 0
  %v2501 = vsel %vm1571, %v2495, 0
  %2503 = vmatpush.bf16.msra.mxu0 0
  %2504 = vmatpush.bf16.msra.mxu0 0
  %2505 = vmatpush.bf16.msra.mxu0 0
  %2506 = vmatpush.bf16.msra.mxu0 0
  %2507 = vmatpush.bf16.msra.mxu0 0
  %2508 = vmatpush.bf16.msra.mxu0 0
  %2509 = vmatpush.bf16.msra.mxu0 0
  %2510 = vmatpush.bf16.msra.mxu0 %v2501
  %2511 = vmatmul.bf16.gmra.mxu0 %v2498
  %v2512 = vpop.f32.mrf.mxu0
  %v2513 = vadd.f32 0.0, %v2512
  %v2514 = vpop.f32.mrf.mxu0
  %2515 = vdwg.mxu0
  %v2516 = vadd.f32 %v2493, %v2513
  %v2517 = vld [vmem:[#allocation3 + $0x58] sm:$0xff]
  %v2518 = vld [vmem:[%s19 + $0x2c] sm:$0xf]
  %v2519 = vpack.c.bf16 %v2517, %v2517
  %v2521 = vsel %vm1567, %v2519, 0
  %v2524 = vsel %vm1571, %v2518, 0
  %2526 = vmatpush.bf16.msra.mxu0 0
  %2527 = vmatpush.bf16.msra.mxu0 0
  %2528 = vmatpush.bf16.msra.mxu0 0
  %2529 = vmatpush.bf16.msra.mxu0 0
  %2530 = vmatpush.bf16.msra.mxu0 0
  %2531 = vmatpush.bf16.msra.mxu0 0
  %2532 = vmatpush.bf16.msra.mxu0 0
  %2533 = vmatpush.bf16.msra.mxu0 %v2524
  %2534 = vmatmul.bf16.gmra.mxu0 %v2521
  %v2535 = vpop.f32.mrf.mxu0
  %v2536 = vadd.f32 0.0, %v2535
  %v2537 = vpop.f32.mrf.mxu0
  %2538 = vdwg.mxu0
  %v2539 = vadd.f32 %v2516, %v2536
  %v2540 = vld [vmem:[%s21] sm:$0x1]
  %v2542 = vperm.slane %v2540, 0
  %v2544 = vadd.f32 %v2539, %v2542
  %vm2545 = vcmp.ge.f32.partialorder %v2544, 0.0
  %v2546 = vmul.f32 %v2544, 0.01
  %v2547 = vsel %vm2545, %v2544, %v2546
  %v2548 = vld [vmem:[%s23] sm:$0xf]
  %v2549 = vld [vmem:[%s23 + $0x4] sm:$0xf]
  %v2550 = vld [vmem:[%s23 + $0x8] sm:$0xf]
  %v2551 = vld [vmem:[%s23 + $0xc] sm:$0xf]
  %v2552 = vld [vmem:[%s23 + $0x10] sm:$0xf]
  %v2553 = vld [vmem:[%s23 + $0x14] sm:$0xf]
  %v2554 = vld [vmem:[%s23 + $0x18] sm:$0xf]
  %v2555 = vld [vmem:[%s23 + $0x1c] sm:$0xf]
  %v2556 = vld [vmem:[%s23 + $0x20] sm:$0xf]
  %v2557 = vld [vmem:[%s23 + $0x24] sm:$0xf]
  %v2558 = vld [vmem:[%s23 + $0x28] sm:$0xf]
  %v2559 = vld [vmem:[%s23 + $0x2c] sm:$0xf]
  %v2560 = vld [vmem:[%s23 + $0x30] sm:$0xf]
  %v2561 = vld [vmem:[%s23 + $0x34] sm:$0xf]
  %v2562 = vld [vmem:[%s23 + $0x38] sm:$0xf]
  %v2563 = vld [vmem:[%s23 + $0x3c] sm:$0xf]
  %v2564 = vpack.c.bf16 %v2547, %v2547
  %v2565 = vld [vmem:[%s25] sm:$0x1]
  %v2567 = vperm.slane %v2565, 0
  %v2585 = vunpack.c.l.b16 %v2548
  %v2586 = vunpack.c.l.b16 %v2549
  %v2587 = vunpack.c.l.b16 %v2550
  %v2588 = vunpack.c.l.b16 %v2551
  %v2589 = vunpack.c.l.b16 %v2552
  %v2590 = vunpack.c.l.b16 %v2553
  %v2591 = vunpack.c.l.b16 %v2554
  %v2592 = vunpack.c.l.b16 %v2555
  %v2593 = vunpack.c.l.b16 %v2556
  %v2594 = vunpack.c.l.b16 %v2557
  %v2595 = vunpack.c.l.b16 %v2558
  %v2596 = vunpack.c.l.b16 %v2559
  %v2597 = vunpack.c.l.b16 %v2560
  %v2598 = vunpack.c.l.b16 %v2561
  %v2599 = vunpack.c.l.b16 %v2562
  %v2600 = vunpack.c.l.b16 %v2563
  %v2601 = vpack.c.b16 %v2586, %v2585
  %v2602 = vpack.c.b16 %v2588, %v2587
  %v2603 = vpack.c.b16 %v2590, %v2589
  %v2604 = vpack.c.b16 %v2592, %v2591
  %v2605 = vpack.c.b16 %v2594, %v2593
  %v2606 = vpack.c.b16 %v2596, %v2595
  %v2607 = vpack.c.b16 %v2598, %v2597
  %v2608 = vpack.c.b16 %v2600, %v2599
  %2617 = vmatpush.bf16.msra.mxu0 %v2608
  %2618 = vmatpush.bf16.msra.mxu0 %v2607
  %2619 = vmatpush.bf16.msra.mxu0 %v2606
  %2620 = vmatpush.bf16.msra.mxu0 %v2605
  %2621 = vmatpush.bf16.msra.mxu0 %v2604
  %2622 = vmatpush.bf16.msra.mxu0 %v2603
  %2623 = vmatpush.bf16.msra.mxu0 %v2602
  %2624 = vmatpush.bf16.msra.mxu0 %v2601
  %2625 = vmatmul.bf16.gmra.mxu0 %v2564
  %v2626 = vpop.f32.mrf.mxu0
  %v2627 = vadd.f32 %v2567, %v2626
  %v2628 = vpop.f32.mrf.mxu0
  %2629 = vdwg.mxu0
  %vm2630 = vcmp.ge.f32.partialorder %v2627, 0.0
  %v2631 = vmul.f32 %v2627, 0.01
  %v2632 = vsel %vm2630, %v2627, %v2631
  %v2633 = vld [vmem:[%s27] sm:$0xf]
  %v2634 = vld [vmem:[%s27 + $0x4] sm:$0xf]
  %v2635 = vld [vmem:[%s27 + $0x8] sm:$0xf]
  %v2636 = vld [vmem:[%s27 + $0xc] sm:$0xf]
  %v2637 = vld [vmem:[%s27 + $0x10] sm:$0xf]
  %v2638 = vld [vmem:[%s27 + $0x14] sm:$0xf]
  %v2639 = vld [vmem:[%s27 + $0x18] sm:$0xf]
  %v2640 = vld [vmem:[%s27 + $0x1c] sm:$0xf]
  %v2641 = vld [vmem:[%s27 + $0x20] sm:$0xf]
  %v2642 = vld [vmem:[%s27 + $0x24] sm:$0xf]
  %v2643 = vld [vmem:[%s27 + $0x28] sm:$0xf]
  %v2644 = vld [vmem:[%s27 + $0x2c] sm:$0xf]
  %v2645 = vld [vmem:[%s27 + $0x30] sm:$0xf]
  %v2646 = vld [vmem:[%s27 + $0x34] sm:$0xf]
  %v2647 = vld [vmem:[%s27 + $0x38] sm:$0xf]
  %v2648 = vld [vmem:[%s27 + $0x3c] sm:$0xf]
  %v2649 = vpack.c.bf16 %v2632, %v2632
  %v2650 = vld [vmem:[%s29] sm:$0x1]
  %v2652 = vperm.slane %v2650, 0
  %v2670 = vunpack.c.l.b16 %v2633
  %v2671 = vunpack.c.l.b16 %v2634
  %v2672 = vunpack.c.l.b16 %v2635
  %v2673 = vunpack.c.l.b16 %v2636
  %v2674 = vunpack.c.l.b16 %v2637
  %v2675 = vunpack.c.l.b16 %v2638
  %v2676 = vunpack.c.l.b16 %v2639
  %v2677 = vunpack.c.l.b16 %v2640
  %v2678 = vunpack.c.l.b16 %v2641
  %v2679 = vunpack.c.l.b16 %v2642
  %v2680 = vunpack.c.l.b16 %v2643
  %v2681 = vunpack.c.l.b16 %v2644
  %v2682 = vunpack.c.l.b16 %v2645
  %v2683 = vunpack.c.l.b16 %v2646
  %v2684 = vunpack.c.l.b16 %v2647
  %v2685 = vunpack.c.l.b16 %v2648
  %v2686 = vpack.c.b16 %v2671, %v2670
  %v2687 = vpack.c.b16 %v2673, %v2672
  %v2688 = vpack.c.b16 %v2675, %v2674
  %v2689 = vpack.c.b16 %v2677, %v2676
  %v2690 = vpack.c.b16 %v2679, %v2678
  %v2691 = vpack.c.b16 %v2681, %v2680
  %v2692 = vpack.c.b16 %v2683, %v2682
  %v2693 = vpack.c.b16 %v2685, %v2684
  %2702 = vmatpush.bf16.msra.mxu0 %v2693
  %2703 = vmatpush.bf16.msra.mxu0 %v2692
  %2704 = vmatpush.bf16.msra.mxu0 %v2691
  %2705 = vmatpush.bf16.msra.mxu0 %v2690
  %2706 = vmatpush.bf16.msra.mxu0 %v2689
  %2707 = vmatpush.bf16.msra.mxu0 %v2688
  %2708 = vmatpush.bf16.msra.mxu0 %v2687
  %2709 = vmatpush.bf16.msra.mxu0 %v2686
  %2710 = vmatmul.bf16.gmra.mxu0 %v2649
  %v2711 = vpop.f32.mrf.mxu0
  %v2712 = vadd.f32 %v2652, %v2711
  %v2713 = vpop.f32.mrf.mxu0
  %2714 = vdwg.mxu0
  %vm2715 = vcmp.ge.f32.partialorder %v2712, 0.0
  %v2716 = vmul.f32 %v2712, 0.01
  %v2717 = vsel %vm2715, %v2712, %v2716
  %v2718 = vld [vmem:[%s31] sm:$0xf]
  %v2719 = vld [vmem:[%s31 + $0x4] sm:$0xf]
  %v2720 = vld [vmem:[%s31 + $0x8] sm:$0xf]
  %v2721 = vld [vmem:[%s31 + $0xc] sm:$0xf]
  %v2722 = vld [vmem:[%s31 + $0x10] sm:$0xf]
  %v2723 = vld [vmem:[%s31 + $0x14] sm:$0xf]
  %v2724 = vld [vmem:[%s31 + $0x18] sm:$0xf]
  %v2725 = vld [vmem:[%s31 + $0x1c] sm:$0xf]
  %v2726 = vld [vmem:[%s31 + $0x20] sm:$0xf]
  %v2727 = vld [vmem:[%s31 + $0x24] sm:$0xf]
  %v2728 = vld [vmem:[%s31 + $0x28] sm:$0xf]
  %v2729 = vld [vmem:[%s31 + $0x2c] sm:$0xf]
  %v2730 = vld [vmem:[%s31 + $0x30] sm:$0xf]
  %v2731 = vld [vmem:[%s31 + $0x34] sm:$0xf]
  %v2732 = vld [vmem:[%s31 + $0x38] sm:$0xf]
  %v2733 = vld [vmem:[%s31 + $0x3c] sm:$0xf]
  %v2734 = vpack.c.bf16 %v2717, %v2717
  %v2735 = vld [vmem:[%s33] sm:$0x1]
  %v2737 = vperm.slane %v2735, 0
  %v2755 = vunpack.c.l.b16 %v2718
  %v2756 = vunpack.c.l.b16 %v2719
  %v2757 = vunpack.c.l.b16 %v2720
  %v2758 = vunpack.c.l.b16 %v2721
  %v2759 = vunpack.c.l.b16 %v2722
  %v2760 = vunpack.c.l.b16 %v2723
  %v2761 = vunpack.c.l.b16 %v2724
  %v2762 = vunpack.c.l.b16 %v2725
  %v2763 = vunpack.c.l.b16 %v2726
  %v2764 = vunpack.c.l.b16 %v2727
  %v2765 = vunpack.c.l.b16 %v2728
  %v2766 = vunpack.c.l.b16 %v2729
  %v2767 = vunpack.c.l.b16 %v2730
  %v2768 = vunpack.c.l.b16 %v2731
  %v2769 = vunpack.c.l.b16 %v2732
  %v2770 = vunpack.c.l.b16 %v2733
  %v2771 = vpack.c.b16 %v2756, %v2755
  %v2772 = vpack.c.b16 %v2758, %v2757
  %v2773 = vpack.c.b16 %v2760, %v2759
  %v2774 = vpack.c.b16 %v2762, %v2761
  %v2775 = vpack.c.b16 %v2764, %v2763
  %v2776 = vpack.c.b16 %v2766, %v2765
  %v2777 = vpack.c.b16 %v2768, %v2767
  %v2778 = vpack.c.b16 %v2770, %v2769
  %2787 = vmatpush.bf16.msra.mxu0 %v2778
  %2788 = vmatpush.bf16.msra.mxu0 %v2777
  %2789 = vmatpush.bf16.msra.mxu0 %v2776
  %2790 = vmatpush.bf16.msra.mxu0 %v2775
  %2791 = vmatpush.bf16.msra.mxu0 %v2774
  %2792 = vmatpush.bf16.msra.mxu0 %v2773
  %2793 = vmatpush.bf16.msra.mxu0 %v2772
  %2794 = vmatpush.bf16.msra.mxu0 %v2771
  %2795 = vmatmul.bf16.gmra.mxu0 %v2734
  %v2796 = vpop.f32.mrf.mxu0
  %v2797 = vadd.f32 %v2737, %v2796
  %v2798 = vpop.f32.mrf.mxu0
  %2799 = vdwg.mxu0
  %vm2800 = vcmp.ge.f32.partialorder %v2797, 0.0
  %v2801 = vmul.f32 %v2797, 0.01
  %v2802 = vsel %vm2800, %v2797, %v2801
  %v2803 = vld [vmem:[%s35] sm:$0xf]
  %v2804 = vld [vmem:[%s35 + $0x4] sm:$0xf]
  %v2805 = vld [vmem:[%s35 + $0x8] sm:$0xf]
  %v2806 = vld [vmem:[%s35 + $0xc] sm:$0xf]
  %v2807 = vld [vmem:[%s35 + $0x10] sm:$0xf]
  %v2808 = vld [vmem:[%s35 + $0x14] sm:$0xf]
  %v2809 = vld [vmem:[%s35 + $0x18] sm:$0xf]
  %v2810 = vld [vmem:[%s35 + $0x1c] sm:$0xf]
  %v2811 = vld [vmem:[%s35 + $0x20] sm:$0xf]
  %v2812 = vld [vmem:[%s35 + $0x24] sm:$0xf]
  %v2813 = vld [vmem:[%s35 + $0x28] sm:$0xf]
  %v2814 = vld [vmem:[%s35 + $0x2c] sm:$0xf]
  %v2815 = vld [vmem:[%s35 + $0x30] sm:$0xf]
  %v2816 = vld [vmem:[%s35 + $0x34] sm:$0xf]
  %v2817 = vld [vmem:[%s35 + $0x38] sm:$0xf]
  %v2818 = vld [vmem:[%s35 + $0x3c] sm:$0xf]
  %v2819 = vpack.c.bf16 %v2802, %v2802
  %v2820 = vld [vmem:[%s37] sm:$0x1]
  %v2822 = vperm.slane %v2820, 0
  %v2840 = vunpack.c.l.b16 %v2803
  %v2841 = vunpack.c.l.b16 %v2804
  %v2842 = vunpack.c.l.b16 %v2805
  %v2843 = vunpack.c.l.b16 %v2806
  %v2844 = vunpack.c.l.b16 %v2807
  %v2845 = vunpack.c.l.b16 %v2808
  %v2846 = vunpack.c.l.b16 %v2809
  %v2847 = vunpack.c.l.b16 %v2810
  %v2848 = vunpack.c.l.b16 %v2811
  %v2849 = vunpack.c.l.b16 %v2812
  %v2850 = vunpack.c.l.b16 %v2813
  %v2851 = vunpack.c.l.b16 %v2814
  %v2852 = vunpack.c.l.b16 %v2815
  %v2853 = vunpack.c.l.b16 %v2816
  %v2854 = vunpack.c.l.b16 %v2817
  %v2855 = vunpack.c.l.b16 %v2818
  %v2856 = vpack.c.b16 %v2841, %v2840
  %v2857 = vpack.c.b16 %v2843, %v2842
  %v2858 = vpack.c.b16 %v2845, %v2844
  %v2859 = vpack.c.b16 %v2847, %v2846
  %v2860 = vpack.c.b16 %v2849, %v2848
  %v2861 = vpack.c.b16 %v2851, %v2850
  %v2862 = vpack.c.b16 %v2853, %v2852
  %v2863 = vpack.c.b16 %v2855, %v2854
  %2872 = vmatpush.bf16.msra.mxu0 %v2863
  %2873 = vmatpush.bf16.msra.mxu0 %v2862
  %2874 = vmatpush.bf16.msra.mxu0 %v2861
  %2875 = vmatpush.bf16.msra.mxu0 %v2860
  %2876 = vmatpush.bf16.msra.mxu0 %v2859
  %2877 = vmatpush.bf16.msra.mxu0 %v2858
  %2878 = vmatpush.bf16.msra.mxu0 %v2857
  %2879 = vmatpush.bf16.msra.mxu0 %v2856
  %2880 = vmatmul.bf16.gmra.mxu0 %v2819
  %v2881 = vpop.f32.mrf.mxu0
  %v2882 = vadd.f32 %v2822, %v2881
  %v2883 = vpop.f32.mrf.mxu0
  %2884 = vdwg.mxu0
  %vm2885 = vcmp.ge.f32.partialorder %v2882, 0.0
  %v2886 = vmul.f32 %v2882, 0.01
  %v2887 = vsel %vm2885, %v2882, %v2886
  %v2888 = vld [vmem:[%s39] sm:$0xf]
  %v2889 = vld [vmem:[%s39 + $0x4] sm:$0xf]
  %v2890 = vld [vmem:[%s39 + $0x8] sm:$0xf]
  %v2891 = vld [vmem:[%s39 + $0xc] sm:$0xf]
  %v2892 = vld [vmem:[%s39 + $0x10] sm:$0xf]
  %v2893 = vld [vmem:[%s39 + $0x14] sm:$0xf]
  %v2894 = vld [vmem:[%s39 + $0x18] sm:$0xf]
  %v2895 = vld [vmem:[%s39 + $0x1c] sm:$0xf]
  %v2896 = vld [vmem:[%s39 + $0x20] sm:$0xf]
  %v2897 = vld [vmem:[%s39 + $0x24] sm:$0xf]
  %v2898 = vld [vmem:[%s39 + $0x28] sm:$0xf]
  %v2899 = vld [vmem:[%s39 + $0x2c] sm:$0xf]
  %v2900 = vld [vmem:[%s39 + $0x30] sm:$0xf]
  %v2901 = vld [vmem:[%s39 + $0x34] sm:$0xf]
  %v2902 = vld [vmem:[%s39 + $0x38] sm:$0xf]
  %v2903 = vld [vmem:[%s39 + $0x3c] sm:$0xf]
  %v2904 = vpack.c.bf16 %v2887, %v2887
  %v2905 = vld [vmem:[%s41] sm:$0x1]
  %v2907 = vperm.slane %v2905, 0
  %v2925 = vunpack.c.l.b16 %v2888
  %v2926 = vunpack.c.l.b16 %v2889
  %v2927 = vunpack.c.l.b16 %v2890
  %v2928 = vunpack.c.l.b16 %v2891
  %v2929 = vunpack.c.l.b16 %v2892
  %v2930 = vunpack.c.l.b16 %v2893
  %v2931 = vunpack.c.l.b16 %v2894
  %v2932 = vunpack.c.l.b16 %v2895
  %v2933 = vunpack.c.l.b16 %v2896
  %v2934 = vunpack.c.l.b16 %v2897
  %v2935 = vunpack.c.l.b16 %v2898
  %v2936 = vunpack.c.l.b16 %v2899
  %v2937 = vunpack.c.l.b16 %v2900
  %v2938 = vunpack.c.l.b16 %v2901
  %v2939 = vunpack.c.l.b16 %v2902
  %v2940 = vunpack.c.l.b16 %v2903
  %v2941 = vpack.c.b16 %v2926, %v2925
  %v2942 = vpack.c.b16 %v2928, %v2927
  %v2943 = vpack.c.b16 %v2930, %v2929
  %v2944 = vpack.c.b16 %v2932, %v2931
  %v2945 = vpack.c.b16 %v2934, %v2933
  %v2946 = vpack.c.b16 %v2936, %v2935
  %v2947 = vpack.c.b16 %v2938, %v2937
  %v2948 = vpack.c.b16 %v2940, %v2939
  %2957 = vmatpush.bf16.msra.mxu0 %v2948
  %2958 = vmatpush.bf16.msra.mxu0 %v2947
  %2959 = vmatpush.bf16.msra.mxu0 %v2946
  %2960 = vmatpush.bf16.msra.mxu0 %v2945
  %2961 = vmatpush.bf16.msra.mxu0 %v2944
  %2962 = vmatpush.bf16.msra.mxu0 %v2943
  %2963 = vmatpush.bf16.msra.mxu0 %v2942
  %2964 = vmatpush.bf16.msra.mxu0 %v2941
  %2965 = vmatmul.bf16.gmra.mxu0 %v2904
  %v2966 = vpop.f32.mrf.mxu0
  %v2967 = vadd.f32 %v2907, %v2966
  %v2968 = vpop.f32.mrf.mxu0
  %2969 = vdwg.mxu0
  %vm2970 = vcmp.ge.f32.partialorder %v2967, 0.0
  %v2971 = vmul.f32 %v2967, 0.01
  %v2972 = vsel %vm2970, %v2967, %v2971
  %v2973 = vld [vmem:[%s43] sm:$0xf]
  %v2974 = vld [vmem:[%s43 + $0x4] sm:$0xf]
  %v2975 = vld [vmem:[%s43 + $0x8] sm:$0xf]
  %v2976 = vld [vmem:[%s43 + $0xc] sm:$0xf]
  %v2977 = vld [vmem:[%s43 + $0x10] sm:$0xf]
  %v2978 = vld [vmem:[%s43 + $0x14] sm:$0xf]
  %v2979 = vld [vmem:[%s43 + $0x18] sm:$0xf]
  %v2980 = vld [vmem:[%s43 + $0x1c] sm:$0xf]
  %v2981 = vld [vmem:[%s43 + $0x20] sm:$0xf]
  %v2982 = vld [vmem:[%s43 + $0x24] sm:$0xf]
  %v2983 = vld [vmem:[%s43 + $0x28] sm:$0xf]
  %v2984 = vld [vmem:[%s43 + $0x2c] sm:$0xf]
  %v2985 = vld [vmem:[%s43 + $0x30] sm:$0xf]
  %v2986 = vld [vmem:[%s43 + $0x34] sm:$0xf]
  %v2987 = vld [vmem:[%s43 + $0x38] sm:$0xf]
  %v2988 = vld [vmem:[%s43 + $0x3c] sm:$0xf]
  %v2989 = vpack.c.bf16 %v2972, %v2972
  %v2990 = vld [vmem:[%s45] sm:$0x1]
  %v2992 = vperm.slane %v2990, 0
  %v3010 = vunpack.c.l.b16 %v2973
  %v3011 = vunpack.c.l.b16 %v2974
  %v3012 = vunpack.c.l.b16 %v2975
  %v3013 = vunpack.c.l.b16 %v2976
  %v3014 = vunpack.c.l.b16 %v2977
  %v3015 = vunpack.c.l.b16 %v2978
  %v3016 = vunpack.c.l.b16 %v2979
  %v3017 = vunpack.c.l.b16 %v2980
  %v3018 = vunpack.c.l.b16 %v2981
  %v3019 = vunpack.c.l.b16 %v2982
  %v3020 = vunpack.c.l.b16 %v2983
  %v3021 = vunpack.c.l.b16 %v2984
  %v3022 = vunpack.c.l.b16 %v2985
  %v3023 = vunpack.c.l.b16 %v2986
  %v3024 = vunpack.c.l.b16 %v2987
  %v3025 = vunpack.c.l.b16 %v2988
  %v3026 = vpack.c.b16 %v3011, %v3010
  %v3027 = vpack.c.b16 %v3013, %v3012
  %v3028 = vpack.c.b16 %v3015, %v3014
  %v3029 = vpack.c.b16 %v3017, %v3016
  %v3030 = vpack.c.b16 %v3019, %v3018
  %v3031 = vpack.c.b16 %v3021, %v3020
  %v3032 = vpack.c.b16 %v3023, %v3022
  %v3033 = vpack.c.b16 %v3025, %v3024
  %3042 = vmatpush.bf16.msra.mxu0 %v3033
  %3043 = vmatpush.bf16.msra.mxu0 %v3032
  %3044 = vmatpush.bf16.msra.mxu0 %v3031
  %3045 = vmatpush.bf16.msra.mxu0 %v3030
  %3046 = vmatpush.bf16.msra.mxu0 %v3029
  %3047 = vmatpush.bf16.msra.mxu0 %v3028
  %3048 = vmatpush.bf16.msra.mxu0 %v3027
  %3049 = vmatpush.bf16.msra.mxu0 %v3026
  %3050 = vmatmul.bf16.gmra.mxu0 %v2989
  %v3051 = vpop.f32.mrf.mxu0
  %v3052 = vadd.f32 %v2992, %v3051
  %v3053 = vpop.f32.mrf.mxu0
  %3054 = vdwg.mxu0
  %v3055 = vld [vmem:[#allocation5] sm:$0xff]
  %v3056 = vld [vmem:[%s47] sm:$0xf]
  %v3057 = vld [vmem:[%s47 + $0x4] sm:$0xf]
  %v3058 = vpack.c.bf16 %v3055, %v3055
  %v3059 = vld [vmem:[#allocation5 + $0x8] sm:$0xff]
  %v3060 = vld [vmem:[%s47 + $0x8] sm:$0xf]
  %v3061 = vld [vmem:[%s47 + $0xc] sm:$0xf]
  %v3062 = vpack.c.bf16 %v3059, %v3059
  %v3065 = vunpack.c.l.b16 %v3060
  %v3066 = vunpack.c.l.b16 %v3061
  %v3067 = vpack.c.b16 %v3066, %v3065
  %vm3069 = vcmask 130048
  %v3071 = vsel %vm3069, %v3062, 0
  %3073 = vmatpush.bf16.msra.mxu0 0
  %3074 = vmatpush.bf16.msra.mxu0 0
  %3075 = vmatpush.bf16.msra.mxu0 0
  %3076 = vmatpush.bf16.msra.mxu0 0
  %3077 = vmatpush.bf16.msra.mxu0 0
  %3078 = vmatpush.bf16.msra.mxu0 0
  %3079 = vmatpush.bf16.msra.mxu0 0
  %3080 = vmatpush.bf16.msra.mxu0 %v3067
  %3081 = vmatmul.bf16.gmra.mxu0 %v3071
  %v3082 = vpop.f32.mrf.mxu0
  %v3083 = vadd.f32 0.0, %v3082
  %v3084 = vpop.f32.mrf.mxu0
  %3085 = vdwg.mxu0
  %v3088 = vunpack.c.l.b16 %v3056
  %v3089 = vunpack.c.l.b16 %v3057
  %v3090 = vpack.c.b16 %v3089, %v3088
  %v3093 = vsel %vm3069, %v3058, 0
  %3095 = vmatpush.bf16.msra.mxu0 0
  %3096 = vmatpush.bf16.msra.mxu0 0
  %3097 = vmatpush.bf16.msra.mxu0 0
  %3098 = vmatpush.bf16.msra.mxu0 0
  %3099 = vmatpush.bf16.msra.mxu0 0
  %3100 = vmatpush.bf16.msra.mxu0 0
  %3101 = vmatpush.bf16.msra.mxu0 0
  %3102 = vmatpush.bf16.msra.mxu0 %v3090
  %3103 = vmatmul.bf16.gmra.mxu0 %v3093
  %v3104 = vpop.f32.mrf.mxu0
  %v3105 = vadd.f32 %v3083, %v3104
  %v3106 = vpop.f32.mrf.mxu0
  %3107 = vdwg.mxu0
  %v3108 = vld [vmem:[%s49] sm:$0x1]
  %v3110 = vperm.slane %v3108, 0
  %v3112 = vadd.f32 %v3105, %v3110
  %vm3113 = vcmp.ge.f32.partialorder %v3112, 0.0
  %v3114 = vmul.f32 %v3112, 0.01
  %v3115 = vsel %vm3113, %v3112, %v3114
  %v3116 = vld [vmem:[%s51] sm:$0xf]
  %v3117 = vld [vmem:[%s51 + $0x4] sm:$0xf]
  %v3118 = vld [vmem:[%s51 + $0x8] sm:$0xf]
  %v3119 = vld [vmem:[%s51 + $0xc] sm:$0xf]
  %v3120 = vld [vmem:[%s51 + $0x10] sm:$0xf]
  %v3121 = vld [vmem:[%s51 + $0x14] sm:$0xf]
  %v3122 = vld [vmem:[%s51 + $0x18] sm:$0xf]
  %v3123 = vld [vmem:[%s51 + $0x1c] sm:$0xf]
  %v3124 = vld [vmem:[%s51 + $0x20] sm:$0xf]
  %v3125 = vld [vmem:[%s51 + $0x24] sm:$0xf]
  %v3126 = vld [vmem:[%s51 + $0x28] sm:$0xf]
  %v3127 = vld [vmem:[%s51 + $0x2c] sm:$0xf]
  %v3128 = vld [vmem:[%s51 + $0x30] sm:$0xf]
  %v3129 = vld [vmem:[%s51 + $0x34] sm:$0xf]
  %v3130 = vld [vmem:[%s51 + $0x38] sm:$0xf]
  %v3131 = vld [vmem:[%s51 + $0x3c] sm:$0xf]
  %v3132 = vpack.c.bf16 %v3115, %v3115
  %v3133 = vld [vmem:[%s53] sm:$0x1]
  %v3135 = vperm.slane %v3133, 0
  %v3153 = vunpack.c.l.b16 %v3116
  %v3154 = vunpack.c.l.b16 %v3117
  %v3155 = vunpack.c.l.b16 %v3118
  %v3156 = vunpack.c.l.b16 %v3119
  %v3157 = vunpack.c.l.b16 %v3120
  %v3158 = vunpack.c.l.b16 %v3121
  %v3159 = vunpack.c.l.b16 %v3122
  %v3160 = vunpack.c.l.b16 %v3123
  %v3161 = vunpack.c.l.b16 %v3124
  %v3162 = vunpack.c.l.b16 %v3125
  %v3163 = vunpack.c.l.b16 %v3126
  %v3164 = vunpack.c.l.b16 %v3127
  %v3165 = vunpack.c.l.b16 %v3128
  %v3166 = vunpack.c.l.b16 %v3129
  %v3167 = vunpack.c.l.b16 %v3130
  %v3168 = vunpack.c.l.b16 %v3131
  %v3169 = vpack.c.b16 %v3154, %v3153
  %v3170 = vpack.c.b16 %v3156, %v3155
  %v3171 = vpack.c.b16 %v3158, %v3157
  %v3172 = vpack.c.b16 %v3160, %v3159
  %v3173 = vpack.c.b16 %v3162, %v3161
  %v3174 = vpack.c.b16 %v3164, %v3163
  %v3175 = vpack.c.b16 %v3166, %v3165
  %v3176 = vpack.c.b16 %v3168, %v3167
  %3185 = vmatpush.bf16.msra.mxu0 %v3176
  %3186 = vmatpush.bf16.msra.mxu0 %v3175
  %3187 = vmatpush.bf16.msra.mxu0 %v3174
  %3188 = vmatpush.bf16.msra.mxu0 %v3173
  %3189 = vmatpush.bf16.msra.mxu0 %v3172
  %3190 = vmatpush.bf16.msra.mxu0 %v3171
  %3191 = vmatpush.bf16.msra.mxu0 %v3170
  %3192 = vmatpush.bf16.msra.mxu0 %v3169
  %3193 = vmatmul.bf16.gmra.mxu0 %v3132
  %v3194 = vpop.f32.mrf.mxu0
  %v3195 = vadd.f32 %v3135, %v3194
  %v3196 = vpop.f32.mrf.mxu0
  %3197 = vdwg.mxu0
  %vm3198 = vcmp.ge.f32.partialorder %v3195, 0.0
  %v3199 = vmul.f32 %v3195, 0.01
  %v3200 = vsel %vm3198, %v3195, %v3199
  %v3201 = vld [vmem:[%s55] sm:$0xf]
  %v3202 = vld [vmem:[%s55 + $0x4] sm:$0xf]
  %v3203 = vld [vmem:[%s55 + $0x8] sm:$0xf]
  %v3204 = vld [vmem:[%s55 + $0xc] sm:$0xf]
  %v3205 = vld [vmem:[%s55 + $0x10] sm:$0xf]
  %v3206 = vld [vmem:[%s55 + $0x14] sm:$0xf]
  %v3207 = vld [vmem:[%s55 + $0x18] sm:$0xf]
  %v3208 = vld [vmem:[%s55 + $0x1c] sm:$0xf]
  %v3209 = vld [vmem:[%s55 + $0x20] sm:$0xf]
  %v3210 = vld [vmem:[%s55 + $0x24] sm:$0xf]
  %v3211 = vld [vmem:[%s55 + $0x28] sm:$0xf]
  %v3212 = vld [vmem:[%s55 + $0x2c] sm:$0xf]
  %v3213 = vld [vmem:[%s55 + $0x30] sm:$0xf]
  %v3214 = vld [vmem:[%s55 + $0x34] sm:$0xf]
  %v3215 = vld [vmem:[%s55 + $0x38] sm:$0xf]
  %v3216 = vld [vmem:[%s55 + $0x3c] sm:$0xf]
  %v3217 = vpack.c.bf16 %v3200, %v3200
  %v3218 = vld [vmem:[%s57] sm:$0x1]
  %v3220 = vperm.slane %v3218, 0
  %v3238 = vunpack.c.l.b16 %v3201
  %v3239 = vunpack.c.l.b16 %v3202
  %v3240 = vunpack.c.l.b16 %v3203
  %v3241 = vunpack.c.l.b16 %v3204
  %v3242 = vunpack.c.l.b16 %v3205
  %v3243 = vunpack.c.l.b16 %v3206
  %v3244 = vunpack.c.l.b16 %v3207
  %v3245 = vunpack.c.l.b16 %v3208
  %v3246 = vunpack.c.l.b16 %v3209
  %v3247 = vunpack.c.l.b16 %v3210
  %v3248 = vunpack.c.l.b16 %v3211
  %v3249 = vunpack.c.l.b16 %v3212
  %v3250 = vunpack.c.l.b16 %v3213
  %v3251 = vunpack.c.l.b16 %v3214
  %v3252 = vunpack.c.l.b16 %v3215
  %v3253 = vunpack.c.l.b16 %v3216
  %v3254 = vpack.c.b16 %v3239, %v3238
  %v3255 = vpack.c.b16 %v3241, %v3240
  %v3256 = vpack.c.b16 %v3243, %v3242
  %v3257 = vpack.c.b16 %v3245, %v3244
  %v3258 = vpack.c.b16 %v3247, %v3246
  %v3259 = vpack.c.b16 %v3249, %v3248
  %v3260 = vpack.c.b16 %v3251, %v3250
  %v3261 = vpack.c.b16 %v3253, %v3252
  %3270 = vmatpush.bf16.msra.mxu0 %v3261
  %3271 = vmatpush.bf16.msra.mxu0 %v3260
  %3272 = vmatpush.bf16.msra.mxu0 %v3259
  %3273 = vmatpush.bf16.msra.mxu0 %v3258
  %3274 = vmatpush.bf16.msra.mxu0 %v3257
  %3275 = vmatpush.bf16.msra.mxu0 %v3256
  %3276 = vmatpush.bf16.msra.mxu0 %v3255
  %3277 = vmatpush.bf16.msra.mxu0 %v3254
  %3278 = vmatmul.bf16.gmra.mxu0 %v3217
  %v3279 = vpop.f32.mrf.mxu0
  %v3280 = vadd.f32 %v3220, %v3279
  %v3281 = vpop.f32.mrf.mxu0
  %3282 = vdwg.mxu0
  %vm3283 = vcmp.ge.f32.partialorder %v3280, 0.0
  %v3284 = vmul.f32 %v3280, 0.01
  %v3285 = vsel %vm3283, %v3280, %v3284
  %v3286 = vld [vmem:[%s59] sm:$0xf]
  %v3287 = vld [vmem:[%s59 + $0x4] sm:$0xf]
  %v3288 = vld [vmem:[%s59 + $0x8] sm:$0xf]
  %v3289 = vld [vmem:[%s59 + $0xc] sm:$0xf]
  %v3290 = vld [vmem:[%s59 + $0x10] sm:$0xf]
  %v3291 = vld [vmem:[%s59 + $0x14] sm:$0xf]
  %v3292 = vld [vmem:[%s59 + $0x18] sm:$0xf]
  %v3293 = vld [vmem:[%s59 + $0x1c] sm:$0xf]
  %v3294 = vld [vmem:[%s59 + $0x20] sm:$0xf]
  %v3295 = vld [vmem:[%s59 + $0x24] sm:$0xf]
  %v3296 = vld [vmem:[%s59 + $0x28] sm:$0xf]
  %v3297 = vld [vmem:[%s59 + $0x2c] sm:$0xf]
  %v3298 = vld [vmem:[%s59 + $0x30] sm:$0xf]
  %v3299 = vld [vmem:[%s59 + $0x34] sm:$0xf]
  %v3300 = vld [vmem:[%s59 + $0x38] sm:$0xf]
  %v3301 = vld [vmem:[%s59 + $0x3c] sm:$0xf]
  %v3302 = vpack.c.bf16 %v3285, %v3285
  %v3303 = vld [vmem:[%s61] sm:$0x1]
  %v3305 = vperm.slane %v3303, 0
  %v3323 = vunpack.c.l.b16 %v3286
  %v3324 = vunpack.c.l.b16 %v3287
  %v3325 = vunpack.c.l.b16 %v3288
  %v3326 = vunpack.c.l.b16 %v3289
  %v3327 = vunpack.c.l.b16 %v3290
  %v3328 = vunpack.c.l.b16 %v3291
  %v3329 = vunpack.c.l.b16 %v3292
  %v3330 = vunpack.c.l.b16 %v3293
  %v3331 = vunpack.c.l.b16 %v3294
  %v3332 = vunpack.c.l.b16 %v3295
  %v3333 = vunpack.c.l.b16 %v3296
  %v3334 = vunpack.c.l.b16 %v3297
  %v3335 = vunpack.c.l.b16 %v3298
  %v3336 = vunpack.c.l.b16 %v3299
  %v3337 = vunpack.c.l.b16 %v3300
  %v3338 = vunpack.c.l.b16 %v3301
  %v3339 = vpack.c.b16 %v3324, %v3323
  %v3340 = vpack.c.b16 %v3326, %v3325
  %v3341 = vpack.c.b16 %v3328, %v3327
  %v3342 = vpack.c.b16 %v3330, %v3329
  %v3343 = vpack.c.b16 %v3332, %v3331
  %v3344 = vpack.c.b16 %v3334, %v3333
  %v3345 = vpack.c.b16 %v3336, %v3335
  %v3346 = vpack.c.b16 %v3338, %v3337
  %3355 = vmatpush.bf16.msra.mxu0 %v3346
  %3356 = vmatpush.bf16.msra.mxu0 %v3345
  %3357 = vmatpush.bf16.msra.mxu0 %v3344
  %3358 = vmatpush.bf16.msra.mxu0 %v3343
  %3359 = vmatpush.bf16.msra.mxu0 %v3342
  %3360 = vmatpush.bf16.msra.mxu0 %v3341
  %3361 = vmatpush.bf16.msra.mxu0 %v3340
  %3362 = vmatpush.bf16.msra.mxu0 %v3339
  %3363 = vmatmul.bf16.gmra.mxu0 %v3302
  %v3364 = vpop.f32.mrf.mxu0
  %v3365 = vadd.f32 %v3305, %v3364
  %v3366 = vpop.f32.mrf.mxu0
  %3367 = vdwg.mxu0
  %vm3368 = vcmp.ge.f32.partialorder %v3365, 0.0
  %v3369 = vmul.f32 %v3365, 0.01
  %v3370 = vsel %vm3368, %v3365, %v3369
  %v3371 = vld [vmem:[%s63] sm:$0xf]
  %v3372 = vld [vmem:[%s63 + $0x4] sm:$0xf]
  %v3373 = vld [vmem:[%s63 + $0x8] sm:$0xf]
  %v3374 = vld [vmem:[%s63 + $0xc] sm:$0xf]
  %v3375 = vld [vmem:[%s63 + $0x10] sm:$0xf]
  %v3376 = vld [vmem:[%s63 + $0x14] sm:$0xf]
  %v3377 = vld [vmem:[%s63 + $0x18] sm:$0xf]
  %v3378 = vld [vmem:[%s63 + $0x1c] sm:$0xf]
  %v3379 = vld [vmem:[%s63 + $0x20] sm:$0xf]
  %v3380 = vld [vmem:[%s63 + $0x24] sm:$0xf]
  %v3381 = vld [vmem:[%s63 + $0x28] sm:$0xf]
  %v3382 = vld [vmem:[%s63 + $0x2c] sm:$0xf]
  %v3383 = vld [vmem:[%s63 + $0x30] sm:$0xf]
  %v3384 = vld [vmem:[%s63 + $0x34] sm:$0xf]
  %v3385 = vld [vmem:[%s63 + $0x38] sm:$0xf]
  %v3386 = vld [vmem:[%s63 + $0x3c] sm:$0xf]
  %v3387 = vpack.c.bf16 %v3370, %v3370
  %v3388 = vld [vmem:[%s65] sm:$0x1]
  %v3390 = vperm.slane %v3388, 0
  %v3408 = vunpack.c.l.b16 %v3371
  %v3409 = vunpack.c.l.b16 %v3372
  %v3410 = vunpack.c.l.b16 %v3373
  %v3411 = vunpack.c.l.b16 %v3374
  %v3412 = vunpack.c.l.b16 %v3375
  %v3413 = vunpack.c.l.b16 %v3376
  %v3414 = vunpack.c.l.b16 %v3377
  %v3415 = vunpack.c.l.b16 %v3378
  %v3416 = vunpack.c.l.b16 %v3379
  %v3417 = vunpack.c.l.b16 %v3380
  %v3418 = vunpack.c.l.b16 %v3381
  %v3419 = vunpack.c.l.b16 %v3382
  %v3420 = vunpack.c.l.b16 %v3383
  %v3421 = vunpack.c.l.b16 %v3384
  %v3422 = vunpack.c.l.b16 %v3385
  %v3423 = vunpack.c.l.b16 %v3386
  %v3424 = vpack.c.b16 %v3409, %v3408
  %v3425 = vpack.c.b16 %v3411, %v3410
  %v3426 = vpack.c.b16 %v3413, %v3412
  %v3427 = vpack.c.b16 %v3415, %v3414
  %v3428 = vpack.c.b16 %v3417, %v3416
  %v3429 = vpack.c.b16 %v3419, %v3418
  %v3430 = vpack.c.b16 %v3421, %v3420
  %v3431 = vpack.c.b16 %v3423, %v3422
  %3440 = vmatpush.bf16.msra.mxu0 %v3431
  %3441 = vmatpush.bf16.msra.mxu0 %v3430
  %3442 = vmatpush.bf16.msra.mxu0 %v3429
  %3443 = vmatpush.bf16.msra.mxu0 %v3428
  %3444 = vmatpush.bf16.msra.mxu0 %v3427
  %3445 = vmatpush.bf16.msra.mxu0 %v3426
  %3446 = vmatpush.bf16.msra.mxu0 %v3425
  %3447 = vmatpush.bf16.msra.mxu0 %v3424
  %3448 = vmatmul.bf16.gmra.mxu0 %v3387
  %v3449 = vpop.f32.mrf.mxu0
  %v3450 = vadd.f32 %v3390, %v3449
  %v3451 = vpop.f32.mrf.mxu0
  %3452 = vdwg.mxu0
  %vm3453 = vcmp.ge.f32.partialorder %v3450, 0.0
  %v3454 = vmul.f32 %v3450, 0.01
  %v3455 = vsel %vm3453, %v3450, %v3454
  %v3456 = vld [vmem:[%s67] sm:$0xf]
  %v3457 = vld [vmem:[%s67 + $0x4] sm:$0xf]
  %v3458 = vld [vmem:[%s67 + $0x8] sm:$0xf]
  %v3459 = vld [vmem:[%s67 + $0xc] sm:$0xf]
  %v3460 = vld [vmem:[%s67 + $0x10] sm:$0xf]
  %v3461 = vld [vmem:[%s67 + $0x14] sm:$0xf]
  %v3462 = vld [vmem:[%s67 + $0x18] sm:$0xf]
  %v3463 = vld [vmem:[%s67 + $0x1c] sm:$0xf]
  %v3464 = vld [vmem:[%s67 + $0x20] sm:$0xf]
  %v3465 = vld [vmem:[%s67 + $0x24] sm:$0xf]
  %v3466 = vld [vmem:[%s67 + $0x28] sm:$0xf]
  %v3467 = vld [vmem:[%s67 + $0x2c] sm:$0xf]
  %v3468 = vld [vmem:[%s67 + $0x30] sm:$0xf]
  %v3469 = vld [vmem:[%s67 + $0x34] sm:$0xf]
  %v3470 = vld [vmem:[%s67 + $0x38] sm:$0xf]
  %v3471 = vld [vmem:[%s67 + $0x3c] sm:$0xf]
  %v3472 = vpack.c.bf16 %v3455, %v3455
  %v3473 = vld [vmem:[%s69] sm:$0x1]
  %v3475 = vperm.slane %v3473, 0
  %v3493 = vunpack.c.l.b16 %v3456
  %v3494 = vunpack.c.l.b16 %v3457
  %v3495 = vunpack.c.l.b16 %v3458
  %v3496 = vunpack.c.l.b16 %v3459
  %v3497 = vunpack.c.l.b16 %v3460
  %v3498 = vunpack.c.l.b16 %v3461
  %v3499 = vunpack.c.l.b16 %v3462
  %v3500 = vunpack.c.l.b16 %v3463
  %v3501 = vunpack.c.l.b16 %v3464
  %v3502 = vunpack.c.l.b16 %v3465
  %v3503 = vunpack.c.l.b16 %v3466
  %v3504 = vunpack.c.l.b16 %v3467
  %v3505 = vunpack.c.l.b16 %v3468
  %v3506 = vunpack.c.l.b16 %v3469
  %v3507 = vunpack.c.l.b16 %v3470
  %v3508 = vunpack.c.l.b16 %v3471
  %v3509 = vpack.c.b16 %v3494, %v3493
  %v3510 = vpack.c.b16 %v3496, %v3495
  %v3511 = vpack.c.b16 %v3498, %v3497
  %v3512 = vpack.c.b16 %v3500, %v3499
  %v3513 = vpack.c.b16 %v3502, %v3501
  %v3514 = vpack.c.b16 %v3504, %v3503
  %v3515 = vpack.c.b16 %v3506, %v3505
  %v3516 = vpack.c.b16 %v3508, %v3507
  %3525 = vmatpush.bf16.msra.mxu0 %v3516
  %3526 = vmatpush.bf16.msra.mxu0 %v3515
  %3527 = vmatpush.bf16.msra.mxu0 %v3514
  %3528 = vmatpush.bf16.msra.mxu0 %v3513
  %3529 = vmatpush.bf16.msra.mxu0 %v3512
  %3530 = vmatpush.bf16.msra.mxu0 %v3511
  %3531 = vmatpush.bf16.msra.mxu0 %v3510
  %3532 = vmatpush.bf16.msra.mxu0 %v3509
  %3533 = vmatmul.bf16.gmra.mxu0 %v3472
  %v3534 = vpop.f32.mrf.mxu0
  %v3535 = vadd.f32 %v3475, %v3534
  %v3536 = vpop.f32.mrf.mxu0
  %3537 = vdwg.mxu0
  %vm3538 = vcmp.ge.f32.partialorder %v3535, 0.0
  %v3539 = vmul.f32 %v3535, 0.01
  %v3540 = vsel %vm3538, %v3535, %v3539
  %v3541 = vld [vmem:[%s71] sm:$0xf]
  %v3542 = vld [vmem:[%s71 + $0x4] sm:$0xf]
  %v3543 = vld [vmem:[%s71 + $0x8] sm:$0xf]
  %v3544 = vld [vmem:[%s71 + $0xc] sm:$0xf]
  %v3545 = vld [vmem:[%s71 + $0x10] sm:$0xf]
  %v3546 = vld [vmem:[%s71 + $0x14] sm:$0xf]
  %v3547 = vld [vmem:[%s71 + $0x18] sm:$0xf]
  %v3548 = vld [vmem:[%s71 + $0x1c] sm:$0xf]
  %v3549 = vld [vmem:[%s71 + $0x20] sm:$0xf]
  %v3550 = vld [vmem:[%s71 + $0x24] sm:$0xf]
  %v3551 = vld [vmem:[%s71 + $0x28] sm:$0xf]
  %v3552 = vld [vmem:[%s71 + $0x2c] sm:$0xf]
  %v3553 = vld [vmem:[%s71 + $0x30] sm:$0xf]
  %v3554 = vld [vmem:[%s71 + $0x34] sm:$0xf]
  %v3555 = vld [vmem:[%s71 + $0x38] sm:$0xf]
  %v3556 = vld [vmem:[%s71 + $0x3c] sm:$0xf]
  %v3557 = vpack.c.bf16 %v3540, %v3540
  %v3558 = vld [vmem:[%s73] sm:$0x1]
  %v3560 = vperm.slane %v3558, 0
  %v3578 = vunpack.c.l.b16 %v3541
  %v3579 = vunpack.c.l.b16 %v3542
  %v3580 = vunpack.c.l.b16 %v3543
  %v3581 = vunpack.c.l.b16 %v3544
  %v3582 = vunpack.c.l.b16 %v3545
  %v3583 = vunpack.c.l.b16 %v3546
  %v3584 = vunpack.c.l.b16 %v3547
  %v3585 = vunpack.c.l.b16 %v3548
  %v3586 = vunpack.c.l.b16 %v3549
  %v3587 = vunpack.c.l.b16 %v3550
  %v3588 = vunpack.c.l.b16 %v3551
  %v3589 = vunpack.c.l.b16 %v3552
  %v3590 = vunpack.c.l.b16 %v3553
  %v3591 = vunpack.c.l.b16 %v3554
  %v3592 = vunpack.c.l.b16 %v3555
  %v3593 = vunpack.c.l.b16 %v3556
  %v3594 = vpack.c.b16 %v3579, %v3578
  %v3595 = vpack.c.b16 %v3581, %v3580
  %v3596 = vpack.c.b16 %v3583, %v3582
  %v3597 = vpack.c.b16 %v3585, %v3584
  %v3598 = vpack.c.b16 %v3587, %v3586
  %v3599 = vpack.c.b16 %v3589, %v3588
  %v3600 = vpack.c.b16 %v3591, %v3590
  %v3601 = vpack.c.b16 %v3593, %v3592
  %3610 = vmatpush.bf16.msra.mxu0 %v3601
  %3611 = vmatpush.bf16.msra.mxu0 %v3600
  %3612 = vmatpush.bf16.msra.mxu0 %v3599
  %3613 = vmatpush.bf16.msra.mxu0 %v3598
  %3614 = vmatpush.bf16.msra.mxu0 %v3597
  %3615 = vmatpush.bf16.msra.mxu0 %v3596
  %3616 = vmatpush.bf16.msra.mxu0 %v3595
  %3617 = vmatpush.bf16.msra.mxu0 %v3594
  %3618 = vmatmul.bf16.gmra.mxu0 %v3557
  %v3619 = vpop.f32.mrf.mxu0
  %v3620 = vadd.f32 %v3560, %v3619
  %v3621 = vpop.f32.mrf.mxu0
  %3622 = vdwg.mxu0
  %v3623 = vld [vmem:[%s75] sm:$0xf]
  %v3624 = vld [vmem:[%s75 + $0x4] sm:$0xf]
  %v3625 = vld [vmem:[%s75 + $0x8] sm:$0xf]
  %v3626 = vld [vmem:[%s75 + $0xc] sm:$0xf]
  %v3627 = vld [vmem:[%s75 + $0x10] sm:$0xf]
  %v3628 = vld [vmem:[%s75 + $0x14] sm:$0xf]
  %v3629 = vld [vmem:[%s75 + $0x18] sm:$0xf]
  %v3630 = vld [vmem:[%s75 + $0x1c] sm:$0xf]
  %v3631 = vld [vmem:[%s75 + $0x20] sm:$0xf]
  %v3632 = vld [vmem:[%s75 + $0x24] sm:$0xf]
  %v3633 = vld [vmem:[%s75 + $0x28] sm:$0xf]
  %v3634 = vld [vmem:[%s75 + $0x2c] sm:$0xf]
  %v3635 = vld [vmem:[%s75 + $0x30] sm:$0xf]
  %v3636 = vld [vmem:[%s75 + $0x34] sm:$0xf]
  %v3637 = vld [vmem:[%s75 + $0x38] sm:$0xf]
  %v3638 = vld [vmem:[%s75 + $0x3c] sm:$0xf]
  %v3639 = vpack.c.bf16 %v3052, %v3052
  %v3640 = vld [vmem:[%s75 + $0x40] sm:$0xf]
  %v3641 = vld [vmem:[%s75 + $0x44] sm:$0xf]
  %v3642 = vld [vmem:[%s75 + $0x48] sm:$0xf]
  %v3643 = vld [vmem:[%s75 + $0x4c] sm:$0xf]
  %v3644 = vld [vmem:[%s75 + $0x50] sm:$0xf]
  %v3645 = vld [vmem:[%s75 + $0x54] sm:$0xf]
  %v3646 = vld [vmem:[%s75 + $0x58] sm:$0xf]
  %v3647 = vld [vmem:[%s75 + $0x5c] sm:$0xf]
  %v3648 = vld [vmem:[%s75 + $0x60] sm:$0xf]
  %v3649 = vld [vmem:[%s75 + $0x64] sm:$0xf]
  %v3650 = vld [vmem:[%s75 + $0x68] sm:$0xf]
  %v3651 = vld [vmem:[%s75 + $0x6c] sm:$0xf]
  %v3652 = vld [vmem:[%s75 + $0x70] sm:$0xf]
  %v3653 = vld [vmem:[%s75 + $0x74] sm:$0xf]
  %v3654 = vld [vmem:[%s75 + $0x78] sm:$0xf]
  %v3655 = vld [vmem:[%s75 + $0x7c] sm:$0xf]
  %v3656 = vpack.c.bf16 %v3620, %v3620
  %v3673 = vunpack.c.l.b16 %v3640
  %v3674 = vunpack.c.l.b16 %v3641
  %v3675 = vunpack.c.l.b16 %v3642
  %v3676 = vunpack.c.l.b16 %v3643
  %v3677 = vunpack.c.l.b16 %v3644
  %v3678 = vunpack.c.l.b16 %v3645
  %v3679 = vunpack.c.l.b16 %v3646
  %v3680 = vunpack.c.l.b16 %v3647
  %v3681 = vunpack.c.l.b16 %v3648
  %v3682 = vunpack.c.l.b16 %v3649
  %v3683 = vunpack.c.l.b16 %v3650
  %v3684 = vunpack.c.l.b16 %v3651
  %v3685 = vunpack.c.l.b16 %v3652
  %v3686 = vunpack.c.l.b16 %v3653
  %v3687 = vunpack.c.l.b16 %v3654
  %v3688 = vunpack.c.l.b16 %v3655
  %v3689 = vpack.c.b16 %v3674, %v3673
  %v3690 = vpack.c.b16 %v3676, %v3675
  %v3691 = vpack.c.b16 %v3678, %v3677
  %v3692 = vpack.c.b16 %v3680, %v3679
  %v3693 = vpack.c.b16 %v3682, %v3681
  %v3694 = vpack.c.b16 %v3684, %v3683
  %v3695 = vpack.c.b16 %v3686, %v3685
  %v3696 = vpack.c.b16 %v3688, %v3687
  %3705 = vmatpush.bf16.msra.mxu0 %v3696
  %3706 = vmatpush.bf16.msra.mxu0 %v3695
  %3707 = vmatpush.bf16.msra.mxu0 %v3694
  %3708 = vmatpush.bf16.msra.mxu0 %v3693
  %3709 = vmatpush.bf16.msra.mxu0 %v3692
  %3710 = vmatpush.bf16.msra.mxu0 %v3691
  %3711 = vmatpush.bf16.msra.mxu0 %v3690
  %3712 = vmatpush.bf16.msra.mxu0 %v3689
  %3713 = vmatmul.bf16.gmra.mxu0 %v3656
  %v3714 = vpop.f32.mrf.mxu0
  %v3715 = vadd.f32 0.0, %v3714
  %v3716 = vpop.f32.mrf.mxu0
  %3717 = vdwg.mxu0
  %v3734 = vunpack.c.l.b16 %v3623
  %v3735 = vunpack.c.l.b16 %v3624
  %v3736 = vunpack.c.l.b16 %v3625
  %v3737 = vunpack.c.l.b16 %v3626
  %v3738 = vunpack.c.l.b16 %v3627
  %v3739 = vunpack.c.l.b16 %v3628
  %v3740 = vunpack.c.l.b16 %v3629
  %v3741 = vunpack.c.l.b16 %v3630
  %v3742 = vunpack.c.l.b16 %v3631
  %v3743 = vunpack.c.l.b16 %v3632
  %v3744 = vunpack.c.l.b16 %v3633
  %v3745 = vunpack.c.l.b16 %v3634
  %v3746 = vunpack.c.l.b16 %v3635
  %v3747 = vunpack.c.l.b16 %v3636
  %v3748 = vunpack.c.l.b16 %v3637
  %v3749 = vunpack.c.l.b16 %v3638
  %v3750 = vpack.c.b16 %v3735, %v3734
  %v3751 = vpack.c.b16 %v3737, %v3736
  %v3752 = vpack.c.b16 %v3739, %v3738
  %v3753 = vpack.c.b16 %v3741, %v3740
  %v3754 = vpack.c.b16 %v3743, %v3742
  %v3755 = vpack.c.b16 %v3745, %v3744
  %v3756 = vpack.c.b16 %v3747, %v3746
  %v3757 = vpack.c.b16 %v3749, %v3748
  %3766 = vmatpush.bf16.msra.mxu0 %v3757
  %3767 = vmatpush.bf16.msra.mxu0 %v3756
  %3768 = vmatpush.bf16.msra.mxu0 %v3755
  %3769 = vmatpush.bf16.msra.mxu0 %v3754
  %3770 = vmatpush.bf16.msra.mxu0 %v3753
  %3771 = vmatpush.bf16.msra.mxu0 %v3752
  %3772 = vmatpush.bf16.msra.mxu0 %v3751
  %3773 = vmatpush.bf16.msra.mxu0 %v3750
  %3774 = vmatmul.bf16.gmra.mxu0 %v3639
  %v3775 = vpop.f32.mrf.mxu0
  %v3776 = vadd.f32 %v3715, %v3775
  %v3777 = vpop.f32.mrf.mxu0
  %3778 = vdwg.mxu0
  %v3779 = vld [vmem:[%s77] sm:$0x1]
  %v3781 = vperm.slane %v3779, 0
  %v3783 = vadd.f32 %v3776, %v3781
  %vm3784 = vcmp.ge.f32.partialorder %v3783, 0.0
  %v3785 = vmul.f32 %v3783, 0.01
  %v3786 = vsel %vm3784, %v3783, %v3785
  %v3787 = vld [vmem:[%s79] sm:$0xf]
  %v3788 = vld [vmem:[%s79 + $0x4] sm:$0xf]
  %v3789 = vld [vmem:[%s79 + $0x8] sm:$0xf]
  %v3790 = vld [vmem:[%s79 + $0xc] sm:$0xf]
  %v3791 = vld [vmem:[%s79 + $0x10] sm:$0xf]
  %v3792 = vld [vmem:[%s79 + $0x14] sm:$0xf]
  %v3793 = vld [vmem:[%s79 + $0x18] sm:$0xf]
  %v3794 = vld [vmem:[%s79 + $0x1c] sm:$0xf]
  %v3795 = vld [vmem:[%s79 + $0x20] sm:$0xf]
  %v3796 = vld [vmem:[%s79 + $0x24] sm:$0xf]
  %v3797 = vld [vmem:[%s79 + $0x28] sm:$0xf]
  %v3798 = vld [vmem:[%s79 + $0x2c] sm:$0xf]
  %v3799 = vld [vmem:[%s79 + $0x30] sm:$0xf]
  %v3800 = vld [vmem:[%s79 + $0x34] sm:$0xf]
  %v3801 = vld [vmem:[%s79 + $0x38] sm:$0xf]
  %v3802 = vld [vmem:[%s79 + $0x3c] sm:$0xf]
  %v3803 = vpack.c.bf16 %v3786, %v3786
  %v3804 = vld [vmem:[%s81] sm:$0x1]
  %v3806 = vperm.slane %v3804, 0
  %v3824 = vunpack.c.l.b16 %v3787
  %v3825 = vunpack.c.l.b16 %v3788
  %v3826 = vunpack.c.l.b16 %v3789
  %v3827 = vunpack.c.l.b16 %v3790
  %v3828 = vunpack.c.l.b16 %v3791
  %v3829 = vunpack.c.l.b16 %v3792
  %v3830 = vunpack.c.l.b16 %v3793
  %v3831 = vunpack.c.l.b16 %v3794
  %v3832 = vunpack.c.l.b16 %v3795
  %v3833 = vunpack.c.l.b16 %v3796
  %v3834 = vunpack.c.l.b16 %v3797
  %v3835 = vunpack.c.l.b16 %v3798
  %v3836 = vunpack.c.l.b16 %v3799
  %v3837 = vunpack.c.l.b16 %v3800
  %v3838 = vunpack.c.l.b16 %v3801
  %v3839 = vunpack.c.l.b16 %v3802
  %v3840 = vpack.c.b16 %v3825, %v3824
  %v3841 = vpack.c.b16 %v3827, %v3826
  %v3842 = vpack.c.b16 %v3829, %v3828
  %v3843 = vpack.c.b16 %v3831, %v3830
  %v3844 = vpack.c.b16 %v3833, %v3832
  %v3845 = vpack.c.b16 %v3835, %v3834
  %v3846 = vpack.c.b16 %v3837, %v3836
  %v3847 = vpack.c.b16 %v3839, %v3838
  %3856 = vmatpush.bf16.msra.mxu0 %v3847
  %3857 = vmatpush.bf16.msra.mxu0 %v3846
  %3858 = vmatpush.bf16.msra.mxu0 %v3845
  %3859 = vmatpush.bf16.msra.mxu0 %v3844
  %3860 = vmatpush.bf16.msra.mxu0 %v3843
  %3861 = vmatpush.bf16.msra.mxu0 %v3842
  %3862 = vmatpush.bf16.msra.mxu0 %v3841
  %3863 = vmatpush.bf16.msra.mxu0 %v3840
  %3864 = vmatmul.bf16.gmra.mxu0 %v3803
  %v3865 = vpop.f32.mrf.mxu0
  %v3866 = vadd.f32 %v3806, %v3865
  %v3867 = vpop.f32.mrf.mxu0
  %3868 = vdwg.mxu0
  %vm3869 = vcmp.ge.f32.partialorder %v3866, 0.0
  %v3870 = vmul.f32 %v3866, 0.01
  %v3871 = vsel %vm3869, %v3866, %v3870
  %v3872 = vld [vmem:[%s83] sm:$0xf]
  %v3873 = vld [vmem:[%s83 + $0x4] sm:$0xf]
  %v3874 = vld [vmem:[%s83 + $0x8] sm:$0xf]
  %v3875 = vld [vmem:[%s83 + $0xc] sm:$0xf]
  %v3876 = vld [vmem:[%s83 + $0x10] sm:$0xf]
  %v3877 = vld [vmem:[%s83 + $0x14] sm:$0xf]
  %v3878 = vld [vmem:[%s83 + $0x18] sm:$0xf]
  %v3879 = vld [vmem:[%s83 + $0x1c] sm:$0xf]
  %v3880 = vld [vmem:[%s83 + $0x20] sm:$0xf]
  %v3881 = vld [vmem:[%s83 + $0x24] sm:$0xf]
  %v3882 = vld [vmem:[%s83 + $0x28] sm:$0xf]
  %v3883 = vld [vmem:[%s83 + $0x2c] sm:$0xf]
  %v3884 = vld [vmem:[%s83 + $0x30] sm:$0xf]
  %v3885 = vld [vmem:[%s83 + $0x34] sm:$0xf]
  %v3886 = vld [vmem:[%s83 + $0x38] sm:$0xf]
  %v3887 = vld [vmem:[%s83 + $0x3c] sm:$0xf]
  %v3888 = vpack.c.bf16 %v3871, %v3871
  %v3889 = vld [vmem:[%s85] sm:$0x1]
  %v3891 = vperm.slane %v3889, 0
  %v3909 = vunpack.c.l.b16 %v3872
  %v3910 = vunpack.c.l.b16 %v3873
  %v3911 = vunpack.c.l.b16 %v3874
  %v3912 = vunpack.c.l.b16 %v3875
  %v3913 = vunpack.c.l.b16 %v3876
  %v3914 = vunpack.c.l.b16 %v3877
  %v3915 = vunpack.c.l.b16 %v3878
  %v3916 = vunpack.c.l.b16 %v3879
  %v3917 = vunpack.c.l.b16 %v3880
  %v3918 = vunpack.c.l.b16 %v3881
  %v3919 = vunpack.c.l.b16 %v3882
  %v3920 = vunpack.c.l.b16 %v3883
  %v3921 = vunpack.c.l.b16 %v3884
  %v3922 = vunpack.c.l.b16 %v3885
  %v3923 = vunpack.c.l.b16 %v3886
  %v3924 = vunpack.c.l.b16 %v3887
  %v3925 = vpack.c.b16 %v3910, %v3909
  %v3926 = vpack.c.b16 %v3912, %v3911
  %v3927 = vpack.c.b16 %v3914, %v3913
  %v3928 = vpack.c.b16 %v3916, %v3915
  %v3929 = vpack.c.b16 %v3918, %v3917
  %v3930 = vpack.c.b16 %v3920, %v3919
  %v3931 = vpack.c.b16 %v3922, %v3921
  %v3932 = vpack.c.b16 %v3924, %v3923
  %3941 = vmatpush.bf16.msra.mxu0 %v3932
  %3942 = vmatpush.bf16.msra.mxu0 %v3931
  %3943 = vmatpush.bf16.msra.mxu0 %v3930
  %3944 = vmatpush.bf16.msra.mxu0 %v3929
  %3945 = vmatpush.bf16.msra.mxu0 %v3928
  %3946 = vmatpush.bf16.msra.mxu0 %v3927
  %3947 = vmatpush.bf16.msra.mxu0 %v3926
  %3948 = vmatpush.bf16.msra.mxu0 %v3925
  %3949 = vmatmul.bf16.gmra.mxu0 %v3888
  %v3950 = vpop.f32.mrf.mxu0
  %v3951 = vadd.f32 %v3891, %v3950
  %v3952 = vpop.f32.mrf.mxu0
  %3953 = vdwg.mxu0
  %vm3954 = vcmp.ge.f32.partialorder %v3951, 0.0
  %v3955 = vmul.f32 %v3951, 0.01
  %v3956 = vsel %vm3954, %v3951, %v3955
  %v3957 = vld [vmem:[%s87] sm:$0xf]
  %v3958 = vld [vmem:[%s87 + $0x4] sm:$0xf]
  %v3959 = vld [vmem:[%s87 + $0x8] sm:$0xf]
  %v3960 = vld [vmem:[%s87 + $0xc] sm:$0xf]
  %v3961 = vld [vmem:[%s87 + $0x10] sm:$0xf]
  %v3962 = vld [vmem:[%s87 + $0x14] sm:$0xf]
  %v3963 = vld [vmem:[%s87 + $0x18] sm:$0xf]
  %v3964 = vld [vmem:[%s87 + $0x1c] sm:$0xf]
  %v3965 = vld [vmem:[%s87 + $0x20] sm:$0xf]
  %v3966 = vld [vmem:[%s87 + $0x24] sm:$0xf]
  %v3967 = vld [vmem:[%s87 + $0x28] sm:$0xf]
  %v3968 = vld [vmem:[%s87 + $0x2c] sm:$0xf]
  %v3969 = vld [vmem:[%s87 + $0x30] sm:$0xf]
  %v3970 = vld [vmem:[%s87 + $0x34] sm:$0xf]
  %v3971 = vld [vmem:[%s87 + $0x38] sm:$0xf]
  %v3972 = vld [vmem:[%s87 + $0x3c] sm:$0xf]
  %v3973 = vpack.c.bf16 %v3956, %v3956
  %v3974 = vld [vmem:[%s89] sm:$0x1]
  %v3976 = vperm.slane %v3974, 0
  %v3994 = vunpack.c.l.b16 %v3957
  %v3995 = vunpack.c.l.b16 %v3958
  %v3996 = vunpack.c.l.b16 %v3959
  %v3997 = vunpack.c.l.b16 %v3960
  %v3998 = vunpack.c.l.b16 %v3961
  %v3999 = vunpack.c.l.b16 %v3962
  %v4000 = vunpack.c.l.b16 %v3963
  %v4001 = vunpack.c.l.b16 %v3964
  %v4002 = vunpack.c.l.b16 %v3965
  %v4003 = vunpack.c.l.b16 %v3966
  %v4004 = vunpack.c.l.b16 %v3967
  %v4005 = vunpack.c.l.b16 %v3968
  %v4006 = vunpack.c.l.b16 %v3969
  %v4007 = vunpack.c.l.b16 %v3970
  %v4008 = vunpack.c.l.b16 %v3971
  %v4009 = vunpack.c.l.b16 %v3972
  %v4010 = vpack.c.b16 %v3995, %v3994
  %v4011 = vpack.c.b16 %v3997, %v3996
  %v4012 = vpack.c.b16 %v3999, %v3998
  %v4013 = vpack.c.b16 %v4001, %v4000
  %v4014 = vpack.c.b16 %v4003, %v4002
  %v4015 = vpack.c.b16 %v4005, %v4004
  %v4016 = vpack.c.b16 %v4007, %v4006
  %v4017 = vpack.c.b16 %v4009, %v4008
  %4026 = vmatpush.bf16.msra.mxu0 %v4017
  %4027 = vmatpush.bf16.msra.mxu0 %v4016
  %4028 = vmatpush.bf16.msra.mxu0 %v4015
  %4029 = vmatpush.bf16.msra.mxu0 %v4014
  %4030 = vmatpush.bf16.msra.mxu0 %v4013
  %4031 = vmatpush.bf16.msra.mxu0 %v4012
  %4032 = vmatpush.bf16.msra.mxu0 %v4011
  %4033 = vmatpush.bf16.msra.mxu0 %v4010
  %4034 = vmatmul.bf16.gmra.mxu0 %v3973
  %v4035 = vpop.f32.mrf.mxu0
  %v4036 = vadd.f32 %v3976, %v4035
  %v4037 = vpop.f32.mrf.mxu0
  %4038 = vdwg.mxu0
  %vm4039 = vcmp.ge.f32.partialorder %v4036, 0.0
  %v4040 = vmul.f32 %v4036, 0.01
  %v4041 = vsel %vm4039, %v4036, %v4040
  %v4042 = vld [vmem:[%s91] sm:$0xf]
  %v4043 = vld [vmem:[%s91 + $0x4] sm:$0xf]
  %v4044 = vld [vmem:[%s91 + $0x8] sm:$0xf]
  %v4045 = vld [vmem:[%s91 + $0xc] sm:$0xf]
  %v4046 = vld [vmem:[%s91 + $0x10] sm:$0xf]
  %v4047 = vld [vmem:[%s91 + $0x14] sm:$0xf]
  %v4048 = vld [vmem:[%s91 + $0x18] sm:$0xf]
  %v4049 = vld [vmem:[%s91 + $0x1c] sm:$0xf]
  %v4050 = vld [vmem:[%s91 + $0x20] sm:$0xf]
  %v4051 = vld [vmem:[%s91 + $0x24] sm:$0xf]
  %v4052 = vld [vmem:[%s91 + $0x28] sm:$0xf]
  %v4053 = vld [vmem:[%s91 + $0x2c] sm:$0xf]
  %v4054 = vld [vmem:[%s91 + $0x30] sm:$0xf]
  %v4055 = vld [vmem:[%s91 + $0x34] sm:$0xf]
  %v4056 = vld [vmem:[%s91 + $0x38] sm:$0xf]
  %v4057 = vld [vmem:[%s91 + $0x3c] sm:$0xf]
  %v4058 = vpack.c.bf16 %v4041, %v4041
  %v4059 = vld [vmem:[%s93] sm:$0x1]
  %v4061 = vperm.slane %v4059, 0
  %v4079 = vunpack.c.l.b16 %v4042
  %v4080 = vunpack.c.l.b16 %v4043
  %v4081 = vunpack.c.l.b16 %v4044
  %v4082 = vunpack.c.l.b16 %v4045
  %v4083 = vunpack.c.l.b16 %v4046
  %v4084 = vunpack.c.l.b16 %v4047
  %v4085 = vunpack.c.l.b16 %v4048
  %v4086 = vunpack.c.l.b16 %v4049
  %v4087 = vunpack.c.l.b16 %v4050
  %v4088 = vunpack.c.l.b16 %v4051
  %v4089 = vunpack.c.l.b16 %v4052
  %v4090 = vunpack.c.l.b16 %v4053
  %v4091 = vunpack.c.l.b16 %v4054
  %v4092 = vunpack.c.l.b16 %v4055
  %v4093 = vunpack.c.l.b16 %v4056
  %v4094 = vunpack.c.l.b16 %v4057
  %v4095 = vpack.c.b16 %v4080, %v4079
  %v4096 = vpack.c.b16 %v4082, %v4081
  %v4097 = vpack.c.b16 %v4084, %v4083
  %v4098 = vpack.c.b16 %v4086, %v4085
  %v4099 = vpack.c.b16 %v4088, %v4087
  %v4100 = vpack.c.b16 %v4090, %v4089
  %v4101 = vpack.c.b16 %v4092, %v4091
  %v4102 = vpack.c.b16 %v4094, %v4093
  %4111 = vmatpush.bf16.msra.mxu0 %v4102
  %4112 = vmatpush.bf16.msra.mxu0 %v4101
  %4113 = vmatpush.bf16.msra.mxu0 %v4100
  %4114 = vmatpush.bf16.msra.mxu0 %v4099
  %4115 = vmatpush.bf16.msra.mxu0 %v4098
  %4116 = vmatpush.bf16.msra.mxu0 %v4097
  %4117 = vmatpush.bf16.msra.mxu0 %v4096
  %4118 = vmatpush.bf16.msra.mxu0 %v4095
  %4119 = vmatmul.bf16.gmra.mxu0 %v4058
  %v4120 = vpop.f32.mrf.mxu0
  %v4121 = vadd.f32 %v4061, %v4120
  %v4122 = vpop.f32.mrf.mxu0
  %4123 = vdwg.mxu0
  %vm4124 = vcmp.ge.f32.partialorder %v4121, 0.0
  %v4125 = vmul.f32 %v4121, 0.01
  %v4126 = vsel %vm4124, %v4121, %v4125
  %v4127 = vld [vmem:[%s95] sm:$0xf]
  %v4128 = vld [vmem:[%s95 + $0x4] sm:$0xf]
  %v4129 = vld [vmem:[%s95 + $0x8] sm:$0xf]
  %v4130 = vld [vmem:[%s95 + $0xc] sm:$0xf]
  %v4131 = vld [vmem:[%s95 + $0x10] sm:$0xf]
  %v4132 = vld [vmem:[%s95 + $0x14] sm:$0xf]
  %v4133 = vld [vmem:[%s95 + $0x18] sm:$0xf]
  %v4134 = vld [vmem:[%s95 + $0x1c] sm:$0xf]
  %v4135 = vld [vmem:[%s95 + $0x20] sm:$0xf]
  %v4136 = vld [vmem:[%s95 + $0x24] sm:$0xf]
  %v4137 = vld [vmem:[%s95 + $0x28] sm:$0xf]
  %v4138 = vld [vmem:[%s95 + $0x2c] sm:$0xf]
  %v4139 = vld [vmem:[%s95 + $0x30] sm:$0xf]
  %v4140 = vld [vmem:[%s95 + $0x34] sm:$0xf]
  %v4141 = vld [vmem:[%s95 + $0x38] sm:$0xf]
  %v4142 = vld [vmem:[%s95 + $0x3c] sm:$0xf]
  %v4143 = vpack.c.bf16 %v4126, %v4126
  %v4144 = vld [vmem:[%s97] sm:$0x1]
  %v4146 = vperm.slane %v4144, 0
  %v4164 = vunpack.c.l.b16 %v4127
  %v4165 = vunpack.c.l.b16 %v4128
  %v4166 = vunpack.c.l.b16 %v4129
  %v4167 = vunpack.c.l.b16 %v4130
  %v4168 = vunpack.c.l.b16 %v4131
  %v4169 = vunpack.c.l.b16 %v4132
  %v4170 = vunpack.c.l.b16 %v4133
  %v4171 = vunpack.c.l.b16 %v4134
  %v4172 = vunpack.c.l.b16 %v4135
  %v4173 = vunpack.c.l.b16 %v4136
  %v4174 = vunpack.c.l.b16 %v4137
  %v4175 = vunpack.c.l.b16 %v4138
  %v4176 = vunpack.c.l.b16 %v4139
  %v4177 = vunpack.c.l.b16 %v4140
  %v4178 = vunpack.c.l.b16 %v4141
  %v4179 = vunpack.c.l.b16 %v4142
  %v4180 = vpack.c.b16 %v4165, %v4164
  %v4181 = vpack.c.b16 %v4167, %v4166
  %v4182 = vpack.c.b16 %v4169, %v4168
  %v4183 = vpack.c.b16 %v4171, %v4170
  %v4184 = vpack.c.b16 %v4173, %v4172
  %v4185 = vpack.c.b16 %v4175, %v4174
  %v4186 = vpack.c.b16 %v4177, %v4176
  %v4187 = vpack.c.b16 %v4179, %v4178
  %4196 = vmatpush.bf16.msra.mxu0 %v4187
  %4197 = vmatpush.bf16.msra.mxu0 %v4186
  %4198 = vmatpush.bf16.msra.mxu0 %v4185
  %4199 = vmatpush.bf16.msra.mxu0 %v4184
  %4200 = vmatpush.bf16.msra.mxu0 %v4183
  %4201 = vmatpush.bf16.msra.mxu0 %v4182
  %4202 = vmatpush.bf16.msra.mxu0 %v4181
  %4203 = vmatpush.bf16.msra.mxu0 %v4180
  %4204 = vmatmul.bf16.gmra.mxu0 %v4143
  %v4205 = vpop.f32.mrf.mxu0
  %v4206 = vadd.f32 %v4146, %v4205
  %v4207 = vpop.f32.mrf.mxu0
  %4208 = vdwg.mxu0
  %vm4209 = vcmp.ge.f32.partialorder %v4206, 0.0
  %v4210 = vmul.f32 %v4206, 0.01
  %v4211 = vsel %vm4209, %v4206, %v4210
  %v4212 = vld [vmem:[%s99] sm:$0xf]
  %v4213 = vld [vmem:[%s99 + $0x4] sm:$0xf]
  %v4214 = vld [vmem:[%s99 + $0x8] sm:$0xf]
  %v4215 = vld [vmem:[%s99 + $0xc] sm:$0xf]
  %v4216 = vld [vmem:[%s99 + $0x10] sm:$0xf]
  %v4217 = vld [vmem:[%s99 + $0x14] sm:$0xf]
  %v4218 = vld [vmem:[%s99 + $0x18] sm:$0xf]
  %v4219 = vld [vmem:[%s99 + $0x1c] sm:$0xf]
  %v4220 = vld [vmem:[%s99 + $0x20] sm:$0xf]
  %v4221 = vld [vmem:[%s99 + $0x24] sm:$0xf]
  %v4222 = vld [vmem:[%s99 + $0x28] sm:$0xf]
  %v4223 = vld [vmem:[%s99 + $0x2c] sm:$0xf]
  %v4224 = vld [vmem:[%s99 + $0x30] sm:$0xf]
  %v4225 = vld [vmem:[%s99 + $0x34] sm:$0xf]
  %v4226 = vld [vmem:[%s99 + $0x38] sm:$0xf]
  %v4227 = vld [vmem:[%s99 + $0x3c] sm:$0xf]
  %v4228 = vpack.c.bf16 %v4211, %v4211
  %v4229 = vld [vmem:[%s101] sm:$0x1]
  %v4231 = vperm.slane %v4229, 0
  %v4249 = vunpack.c.l.b16 %v4212
  %v4250 = vunpack.c.l.b16 %v4213
  %v4251 = vunpack.c.l.b16 %v4214
  %v4252 = vunpack.c.l.b16 %v4215
  %v4253 = vunpack.c.l.b16 %v4216
  %v4254 = vunpack.c.l.b16 %v4217
  %v4255 = vunpack.c.l.b16 %v4218
  %v4256 = vunpack.c.l.b16 %v4219
  %v4257 = vunpack.c.l.b16 %v4220
  %v4258 = vunpack.c.l.b16 %v4221
  %v4259 = vunpack.c.l.b16 %v4222
  %v4260 = vunpack.c.l.b16 %v4223
  %v4261 = vunpack.c.l.b16 %v4224
  %v4262 = vunpack.c.l.b16 %v4225
  %v4263 = vunpack.c.l.b16 %v4226
  %v4264 = vunpack.c.l.b16 %v4227
  %v4265 = vpack.c.b16 %v4250, %v4249
  %v4266 = vpack.c.b16 %v4252, %v4251
  %v4267 = vpack.c.b16 %v4254, %v4253
  %v4268 = vpack.c.b16 %v4256, %v4255
  %v4269 = vpack.c.b16 %v4258, %v4257
  %v4270 = vpack.c.b16 %v4260, %v4259
  %v4271 = vpack.c.b16 %v4262, %v4261
  %v4272 = vpack.c.b16 %v4264, %v4263
  %4281 = vmatpush.bf16.msra.mxu0 %v4272
  %4282 = vmatpush.bf16.msra.mxu0 %v4271
  %4283 = vmatpush.bf16.msra.mxu0 %v4270
  %4284 = vmatpush.bf16.msra.mxu0 %v4269
  %4285 = vmatpush.bf16.msra.mxu0 %v4268
  %4286 = vmatpush.bf16.msra.mxu0 %v4267
  %4287 = vmatpush.bf16.msra.mxu0 %v4266
  %4288 = vmatpush.bf16.msra.mxu0 %v4265
  %4289 = vmatmul.bf16.gmra.mxu0 %v4228
  %v4290 = vpop.f32.mrf.mxu0
  %v4291 = vadd.f32 %v4231, %v4290
  %v4292 = vpop.f32.mrf.mxu0
  %4293 = vdwg.mxu0
  %v4294 = vld [vmem:[%s103] sm:$0xf]
  %v4295 = vld [vmem:[%s103 + $0x4] sm:$0xf]
  %v4296 = vld [vmem:[%s103 + $0x8] sm:$0xf]
  %v4297 = vld [vmem:[%s103 + $0xc] sm:$0xf]
  %v4298 = vld [vmem:[%s103 + $0x10] sm:$0xf]
  %v4299 = vld [vmem:[%s103 + $0x14] sm:$0xf]
  %v4300 = vld [vmem:[%s103 + $0x18] sm:$0xf]
  %v4301 = vld [vmem:[%s103 + $0x1c] sm:$0xf]
  %v4302 = vld [vmem:[%s103 + $0x20] sm:$0xf]
  %v4303 = vld [vmem:[%s103 + $0x24] sm:$0xf]
  %v4304 = vld [vmem:[%s103 + $0x28] sm:$0xf]
  %v4305 = vld [vmem:[%s103 + $0x2c] sm:$0xf]
  %v4306 = vld [vmem:[%s103 + $0x30] sm:$0xf]
  %v4307 = vld [vmem:[%s103 + $0x34] sm:$0xf]
  %v4308 = vld [vmem:[%s103 + $0x38] sm:$0xf]
  %v4309 = vld [vmem:[%s103 + $0x3c] sm:$0xf]
  %v4310 = vpack.c.bf16 %v4291, %v4291
  %v4311 = vld [vmem:[%s105] sm:$0x1]
  %v4313 = vperm.slane %v4311, 0
  %v4331 = vunpack.c.l.b16 %v4294
  %v4332 = vunpack.c.l.b16 %v4295
  %v4333 = vunpack.c.l.b16 %v4296
  %v4334 = vunpack.c.l.b16 %v4297
  %v4335 = vunpack.c.l.b16 %v4298
  %v4336 = vunpack.c.l.b16 %v4299
  %v4337 = vunpack.c.l.b16 %v4300
  %v4338 = vunpack.c.l.b16 %v4301
  %v4339 = vunpack.c.l.b16 %v4302
  %v4340 = vunpack.c.l.b16 %v4303
  %v4341 = vunpack.c.l.b16 %v4304
  %v4342 = vunpack.c.l.b16 %v4305
  %v4343 = vunpack.c.l.b16 %v4306
  %v4344 = vunpack.c.l.b16 %v4307
  %v4345 = vunpack.c.l.b16 %v4308
  %v4346 = vunpack.c.l.b16 %v4309
  %v4347 = vpack.c.b16 %v4332, %v4331
  %v4348 = vpack.c.b16 %v4334, %v4333
  %v4349 = vpack.c.b16 %v4336, %v4335
  %v4350 = vpack.c.b16 %v4338, %v4337
  %v4351 = vpack.c.b16 %v4340, %v4339
  %v4352 = vpack.c.b16 %v4342, %v4341
  %v4353 = vpack.c.b16 %v4344, %v4343
  %v4354 = vpack.c.b16 %v4346, %v4345
  %4363 = vmatpush.bf16.msra.mxu0 %v4354
  %4364 = vmatpush.bf16.msra.mxu0 %v4353
  %4365 = vmatpush.bf16.msra.mxu0 %v4352
  %4366 = vmatpush.bf16.msra.mxu0 %v4351
  %4367 = vmatpush.bf16.msra.mxu0 %v4350
  %4368 = vmatpush.bf16.msra.mxu0 %v4349
  %4369 = vmatpush.bf16.msra.mxu0 %v4348
  %4370 = vmatpush.bf16.msra.mxu0 %v4347
  %4371 = vmatmul.bf16.gmra.mxu0 %v4310
  %v4372 = vpop.f32.mrf.mxu0
  %v4373 = vadd.f32 %v4313, %v4372
  %v4374 = vpop.f32.mrf.mxu0
  %4375 = vdwg.mxu0
  %4376 = vst [vmem:[%s107] sm:$0xff] %v4373
  // Predicated region
  $region214: #{grunet_forward.1} parent=0 // pred_check
    _
  $region215: #{grunet_forward.1} parent=0 // pred_check_branch
    %4378 = sbr.rel (0) target = $region217
  $region216: #{grunet_forward.1} parent=0 // pred_region
    _
  $region217: #{grunet_forward.1} parent=0 // pred_fallthru
    _
  // Predicated region
  $region218: #{grunet_forward.1} parent=0 // pred_check
    _
  $region219: #{grunet_forward.1} parent=0 // pred_check_branch
    %4380 = sbr.rel (0) target = $region221
  $region220: #{grunet_forward.1} parent=0 // pred_region
    _
  $region221: #{grunet_forward.1} parent=0 // pred_fallthru
    _

</llo_original>
